<compile_context>
chip_gen: v7x
topology: tpu7x:2x2x1
jax: 0.10.0
libtpu: 0.0.40
codegen_flags: <defaults>
</compile_context>

<pallas_src>
import functools

import jax
import jax.numpy as jnp
from jax.experimental import pallas as pl
from jax.experimental.pallas import tpu as pltpu


def _round_up(x, m):
    return ((x + m - 1) // m) * m


def _cdiv(a, b):
    return -(-a // b)


# ----------------------------------------------------------------------------
# Pallas kernels
# ----------------------------------------------------------------------------
def _gemm_bias_relu_kernel(p_ref, w_ref, b_ref, o_ref):
    # Single K step: p (TM, Kp) bf16 patches, w (Kp, TN) bf16 BN-folded
    # weights (VMEM resident when TN == Np), b (1, TN) f32 bias.
    acc = jnp.dot(p_ref[...], w_ref[...], preferred_element_type=jnp.float32)
    o_ref[...] = jnp.maximum(acc + b_ref[...], 0.0).astype(o_ref.dtype)


def _gemm_bias_relu_acc_kernel(p_ref, w_ref, b_ref, o_ref, acc_ref):
    # Fallback when the K axis is tiled (weights too large for VMEM residency).
    k = pl.program_id(2)

    @pl.when(k == 0)
    def _():
        acc_ref[...] = jnp.zeros_like(acc_ref)

    acc_ref[...] += jnp.dot(p_ref[...], w_ref[...],
                            preferred_element_type=jnp.float32)

    @pl.when(k == pl.num_programs(2) - 1)
    def _():
        o_ref[...] = jnp.maximum(acc_ref[...] + b_ref[...],
                                 0.0).astype(o_ref.dtype)


def _maxpool_kernel(t_ref, o_ref):
    # t: (9, A, B) window taps; reduce over the 9 taps.
    o_ref[...] = jnp.max(t_ref[...], axis=0)


# ----------------------------------------------------------------------------
# Generation-aware tile selection
# ----------------------------------------------------------------------------
@functools.lru_cache(maxsize=None)
def _tpu_generation():
    try:
        kind = jax.devices()[0].device_kind.lower()
    except Exception:
        return 0
    for gen in (7, 6, 5, 4, 3, 2):
        if "v{}".format(gen) in kind:
            return gen
    return 0


def _select_gemm_tiling(M, K, Cout, out_bytes):
    """Pick (tm, tn, tk, Mp, Np, Kp, nk, vmem_limit) for relu(p @ w + b)."""
    gen = _tpu_generation()
    tm_pref = 256 if gen >= 6 else 128
    # Working-set budget for the GEMM (conservative: v7x = 64 MiB physical /
    # 32 MiB default scoped VMEM, v5e = 16 MiB default scoped).
    budget = {7: 24 << 20, 6: 64 << 20, 5: 12 << 20}.get(gen, 12 << 20)

    if M >= tm_pref:
        tm = tm_pref
    elif M >= 128:
        tm = 128
    else:
        tm = _round_up(max(M, 1), 16)       # multiple of 16: bf16 sublane pack
    Mp = _round_up(M, tm)

    kq = 128 if K >= 128 else 16            # tiny-K guard (1x1 stem, Cin=4)
    Kp = _round_up(K, kq)
    Np = _round_up(Cout, 128)

    def usage(tm_, tn_, tk_, nk_):
        u = (2 * tm_ * tk_ * 2              # bf16 patch blocks (double buffer)
             + 2 * tk_ * tn_ * 2            # bf16 weight block(s)
             + 2 * tn_ * 4                  # bias
             + 2 * tm_ * tn_ * out_bytes)   # output blocks
        if nk_ > 1:
            u += tm_ * tn_ * 4              # f32 accumulator scratch
        return u

    # 1) fully VMEM-resident weights: single N block and single K block.
    tn, tk, nk = Np, Kp, 1
    # 2) fall back to tiling Cout ...
    if usage(tm, tn, tk, nk) > budget and Np > 256:
        tn = 256 if gen >= 6 else 128
        while Np % tn:
            tn //= 2
    # 3) ... and finally the K axis (nk * round_up(cdiv(Kp, nk), 128)).
    while usage(tm, tn, tk, nk) > budget and tk > 128:
        nk += 1
        tk = _round_up(_cdiv(Kp, nk), 128)
    Kp = tk * nk

    # v7x megacore: give both TensorCores >=2 pipelined steps when possible.
    if gen >= 7:
        while (Mp // tm) * (Np // tn) < 4 and tm > 128:
            tm //= 2
            Mp = _round_up(M, tm)
        if (Mp // tm) * (Np // tn) < 2 and tn > 128:
            tn = 128                         # Np is a multiple of 128

    cap = (48 << 20) if gen >= 7 else (96 << 20)
    vmem_limit = int(min(cap, max(32 << 20, 2 * usage(tm, tn, tk, nk))))
    return tm, tn, tk, Mp, Np, Kp, nk, vmem_limit


# ----------------------------------------------------------------------------
# Wrappers around pallas_call
# ----------------------------------------------------------------------------
def gemm_bias_relu(patches, w_folded, bias, *, out_dtype=jnp.float32):
    """relu(patches @ w_folded + bias) on the MXU.

    patches:  (M, K)     float (cast to bf16 here)
    w_folded: (K, Cout)  f32, BN scale already folded in (cast to bf16 here)
    bias:     (Cout,)    f32
    returns   (M, Cout)  out_dtype
    """
    M, K = patches.shape
    Cout = w_folded.shape[1]
    out_bytes = jnp.dtype(out_dtype).itemsize
    tm, tn, tk, Mp, Np, Kp, nk, vmem_limit = _select_gemm_tiling(
        M, K, Cout, out_bytes)

    p = patches.astype(jnp.bfloat16)
    if (Mp, Kp) != (M, K):
        p = jnp.pad(p, ((0, Mp - M), (0, Kp - K)))
    w = w_folded.astype(jnp.bfloat16)
    if (Kp, Np) != (K, Cout):
        w = jnp.pad(w, ((0, Kp - K), (0, Np - Cout)))
    b = (bias if Np == Cout else jnp.pad(bias, (0, Np - Cout))).reshape(1, Np)

    if nk == 1:
        out = pl.pallas_call(
            _gemm_bias_relu_kernel,
            out_shape=jax.ShapeDtypeStruct((Mp, Np), out_dtype),
            grid=(Mp // tm, Np // tn),
            in_specs=[
                pl.BlockSpec((tm, tk), lambda i, j: (i, 0)),
                pl.BlockSpec((tk, tn), lambda i, j: (0, j)),  # resident block
                pl.BlockSpec((1, tn), lambda i, j: (0, j)),
            ],
            out_specs=pl.BlockSpec((tm, tn), lambda i, j: (i, j)),
            compiler_params=pltpu.CompilerParams(
                dimension_semantics=("parallel", "parallel"),
                vmem_limit_bytes=vmem_limit),
        )(p, w, b)
    else:
        out = pl.pallas_call(
            _gemm_bias_relu_acc_kernel,
            out_shape=jax.ShapeDtypeStruct((Mp, Np), out_dtype),
            grid=(Mp // tm, Np // tn, nk),
            in_specs=[
                pl.BlockSpec((tm, tk), lambda i, j, k: (i, k)),
                pl.BlockSpec((tk, tn), lambda i, j, k: (k, j)),
                pl.BlockSpec((1, tn), lambda i, j, k: (0, j)),
            ],
            out_specs=pl.BlockSpec((tm, tn), lambda i, j, k: (i, j)),
            scratch_shapes=[pltpu.VMEM((tm, tn), jnp.float32)],
            compiler_params=pltpu.CompilerParams(
                dimension_semantics=("parallel", "parallel", "arbitrary"),
                vmem_limit_bytes=vmem_limit),
        )(p, w, b)

    if (Mp, Np) != (M, Cout):
        out = out[:M, :Cout]
    return out


def conv_bn_relu_3x3(x, w, bias, *, stride=1, padding=0,
                     out_dtype=jnp.float32):
    """3x3 conv (no conv bias, BN folded into w) + ReLU via im2col GEMM.

    x: NHWC, w: (3,3,Cin,Cout) with BN scale already folded in.
    """
    N, H, W, Cin = x.shape
    Cout = w.shape[-1]
    if padding:
        x = jnp.pad(x, ((0, 0), (padding, padding), (padding, padding), (0, 0)))
    Hp, Wp = x.shape[1], x.shape[2]
    Ho = (Hp - 3) // stride + 1
    Wo = (Wp - 3) // stride + 1
    # TODO(synk): tap extraction is still done by XLA (im2col materialized in
    # HBM, ~9x read amplification at real channel counts); moving it inside
    # the kernel needs element-offset / strided-window DMA and is left out to
    # keep the kernel robust.  Intermediates are bf16, halving that traffic.
    taps = [
        x[:, kh:kh + stride * (Ho - 1) + 1:stride,
             kw:kw + stride * (Wo - 1) + 1:stride, :]
        for kh in range(3) for kw in range(3)
    ]
    # (N, Ho, Wo, 9, Cin) -> (N*Ho*Wo, 9*Cin); matches w.reshape(9*Cin, Cout)
    patches = jnp.stack(taps, axis=3).reshape(N * Ho * Wo, 9 * Cin)
    out = gemm_bias_relu(patches, w.reshape(9 * Cin, Cout), bias,
                         out_dtype=out_dtype)
    return out.reshape(N, Ho, Wo, Cout)


def maxpool3x3s2(x):
    """MaxPool2d(kernel_size=3, stride=2, padding=0).  x: NHWC."""
    N, H, W, C = x.shape
    Ho = (H - 3) // 2 + 1
    Wo = (W - 3) // 2 + 1
    taps = jnp.stack(
        [x[:, kh:kh + 2 * (Ho - 1) + 1:2, kw:kw + 2 * (Wo - 1) + 1:2, :]
         for kh in range(3) for kw in range(3)],
        axis=0,
    )  # (9, N, Ho, Wo, C)
    M = N * Ho * Wo
    taps = taps.reshape(9, M, C)

    if C >= 128:
        # Channels already lane-dense: block over pixels, C stays on lanes.
        tm = 128 if M >= 128 else _round_up(max(M, 1), 8)
        Mp = _round_up(M, tm)
        if Mp != M:
            taps = jnp.pad(taps, ((0, 0), (0, Mp - M), (0, 0)))
        out = pl.pallas_call(
            _maxpool_kernel,
            out_shape=jax.ShapeDtypeStruct((Mp, C), x.dtype),
            grid=(Mp // tm,),
            in_specs=[pl.BlockSpec((9, tm, C), lambda i: (0, i, 0))],
            out_specs=pl.BlockSpec((tm, C), lambda i: (i, 0)),
            compiler_params=pltpu.CompilerParams(
                dimension_semantics=("parallel",)),
        )(taps)
        out = out[:M]
    else:
        # Tiny C (toy config): put the pixel dim on the 128-wide lane axis.
        tm = 128
        taps = taps.transpose(0, 2, 1)  # (9, C, M)
        Mp = _round_up(M, tm)
        if Mp != M:
            taps = jnp.pad(taps, ((0, 0), (0, 0), (0, Mp - M)))
        out = pl.pallas_call(
            _maxpool_kernel,
            out_shape=jax.ShapeDtypeStruct((C, Mp), x.dtype),
            grid=(Mp // tm,),
            in_specs=[pl.BlockSpec((9, C, tm), lambda i: (0, 0, i))],
            out_specs=pl.BlockSpec((C, tm), lambda i: (0, i)),
            compiler_params=pltpu.CompilerParams(
                dimension_semantics=("parallel",)),
        )(taps)
        out = out[:, :M].T
    return out.reshape(N, Ho, Wo, C)


# ----------------------------------------------------------------------------
# Parameters (deterministic synthetic init; BN folded to scale/bias, and the
# per-channel scale folded straight into the conv weights).
# ----------------------------------------------------------------------------
def init_basic_conv(key, cin, cout, k):
    kw_key, g_key, b_key, m_key, v_key = jax.random.split(key, 5)
    w = 0.05 * jax.random.normal(kw_key, (k, k, cin, cout), jnp.float32)  # HWIO
    gamma = 1.0 + 0.1 * jax.random.normal(g_key, (cout,), jnp.float32)
    beta = 0.1 * jax.random.normal(b_key, (cout,), jnp.float32)
    run_mean = 0.1 * jax.random.normal(m_key, (cout,), jnp.float32)
    run_var = 1.0 + jax.random.uniform(v_key, (cout,), jnp.float32)
    eps = 1e-5
    # TODO(synk): PyTorch default is train-mode BN (batch statistics); here BN
    # is applied in eval mode (running stats folded into a per-channel affine,
    # scale pre-multiplied into the conv weights).
    scale = gamma / jnp.sqrt(run_var + eps)
    bias = beta - run_mean * scale
    return w * scale, bias  # scale broadcasts over the Cout (last) axis


# ----------------------------------------------------------------------------
# InceptionD forward
# ----------------------------------------------------------------------------
def inception_d(x_nchw, params):
    x = jnp.transpose(x_nchw, (0, 2, 3, 1))  # NCHW -> NHWC
    N, H, W, Cin = x.shape

    # Fuse the two 1x1 branch stems into one lane-dense GEMM; emit bf16 since
    # the result only feeds the downstream 3x3 convs.
    w3, b3b = params["b3x3_1"]
    w5, b5b = params["b5x5_1"]
    c3 = w3.shape[-1]
    w11 = jnp.concatenate([w3.reshape(Cin, c3), w5.reshape(Cin, -1)], axis=1)
    b11 = jnp.concatenate([b3b, b5b])
    stem = gemm_bias_relu(x.reshape(N * H * W, Cin), w11, b11,
                          out_dtype=jnp.bfloat16)
    stem = stem.reshape(N, H, W, -1)
    b3 = stem[..., :c3]
    b5 = stem[..., c3:]

    b3 = conv_bn_relu_3x3(b3, *params["b3x3_2"], stride=2, padding=0,
                          out_dtype=jnp.float32)

    b5 = conv_bn_relu_3x3(b5, *params["b5x5_2"], stride=1, padding=1,
                          out_dtype=jnp.bfloat16)
    b5 = conv_bn_relu_3x3(b5, *params["b5x5_3"], stride=2, padding=0,
                          out_dtype=jnp.float32)

    bp = maxpool3x3s2(x)

    # TODO(synk): branches could write straight into the concatenated buffer
    # via channel-offset out index_maps + input_output_aliases; skipped since
    # the extra concat copy is small relative to the conv GEMMs.
    out = jnp.concatenate([b5, b3, bp], axis=-1)  # torch.cat([b5x5, b3x3, pool], 1)
    return jnp.transpose(out, (0, 3, 1, 2))       # back to NCHW


if __name__ == "__main__":
    key = jax.random.PRNGKey(0)
    kx, k1, k2, k3, k4, k5 = jax.random.split(key, 6)

    in_channels, out_channels, add_channels = 4, 64, 0
    x = jax.random.normal(kx, (2, in_channels, 16, 16), jnp.float32)

    params = {
        "b3x3_1": init_basic_conv(k1, in_channels, out_channels, 1),
        "b3x3_2": init_basic_conv(k2, out_channels, 302 + add_channels, 3),
        "b5x5_1": init_basic_conv(k3, in_channels, out_channels, 1),
        "b5x5_2": init_basic_conv(k4, out_channels, 178 + add_channels, 3),
        "b5x5_3": init_basic_conv(k5, 178 + add_channels, 178 + add_channels, 3),
    }

    y = jax.jit(functools.partial(inception_d, params=params))(x)
    y = jax.block_until_ready(y)

    # channels = 178 (5x5 branch) + 302 (3x3 branch) + in_channels (pool) = 484
    assert y.shape == (2, 178 + 302 + in_channels, 7, 7), y.shape
    assert y.dtype == jnp.float32
    print("KERNEL_OK")
</pallas_src>

<mosaic_0001>
module attributes {stable_mosaic.version = 11 : i64} {
  func.func @_gemm_bias_relu_kernel(%arg0: i32, %arg1: i32, %arg2: memref<128x16xbf16, #tpu.memory_space<vmem>>, %arg3: memref<16x128xbf16, #tpu.memory_space<vmem>>, %arg4: memref<1x128xf32, #tpu.memory_space<vmem>>, %arg5: memref<128x128xbf16, #tpu.memory_space<vmem>>) attributes {dimension_semantics = [#tpu.dimension_semantics<parallel>, #tpu.dimension_semantics<parallel>], iteration_bounds = array<i64: 4, 1>, scalar_prefetch = 0 : i64, scratch_operands = 0 : i64, tpu.core_type = #tpu.core_type<tc>, window_params = [{transform_indices = @transform_0, window_bounds = array<i64: 128, 16>}, {transform_indices = @transform_1, window_bounds = array<i64: 16, 128>}, {transform_indices = @transform_2, window_bounds = array<i64: 1, 128>}, {transform_indices = @transform_3, window_bounds = array<i64: 128, 128>}]} {
    %c0 = arith.constant 0 : index
    %c0_0 = arith.constant 0 : index
    %0 = vector.load %arg2[%c0, %c0_0] : memref<128x16xbf16, #tpu.memory_space<vmem>>, vector<128x16xbf16>
    %c0_1 = arith.constant 0 : index
    %c0_2 = arith.constant 0 : index
    %1 = vector.load %arg3[%c0_1, %c0_2] : memref<16x128xbf16, #tpu.memory_space<vmem>>, vector<16x128xbf16>
    %cst = arith.constant dense<0.000000e+00> : vector<128x128xf32>
    %2 = tpu.matmul %0, %1, %cst {dimension_numbers = #tpu.dot_dimension_numbers<[1], [0], [0], [1], [0, 0, 1, 1], [], []>} : vector<128x16xbf16>, vector<16x128xbf16>, vector<128x128xf32> -> vector<128x128xf32>
    %c0_3 = arith.constant 0 : index
    %c0_4 = arith.constant 0 : index
    %3 = vector.load %arg4[%c0_3, %c0_4] : memref<1x128xf32, #tpu.memory_space<vmem>>, vector<1x128xf32>
    %4 = vector.broadcast %3 : vector<1x128xf32> to vector<128x128xf32>
    %5 = arith.addf %2, %4 : vector<128x128xf32>
    %cst_5 = arith.constant 0.000000e+00 : f32
    %6 = vector.broadcast %cst_5 : f32 to vector<128x128xf32>
    %7 = arith.maximumf %5, %6 : vector<128x128xf32>
    %8 = arith.truncf %7 : vector<128x128xf32> to vector<128x128xbf16>
    %c0_6 = arith.constant 0 : index
    %c0_7 = arith.constant 0 : index
    %9 = vector.load %arg5[%c0_6, %c0_7] : memref<128x128xbf16, #tpu.memory_space<vmem>>, vector<128x128xbf16>
    tpu.vector_store %arg5[%c0_6, %c0_7], %8 {strides = array<i32>} : memref<128x128xbf16, #tpu.memory_space<vmem>>, vector<128x128xbf16>,
    return
  }
  func.func @transform_0(%arg0: i32, %arg1: i32) -> (i32, i32) {
    %c0_i32 = arith.constant 0 : i32
    %c0_i32_0 = arith.constant 0 : i32
    return %arg0, %c0_i32 : i32, i32
  }
  func.func @transform_1(%arg0: i32, %arg1: i32) -> (i32, i32) {
    %c0_i32 = arith.constant 0 : i32
    %c0_i32_0 = arith.constant 0 : i32
    return %c0_i32, %arg1 : i32, i32
  }
  func.func @transform_2(%arg0: i32, %arg1: i32) -> (i32, i32) {
    %c0_i32 = arith.constant 0 : i32
    %c0_i32_0 = arith.constant 0 : i32
    return %c0_i32, %arg1 : i32, i32
  }
  func.func @transform_3(%arg0: i32, %arg1: i32) -> (i32, i32) {
    %c0_i32 = arith.constant 0 : i32
    return %arg0, %arg1 : i32, i32
  }
}

module attributes {stable_mosaic.version = 11 : i64} {
  func.func @_gemm_bias_relu_kernel(%arg0: i32, %arg1: i32, %arg2: memref<128x640xbf16, #tpu.memory_space<vmem>>, %arg3: memref<640x256xbf16, #tpu.memory_space<vmem>>, %arg4: memref<1x256xf32, #tpu.memory_space<vmem>>, %arg5: memref<128x256xbf16, #tpu.memory_space<vmem>>) attributes {dimension_semantics = [#tpu.dimension_semantics<parallel>, #tpu.dimension_semantics<parallel>], iteration_bounds = array<i64: 4, 1>, scalar_prefetch = 0 : i64, scratch_operands = 0 : i64, tpu.core_type = #tpu.core_type<tc>, window_params = [{transform_indices = @transform_0, window_bounds = array<i64: 128, 640>}, {transform_indices = @transform_1, window_bounds = array<i64: 640, 256>}, {transform_indices = @transform_2, window_bounds = array<i64: 1, 256>}, {transform_indices = @transform_3, window_bounds = array<i64: 128, 256>}]} {
    %c0 = arith.constant 0 : index
    %c0_0 = arith.constant 0 : index
    %0 = vector.load %arg2[%c0, %c0_0] : memref<128x640xbf16, #tpu.memory_space<vmem>>, vector<128x640xbf16>
    %c0_1 = arith.constant 0 : index
    %c0_2 = arith.constant 0 : index
    %1 = vector.load %arg3[%c0_1, %c0_2] : memref<640x256xbf16, #tpu.memory_space<vmem>>, vector<640x256xbf16>
    %cst = arith.constant dense<0.000000e+00> : vector<128x256xf32>
    %2 = tpu.matmul %0, %1, %cst {dimension_numbers = #tpu.dot_dimension_numbers<[1], [0], [0], [1], [0, 0, 1, 1], [], []>} : vector<128x640xbf16>, vector<640x256xbf16>, vector<128x256xf32> -> vector<128x256xf32>
    %c0_3 = arith.constant 0 : index
    %c0_4 = arith.constant 0 : index
    %3 = vector.load %arg4[%c0_3, %c0_4] : memref<1x256xf32, #tpu.memory_space<vmem>>, vector<1x256xf32>
    %4 = vector.broadcast %3 : vector<1x256xf32> to vector<128x256xf32>
    %5 = arith.addf %2, %4 : vector<128x256xf32>
    %cst_5 = arith.constant 0.000000e+00 : f32
    %6 = vector.broadcast %cst_5 : f32 to vector<128x256xf32>
    %7 = arith.maximumf %5, %6 : vector<128x256xf32>
    %8 = arith.truncf %7 : vector<128x256xf32> to vector<128x256xbf16>
    %c0_6 = arith.constant 0 : index
    %c0_7 = arith.constant 0 : index
    %9 = vector.load %arg5[%c0_6, %c0_7] : memref<128x256xbf16, #tpu.memory_space<vmem>>, vector<128x256xbf16>
    tpu.vector_store %arg5[%c0_6, %c0_7], %8 {strides = array<i32>} : memref<128x256xbf16, #tpu.memory_space<vmem>>, vector<128x256xbf16>,
    return
  }
  func.func @transform_0(%arg0: i32, %arg1: i32) -> (i32, i32) {
    %c0_i32 = arith.constant 0 : i32
    %c0_i32_0 = arith.constant 0 : i32
    return %arg0, %c0_i32 : i32, i32
  }
  func.func @transform_1(%arg0: i32, %arg1: i32) -> (i32, i32) {
    %c0_i32 = arith.constant 0 : i32
    %c0_i32_0 = arith.constant 0 : i32
    return %c0_i32, %arg1 : i32, i32
  }
  func.func @transform_2(%arg0: i32, %arg1: i32) -> (i32, i32) {
    %c0_i32 = arith.constant 0 : i32
    %c0_i32_0 = arith.constant 0 : i32
    return %c0_i32, %arg1 : i32, i32
  }
  func.func @transform_3(%arg0: i32, %arg1: i32) -> (i32, i32) {
    %c0_i32 = arith.constant 0 : i32
    return %arg0, %arg1 : i32, i32
  }
}

module attributes {stable_mosaic.version = 11 : i64} {
  func.func @_gemm_bias_relu_kernel(%arg0: i32, %arg1: i32, %arg2: memref<112x1664xbf16, #tpu.memory_space<vmem>>, %arg3: memref<1664x256xbf16, #tpu.memory_space<vmem>>, %arg4: memref<1x256xf32, #tpu.memory_space<vmem>>, %arg5: memref<112x256xf32, #tpu.memory_space<vmem>>) attributes {dimension_semantics = [#tpu.dimension_semantics<parallel>, #tpu.dimension_semantics<parallel>], iteration_bounds = array<i64: 1, 1>, scalar_prefetch = 0 : i64, scratch_operands = 0 : i64, tpu.core_type = #tpu.core_type<tc>, window_params = [{transform_indices = @transform_0, window_bounds = array<i64: 112, 1664>}, {transform_indices = @transform_1, window_bounds = array<i64: 1664, 256>}, {transform_indices = @transform_2, window_bounds = array<i64: 1, 256>}, {transform_indices = @transform_3, window_bounds = array<i64: 112, 256>}]} {
    %c0 = arith.constant 0 : index
    %c0_0 = arith.constant 0 : index
    %0 = vector.load %arg2[%c0, %c0_0] : memref<112x1664xbf16, #tpu.memory_space<vmem>>, vector<112x1664xbf16>
    %c0_1 = arith.constant 0 : index
    %c0_2 = arith.constant 0 : index
    %1 = vector.load %arg3[%c0_1, %c0_2] : memref<1664x256xbf16, #tpu.memory_space<vmem>>, vector<1664x256xbf16>
    %cst = arith.constant dense<0.000000e+00> : vector<112x256xf32>
    %2 = tpu.matmul %0, %1, %cst {dimension_numbers = #tpu.dot_dimension_numbers<[1], [0], [0], [1], [0, 0, 1, 1], [], []>} : vector<112x1664xbf16>, vector<1664x256xbf16>, vector<112x256xf32> -> vector<112x256xf32>
    %c0_3 = arith.constant 0 : index
    %c0_4 = arith.constant 0 : index
    %3 = vector.load %arg4[%c0_3, %c0_4] : memref<1x256xf32, #tpu.memory_space<vmem>>, vector<1x256xf32>
    %4 = vector.broadcast %3 : vector<1x256xf32> to vector<112x256xf32>
    %5 = arith.addf %2, %4 : vector<112x256xf32>
    %cst_5 = arith.constant 0.000000e+00 : f32
    %6 = vector.broadcast %cst_5 : f32 to vector<112x256xf32>
    %7 = arith.maximumf %5, %6 : vector<112x256xf32>
    %c0_6 = arith.constant 0 : index
    %c0_7 = arith.constant 0 : index
    %8 = vector.load %arg5[%c0_6, %c0_7] : memref<112x256xf32, #tpu.memory_space<vmem>>, vector<112x256xf32>
    tpu.vector_store %arg5[%c0_6, %c0_7], %7 {strides = array<i32>} : memref<112x256xf32, #tpu.memory_space<vmem>>, vector<112x256xf32>,
    return
  }
  func.func @transform_0(%arg0: i32, %arg1: i32) -> (i32, i32) {
    %c0_i32 = arith.constant 0 : i32
    %c0_i32_0 = arith.constant 0 : i32
    return %arg0, %c0_i32 : i32, i32
  }
  func.func @transform_1(%arg0: i32, %arg1: i32) -> (i32, i32) {
    %c0_i32 = arith.constant 0 : i32
    %c0_i32_0 = arith.constant 0 : i32
    return %c0_i32, %arg1 : i32, i32
  }
  func.func @transform_2(%arg0: i32, %arg1: i32) -> (i32, i32) {
    %c0_i32 = arith.constant 0 : i32
    %c0_i32_0 = arith.constant 0 : i32
    return %c0_i32, %arg1 : i32, i32
  }
  func.func @transform_3(%arg0: i32, %arg1: i32) -> (i32, i32) {
    %c0_i32 = arith.constant 0 : i32
    return %arg0, %arg1 : i32, i32
  }
}

module attributes {stable_mosaic.version = 11 : i64} {
  func.func @_gemm_bias_relu_kernel(%arg0: i32, %arg1: i32, %arg2: memref<112x640xbf16, #tpu.memory_space<vmem>>, %arg3: memref<640x384xbf16, #tpu.memory_space<vmem>>, %arg4: memref<1x384xf32, #tpu.memory_space<vmem>>, %arg5: memref<112x384xf32, #tpu.memory_space<vmem>>) attributes {dimension_semantics = [#tpu.dimension_semantics<parallel>, #tpu.dimension_semantics<parallel>], iteration_bounds = array<i64: 1, 1>, scalar_prefetch = 0 : i64, scratch_operands = 0 : i64, tpu.core_type = #tpu.core_type<tc>, window_params = [{transform_indices = @transform_0, window_bounds = array<i64: 112, 640>}, {transform_indices = @transform_1, window_bounds = array<i64: 640, 384>}, {transform_indices = @transform_2, window_bounds = array<i64: 1, 384>}, {transform_indices = @transform_3, window_bounds = array<i64: 112, 384>}]} {
    %c0 = arith.constant 0 : index
    %c0_0 = arith.constant 0 : index
    %0 = vector.load %arg2[%c0, %c0_0] : memref<112x640xbf16, #tpu.memory_space<vmem>>, vector<112x640xbf16>
    %c0_1 = arith.constant 0 : index
    %c0_2 = arith.constant 0 : index
    %1 = vector.load %arg3[%c0_1, %c0_2] : memref<640x384xbf16, #tpu.memory_space<vmem>>, vector<640x384xbf16>
    %cst = arith.constant dense<0.000000e+00> : vector<112x384xf32>
    %2 = tpu.matmul %0, %1, %cst {dimension_numbers = #tpu.dot_dimension_numbers<[1], [0], [0], [1], [0, 0, 1, 1], [], []>} : vector<112x640xbf16>, vector<640x384xbf16>, vector<112x384xf32> -> vector<112x384xf32>
    %c0_3 = arith.constant 0 : index
    %c0_4 = arith.constant 0 : index
    %3 = vector.load %arg4[%c0_3, %c0_4] : memref<1x384xf32, #tpu.memory_space<vmem>>, vector<1x384xf32>
    %4 = vector.broadcast %3 : vector<1x384xf32> to vector<112x384xf32>
    %5 = arith.addf %2, %4 : vector<112x384xf32>
    %cst_5 = arith.constant 0.000000e+00 : f32
    %6 = vector.broadcast %cst_5 : f32 to vector<112x384xf32>
    %7 = arith.maximumf %5, %6 : vector<112x384xf32>
    %c0_6 = arith.constant 0 : index
    %c0_7 = arith.constant 0 : index
    %8 = vector.load %arg5[%c0_6, %c0_7] : memref<112x384xf32, #tpu.memory_space<vmem>>, vector<112x384xf32>
    tpu.vector_store %arg5[%c0_6, %c0_7], %7 {strides = array<i32>} : memref<112x384xf32, #tpu.memory_space<vmem>>, vector<112x384xf32>,
    return
  }
  func.func @transform_0(%arg0: i32, %arg1: i32) -> (i32, i32) {
    %c0_i32 = arith.constant 0 : i32
    %c0_i32_0 = arith.constant 0 : i32
    return %arg0, %c0_i32 : i32, i32
  }
  func.func @transform_1(%arg0: i32, %arg1: i32) -> (i32, i32) {
    %c0_i32 = arith.constant 0 : i32
    %c0_i32_0 = arith.constant 0 : i32
    return %c0_i32, %arg1 : i32, i32
  }
  func.func @transform_2(%arg0: i32, %arg1: i32) -> (i32, i32) {
    %c0_i32 = arith.constant 0 : i32
    %c0_i32_0 = arith.constant 0 : i32
    return %c0_i32, %arg1 : i32, i32
  }
  func.func @transform_3(%arg0: i32, %arg1: i32) -> (i32, i32) {
    %c0_i32 = arith.constant 0 : i32
    return %arg0, %arg1 : i32, i32
  }
}

module attributes {stable_mosaic.version = 11 : i64} {
  func.func @_maxpool_kernel(%arg0: i32, %arg1: memref<9x4x128xf32, #tpu.memory_space<vmem>>, %arg2: memref<4x128xf32, #tpu.memory_space<vmem>>) attributes {dimension_semantics = [#tpu.dimension_semantics<parallel>], iteration_bounds = array<i64: 1>, scalar_prefetch = 0 : i64, scratch_operands = 0 : i64, tpu.core_type = #tpu.core_type<tc>, window_params = [{transform_indices = @transform_0, window_bounds = array<i64: 9, 4, 128>}, {transform_indices = @transform_1, window_bounds = array<i64: 4, 128>}]} {
    %c0 = arith.constant 0 : index
    %c0_0 = arith.constant 0 : index
    %c0_1 = arith.constant 0 : index
    %0 = vector.load %arg1[%c0, %c0_0, %c0_1] : memref<9x4x128xf32, #tpu.memory_space<vmem>>, vector<9x4x128xf32>
    %cst = arith.constant dense<0xFF800000> : vector<4x128xf32>
    %1 = vector.multi_reduction <maximumf>, %0, %cst [0] : vector<9x4x128xf32> to vector<4x128xf32>
    %c0_2 = arith.constant 0 : index
    %c0_3 = arith.constant 0 : index
    %2 = vector.load %arg2[%c0_2, %c0_3] : memref<4x128xf32, #tpu.memory_space<vmem>>, vector<4x128xf32>
    tpu.vector_store %arg2[%c0_2, %c0_3], %1 {strides = array<i32>} : memref<4x128xf32, #tpu.memory_space<vmem>>, vector<4x128xf32>,
    return
  }
  func.func @transform_0(%arg0: i32) -> (i32, i32, i32) {
    %c0_i32 = arith.constant 0 : i32
    %c0_i32_0 = arith.constant 0 : i32
    %c0_i32_1 = arith.constant 0 : i32
    return %c0_i32, %c0_i32_0, %arg0 : i32, i32, i32
  }
  func.func @transform_1(%arg0: i32) -> (i32, i32) {
    %c0_i32 = arith.constant 0 : i32
    %c0_i32_0 = arith.constant 0 : i32
    return %c0_i32, %arg0 : i32, i32
  }
}

</mosaic_0001>

<llo_original>
// kernel: inception_d.5
$region0: #{inception_d.5}
  #allocation0 [shape = 'u32[]', space=smem, size = 0x4, offset = 0x4, fixed_abs, tag = 'smem constant byte address 0x4 - core index']
  #allocation1 [shape = 'u32[144,128]{1,0:T(1,128)}', space=vmem, size = 0x12000, scoped, tag = 'internal scratch']
  %s0 = inlined_call_operand.vmem [shape: bf16[512,16], index: 0, kind: input, shape index: {}]
  %s1 = inlined_call_operand.hbm [shape: bf16[16,128], index: 1, kind: input, shape index: {}]
  %s2 = inlined_call_operand.hbm [shape: f32[1,128], index: 2, kind: input, shape index: {}]
  %s3 = inlined_call_operand.vmem [shape: bf16[512,128], index: 3, kind: output, shape index: {}]
  %s4 = sld [smem:[#allocation0]]
  $region53: #{inception_d.5} parent=0
    _
  %s6 = ssub.s32 1, %s4
  %s7 = scalar_select 0, %s6, %s4
  $region1: #{inception_d.5} parent=0
    #allocation2 [shape = 'u8[4096]{0}', space=vmem, size = 0x1000, scoped, tag = 'input window, operand 1, single buffered']
    #allocation3 [shape = 's32[2]{0}', space=sflag, size = 0x8, scoped, tag = 'scoped memory for inception_d.5']
    #allocation4 [shape = 'u8[512]{0}', space=vmem, size = 0x400, scoped, tag = 'input window, operand 2, single buffered']
    #allocation5 [shape = 's32[1]{0}', space=sflag, size = 0x4, scoped, tag = 'scoped memory for inception_d.5']
    %8 = vsyncpa [#allocation3], 0
    %9 = vsyncpa [#allocation5], 0
    loop: start=0, step=1, limit=6
    $region2: #{inception_d.5} parent=1 // loop_pre_header
      _
    $region3: #{inception_d.5} parent=1 // loop_header
      %s11 = sphi 0, %s15
      %p12 = scmp.ge.s32.totalorder %s11, 6
      %s18 = sphi 0, %s30
      %s19 = sphi 0, %s26
      %s20 = sphi 0, %s18
      %s21 = sphi 0, %s19
      %s22 = sphi 0, %s20
      %s23 = sphi 0, %s21
      %s33 = sphi 0, %s35
      %s36 = sphi 0, %s33
      %s37 = sphi 0, %s36
      %s53 = sphi 0, %s37
      %s59 = sphi 0, %s61
      %s62 = sphi 0, %s59
      %s63 = sphi 0, %s62
      %s79 = sphi 0, %s63
      %s85 = sphi 0, %s87
      %s88 = sphi 0, %s85
      %s89 = sphi 0, %s88
      %s105 = sphi 0, %s89
      %s113 = sphi 0, %s115
      %s116 = sphi 0, %s113
      %s117 = sphi 0, %s116
      %s133 = sphi 0, %s117
    $region4: #{inception_d.5} parent=1 // loop_header_branch
      %14 = sbr.rel (%p12) target = $region8
    $region5: #{inception_d.5} parent=1 // loop_body
      %s16 = ssub.s32 %s11, 1
      %s17 = ssub.s32 %s11, 2
      %s24 = sadd.s32 1, %s19
      %p25 = scmp.ge.s32.totalorder %s24, 1
      %s26 = scalar_select %p25, 0, %s24
      %s27 = sadd.s32 1, %s18
      %s28 = scalar_select %p25, %s27, %s18
      %p29 = scmp.ge.s32.totalorder %s28, 4
      %s30 = scalar_select %p29, 0, %s28
      %s31 = ssub.s32 %s18, %s30
      %p32 = scmp.eq.s32.totalorder %s31, 0
      %s34 = sadd.s32 %s33, 1
      %s35 = scalar_select %p32, %s33, %s34
      %p38 = pneg %p32
      %p39 = scmp.eq.s32.totalorder %s11, 3
      %p40 = por %p38, %p39
      %p41 = scmp.ne.s32.totalorder %s33, %s36
      %p42 = scmp.eq.s32.totalorder %s11, 0
      %p43 = por %p41, %p42
      %p44 = scmp.ne.s32.totalorder %s33, %s36
      %p45 = scmp.eq.s32.totalorder %s16, 3
      %p46 = por %p44, %p45
      %p47 = scmp.ne.s32.totalorder %s36, %s37
      %p48 = scmp.eq.s32.totalorder %s16, 0
      %p49 = por %p47, %p48
      %p50 = scmp.ne.s32.totalorder %s36, %s37
      %p51 = scmp.eq.s32.totalorder %s17, 3
      %p52 = por %p50, %p51
      %p54 = scmp.ne.s32.totalorder %s37, %s53
      %p55 = scmp.eq.s32.totalorder %s17, 0
      %p56 = por %p54, %p55
      %s57 = ssub.s32 %s19, %s26
      %p58 = scmp.eq.s32.totalorder %s57, 0
      %s60 = sadd.s32 %s59, 1
      %s61 = scalar_select %p58, %s59, %s60
      %p64 = pneg %p58
      %p65 = scmp.eq.s32.totalorder %s11, 3
      %p66 = por %p64, %p65
      %p67 = scmp.ne.s32.totalorder %s59, %s62
      %p68 = scmp.eq.s32.totalorder %s11, 0
      %p69 = por %p67, %p68
      %p70 = scmp.ne.s32.totalorder %s59, %s62
      %p71 = scmp.eq.s32.totalorder %s16, 3
      %p72 = por %p70, %p71
      %p73 = scmp.ne.s32.totalorder %s62, %s63
      %p74 = scmp.eq.s32.totalorder %s16, 0
      %p75 = por %p73, %p74
      %p76 = scmp.ne.s32.totalorder %s62, %s63
      %p77 = scmp.eq.s32.totalorder %s17, 3
      %p78 = por %p76, %p77
      %p80 = scmp.ne.s32.totalorder %s63, %s79
      %p81 = scmp.eq.s32.totalorder %s17, 0
      %p82 = por %p80, %p81
      %s83 = ssub.s32 %s19, %s26
      %p84 = scmp.eq.s32.totalorder %s83, 0
      %s86 = sadd.s32 %s85, 1
      %s87 = scalar_select %p84, %s85, %s86
      %p90 = pneg %p84
      %p91 = scmp.eq.s32.totalorder %s11, 3
      %p92 = por %p90, %p91
      %p93 = scmp.ne.s32.totalorder %s85, %s88
      %p94 = scmp.eq.s32.totalorder %s11, 0
      %p95 = por %p93, %p94
      %p96 = scmp.ne.s32.totalorder %s85, %s88
      %p97 = scmp.eq.s32.totalorder %s16, 3
      %p98 = por %p96, %p97
      %p99 = scmp.ne.s32.totalorder %s88, %s89
      %p100 = scmp.eq.s32.totalorder %s16, 0
      %p101 = por %p99, %p100
      %p102 = scmp.ne.s32.totalorder %s88, %s89
      %p103 = scmp.eq.s32.totalorder %s17, 3
      %p104 = por %p102, %p103
      %p106 = scmp.ne.s32.totalorder %s89, %s105
      %p107 = scmp.eq.s32.totalorder %s17, 0
      %p108 = por %p106, %p107
      %s109 = ssub.s32 %s18, %s30
      %s110 = ssub.s32 %s19, %s26
      %s111 = sor.u32 %s109, %s110
      %p112 = scmp.eq.s32.totalorder %s111, 0
      %s114 = sadd.s32 %s113, 1
      %s115 = scalar_select %p112, %s113, %s114
      %p118 = pneg %p112
      %p119 = scmp.eq.s32.totalorder %s11, 3
      %p120 = por %p118, %p119
      %p121 = scmp.ne.s32.totalorder %s113, %s116
      %p122 = scmp.eq.s32.totalorder %s11, 0
      %p123 = por %p121, %p122
      %p124 = scmp.ne.s32.totalorder %s113, %s116
      %p125 = scmp.eq.s32.totalorder %s16, 3
      %p126 = por %p124, %p125
      %p127 = scmp.ne.s32.totalorder %s116, %s117
      %p128 = scmp.eq.s32.totalorder %s16, 0
      %p129 = por %p127, %p128
      %p130 = scmp.ne.s32.totalorder %s116, %s117
      %p131 = scmp.eq.s32.totalorder %s17, 3
      %p132 = por %p130, %p131
      %p134 = scmp.ne.s32.totalorder %s117, %s133
      %p135 = scmp.eq.s32.totalorder %s17, 0
      %p136 = por %p134, %p135
      %p137 = scmp.le.s32.totalorder 1, %s11
      %p138 = scmp.lt.s32.totalorder %s11, 5
      %p139 = pnand %p137, %p138
      %p140 = pneg %p139
      // Predicated region
      $region9: #{inception_d.5} parent=5 // pred_check
        _
      $region10: #{inception_d.5} parent=5 // pred_check_branch
        %142 = sbr.rel (%p139) target = $region12
      $region11: #{inception_d.5} parent=5 // pred_region
        %s143 = ssub.s32 %s11, 1
        // Predicated region
        $region13: #{inception_d.5} parent=11 // pred_check
          %p144 = pneg %p75
        $region14: #{inception_d.5} parent=11 // pred_check_branch
          %146 = sbr.rel (%p144) target = $region16
        $region15: #{inception_d.5} parent=11 // pred_region
          %s148 = ssub.s32 128, 128
          %149 = vsyncadd [#allocation3], %s148
          %s150 = smul.addr %s21, 64
          %s151 = scalar_lea.hbm %s1, %s150
          %s152 = sshll.u32 [#allocation2], 4
          %s153 = int_to_ptr.vmem [resolvable:$true] %s152
          %158 = dma.hbm_to_vmem [thread:$0]  %s151, 128, %s153, [#allocation3], 64, 64, 4
        $region16: #{inception_d.5} parent=11 // pred_fallthru
          _
        // Predicated region
        $region17: #{inception_d.5} parent=11 // pred_check
          %p159 = pneg %p101
        $region18: #{inception_d.5} parent=11 // pred_check_branch
          %161 = sbr.rel (%p159) target = $region20
        $region19: #{inception_d.5} parent=11 // pred_region
          %s163 = ssub.s32 16, 16
          %164 = vsyncadd [#allocation5], %s163
          %s165 = smul.addr %s21, 16
          %s166 = scalar_lea.hbm %s2, %s165
          %s168 = sshll.u32 [#allocation4], 4
          %s169 = int_to_ptr.vmem [resolvable:$true] %s168
          %171 = dma.hbm_to_vmem [thread:$0]  %s166, 16, %s169, [#allocation5]
        $region20: #{inception_d.5} parent=11 // pred_fallthru
          _
      $region12: #{inception_d.5} parent=5 // pred_fallthru
        _
      %p172 = scmp.lt.s32.totalorder %s11, 4
      // Predicated region
      $region21: #{inception_d.5} parent=5 // pred_check
        %p173 = pneg %p172
      $region22: #{inception_d.5} parent=5 // pred_check_branch
        %175 = sbr.rel (%p173) target = $region24
      $region23: #{inception_d.5} parent=5 // pred_region
        // Predicated region
        $region25: #{inception_d.5} parent=23 // pred_check
          %p176 = pneg %p43
        $region26: #{inception_d.5} parent=23 // pred_check_branch
          %178 = sbr.rel (%p176) target = $region28
        $region27: #{inception_d.5} parent=23 // pred_region
          %s179 = smul.u32 16, %s18
          %p180 = scmp.lt.s32.totalorder %s179, 63
          %s181 = scalar_select %p180, %s179, 63
          %s182 = smul.addr %s181, 4
          %s183 = scalar_lea.vmem %s0, %s182
          %s184 = smul.u32 16, %s18
        $region28: #{inception_d.5} parent=23 // pred_fallthru
          _
      $region24: #{inception_d.5} parent=5 // pred_fallthru
        _
      %p185 = scmp.le.s32.totalorder 1, %s11
      %p186 = scmp.lt.s32.totalorder %s11, 5
      %p187 = pnand %p185, %p186
      %p188 = pneg %p187
      // Predicated region
      $region29: #{inception_d.5} parent=5 // pred_check
        _
      $region30: #{inception_d.5} parent=5 // pred_check_branch
        %190 = sbr.rel (%p187) target = $region32
      $region31: #{inception_d.5} parent=5 // pred_region
        %s191 = ssub.s32 %s11, 1
        // Predicated region
        $region33: #{inception_d.5} parent=31 // pred_check
          %p192 = pneg %p75
        $region34: #{inception_d.5} parent=31 // pred_check_branch
          %194 = sbr.rel (%p192) target = $region36
        $region35: #{inception_d.5} parent=31 // pred_region
          %195 = dma.done [#allocation3], 128
        $region36: #{inception_d.5} parent=31 // pred_fallthru
          _
        // Predicated region
        $region37: #{inception_d.5} parent=31 // pred_check
          %p196 = pneg %p101
        $region38: #{inception_d.5} parent=31 // pred_check_branch
          %198 = sbr.rel (%p196) target = $region40
        $region39: #{inception_d.5} parent=31 // pred_region
          %199 = dma.done [#allocation5], 16
        $region40: #{inception_d.5} parent=31 // pred_fallthru
          _
        %s200 = smul.u32 16, %s20
        %p201 = scmp.lt.s32.totalorder %s200, 63
        %s202 = scalar_select %p201, %s200, 63
        %s203 = smul.addr %s202, 4
        %s204 = scalar_lea.vmem %s0, %s203
        %p205 = pneg %p49
        %p206 = pneg %p46
        %p207 = pneg %p75
        %p208 = pneg %p72
        %p209 = pneg %p101
        %p210 = pneg %p98
        %p211 = pneg %p129
        %p212 = pneg %p126
        %s213 = smul.u32 16, %s20
        %p214 = scmp.lt.s32.totalorder %s213, 63
        %s215 = scalar_select %p214, %s213, 63
        %p216 = scmp.lt.s32.totalorder %s21, 0
        %s217 = scalar_select %p216, %s21, 0
        %s218 = sadd.s32 %s217, %s215
        %s219 = smul.addr %s218, 4
        %s220 = scalar_lea.vmem %s3, %s219
        %s221 = smul.u32 16, %s20
        %p222 = scmp.lt.s32.totalorder %s221, 63
        %s223 = scalar_select %p222, %s221, 63
        %s224 = smul.addr %s223, 4
        %s225 = scalar_lea.vmem %s0, %s224
        %s226 = smul.u32 16, %s20
        %s227 = smul.u32 16, %s20
        %p228 = scmp.lt.s32.totalorder %s227, 63
        %s229 = scalar_select %p228, %s227, 63
        %p230 = scmp.lt.s32.totalorder %s21, 0
        %s231 = scalar_select %p230, %s21, 0
        %s232 = sadd.s32 %s231, %s229
        %s233 = smul.addr %s232, 4
        %s234 = scalar_lea.vmem %s3, %s233
        %s235 = smul.u32 16, %s20
        %v237 = vld [vmem:[%s225] sm:$0xf]
        %v238 = vld [vmem:[%s225 + $0x4] sm:$0xf]
        %v239 = vld [vmem:[%s225 + $0x8] sm:$0xf]
        %v240 = vld [vmem:[%s225 + $0xc] sm:$0xf]
        %v241 = vld [vmem:[%s225 + $0x10] sm:$0xf]
        %v242 = vld [vmem:[%s225 + $0x14] sm:$0xf]
        %v243 = vld [vmem:[%s225 + $0x18] sm:$0xf]
        %v244 = vld [vmem:[%s225 + $0x1c] sm:$0xf]
        %v245 = vld [vmem:[%s225 + $0x20] sm:$0xf]
        %v246 = vld [vmem:[%s225 + $0x24] sm:$0xf]
        %v247 = vld [vmem:[%s225 + $0x28] sm:$0xf]
        %v248 = vld [vmem:[%s225 + $0x2c] sm:$0xf]
        %v249 = vld [vmem:[%s225 + $0x30] sm:$0xf]
        %v250 = vld [vmem:[%s225 + $0x34] sm:$0xf]
        %v251 = vld [vmem:[%s225 + $0x38] sm:$0xf]
        %v252 = vld [vmem:[%s225 + $0x3c] sm:$0xf]
        %v253 = vld [vmem:[#allocation2] sm:$0xf]
        %v254 = vld [vmem:[#allocation2 + $0x4] sm:$0xf]
        %v255 = vld [vmem:[#allocation4] sm:$0x1]
        %v257 = vlaneseq
        %v258 = vshrl.u32 %v257, 7
        %v259 = vsub.s32 0, %v258
        %v260 = vrot.slane %v255, %v259
        %v278 = vunpack.c.l.b16 %v237
        %v279 = vunpack.c.l.b16 %v238
        %v280 = vunpack.c.l.b16 %v239
        %v281 = vunpack.c.l.b16 %v240
        %v282 = vunpack.c.l.b16 %v241
        %v283 = vunpack.c.l.b16 %v242
        %v284 = vunpack.c.l.b16 %v243
        %v285 = vunpack.c.l.b16 %v244
        %v286 = vunpack.c.l.b16 %v245
        %v287 = vunpack.c.l.b16 %v246
        %v288 = vunpack.c.l.b16 %v247
        %v289 = vunpack.c.l.b16 %v248
        %v290 = vunpack.c.l.b16 %v249
        %v291 = vunpack.c.l.b16 %v250
        %v292 = vunpack.c.l.b16 %v251
        %v293 = vunpack.c.l.b16 %v252
        %v294 = vpack.c.b16 %v279, %v278
        %v295 = vpack.c.b16 %v281, %v280
        %v296 = vpack.c.b16 %v283, %v282
        %v297 = vpack.c.b16 %v285, %v284
        %v298 = vpack.c.b16 %v287, %v286
        %v299 = vpack.c.b16 %v289, %v288
        %v300 = vpack.c.b16 %v291, %v290
        %v301 = vpack.c.b16 %v293, %v292
        %v304 = vunpack.c.l.b16 %v253
        %v305 = vunpack.c.l.b16 %v254
        %v306 = vpack.c.b16 %v305, %v304
        %vm308 = vcmask 130048
        %v310 = vsel %vm308, %v294, 0
        %v313 = vsel %vm308, %v295, 0
        %v316 = vsel %vm308, %v296, 0
        %v319 = vsel %vm308, %v297, 0
        %v322 = vsel %vm308, %v298, 0
        %v325 = vsel %vm308, %v299, 0
        %v328 = vsel %vm308, %v300, 0
        %v331 = vsel %vm308, %v301, 0
        %333 = vmatprep.subr.bf16.mxu0 0
        %334 = vmatpush1.bf16.msra.mxu0 %v306
        %335 = vmatprep.subr.bf16.mxu0 0
        %336 = vmatpush1.bf16.msra.mxu0 0
        %337 = vmatprep.subr.bf16.mxu0 0
        %338 = vmatpush1.bf16.msra.mxu0 0
        %339 = vmatprep.subr.bf16.mxu0 0
        %340 = vmatpush1.bf16.msra.mxu0 0
        %341 = vmatprep.subr.bf16.mxu0 0
        %342 = vmatpush1.bf16.msra.mxu0 0
        %343 = vmatprep.subr.bf16.mxu0 0
        %344 = vmatpush1.bf16.msra.mxu0 0
        %345 = vmatprep.subr.bf16.mxu0 0
        %346 = vmatpush1.bf16.msra.mxu0 0
        %347 = vmatprep.subr.bf16.mxu0 0
        %348 = vmatpush1.bf16.msra.mxu0 0
        %349 = vmatprep.subr.bf16.mxu0 0
        %350 = vmatpush1.bf16.msra.mxu0 0
        %351 = vmatprep.subr.bf16.mxu0 0
        %352 = vmatpush1.bf16.msra.mxu0 0
        %353 = vmatprep.subr.bf16.mxu0 0
        %354 = vmatpush1.bf16.msra.mxu0 0
        %355 = vmatprep.subr.bf16.mxu0 0
        %356 = vmatpush1.bf16.msra.mxu0 0
        %357 = vmatprep.subr.bf16.mxu0 0
        %358 = vmatpush1.bf16.msra.mxu0 0
        %359 = vmatprep.subr.bf16.mxu0 0
        %360 = vmatpush1.bf16.msra.mxu0 0
        %361 = vmatprep.subr.bf16.mxu0 0
        %362 = vmatpush1.bf16.msra.mxu0 0
        %363 = vmatprep.subr.bf16.mxu0 0
        %364 = vmatpush1.bf16.msra.mxu0 0
        %365 = vmatprep.mubr.bf16.mxu0 0
        %366 = vmatmul.mubr.bf16.gmra.mrb[0].mxu0 %v310
        %v367 = vpop.f32.mrb[0].mxu0
        %v368 = vadd.f32 %v260, %v367
        %v369 = vpop.f32.mrb[0].mxu0
        %v370 = vpop.f32.mrb[0].mxu0
        %v371 = vadd.f32 %v260, %v370
        %v372 = vpop.f32.mrb[0].mxu0
        %373 = vmatprep.mubr.bf16.mxu0 0
        %374 = vmatmul.mubr.bf16.gmra.mrb[0].mxu0 %v313
        %v375 = vpop.f32.mrb[0].mxu0
        %v376 = vadd.f32 %v260, %v375
        %v377 = vpop.f32.mrb[0].mxu0
        %v378 = vpop.f32.mrb[0].mxu0
        %v379 = vadd.f32 %v260, %v378
        %v380 = vpop.f32.mrb[0].mxu0
        %381 = vmatprep.mubr.bf16.mxu0 0
        %382 = vmatmul.mubr.bf16.gmra.mrb[0].mxu0 %v316
        %v383 = vpop.f32.mrb[0].mxu0
        %v384 = vadd.f32 %v260, %v383
        %v385 = vpop.f32.mrb[0].mxu0
        %v386 = vpop.f32.mrb[0].mxu0
        %v387 = vadd.f32 %v260, %v386
        %v388 = vpop.f32.mrb[0].mxu0
        %389 = vmatprep.mubr.bf16.mxu0 0
        %390 = vmatmul.mubr.bf16.gmra.mrb[0].mxu0 %v319
        %v391 = vpop.f32.mrb[0].mxu0
        %v392 = vadd.f32 %v260, %v391
        %v393 = vpop.f32.mrb[0].mxu0
        %v394 = vpop.f32.mrb[0].mxu0
        %v395 = vadd.f32 %v260, %v394
        %v396 = vpop.f32.mrb[0].mxu0
        %397 = vmatprep.mubr.bf16.mxu0 0
        %398 = vmatmul.mubr.bf16.gmra.mrb[0].mxu0 %v322
        %v399 = vpop.f32.mrb[0].mxu0
        %v400 = vadd.f32 %v260, %v399
        %v401 = vpop.f32.mrb[0].mxu0
        %v402 = vpop.f32.mrb[0].mxu0
        %v403 = vadd.f32 %v260, %v402
        %v404 = vpop.f32.mrb[0].mxu0
        %405 = vmatprep.mubr.bf16.mxu0 0
        %406 = vmatmul.mubr.bf16.gmra.mrb[0].mxu0 %v325
        %v407 = vpop.f32.mrb[0].mxu0
        %v408 = vadd.f32 %v260, %v407
        %v409 = vpop.f32.mrb[0].mxu0
        %v410 = vpop.f32.mrb[0].mxu0
        %v411 = vadd.f32 %v260, %v410
        %v412 = vpop.f32.mrb[0].mxu0
        %413 = vmatprep.mubr.bf16.mxu0 0
        %414 = vmatmul.mubr.bf16.gmra.mrb[0].mxu0 %v328
        %v415 = vpop.f32.mrb[0].mxu0
        %v416 = vadd.f32 %v260, %v415
        %v417 = vpop.f32.mrb[0].mxu0
        %v418 = vpop.f32.mrb[0].mxu0
        %v419 = vadd.f32 %v260, %v418
        %v420 = vpop.f32.mrb[0].mxu0
        %421 = vmatprep.mubr.bf16.mxu0 0
        %422 = vmatmul.mubr.bf16.gmra.mrb[0].mxu0 %v331
        %v423 = vpop.f32.mrb[0].mxu0
        %v424 = vadd.f32 %v260, %v423
        %v425 = vpop.f32.mrb[0].mxu0
        %v426 = vpop.f32.mrb[0].mxu0
        %v427 = vadd.f32 %v260, %v426
        %v428 = vpop.f32.mrb[0].mxu0
        %429 = vdwg.mxu0
        %v430 = vmax.f32 %v368, 0.0
        %v431 = vmax.f32 %v371, 0.0
        %v432 = vmax.f32 %v376, 0.0
        %v433 = vmax.f32 %v379, 0.0
        %v434 = vmax.f32 %v384, 0.0
        %v435 = vmax.f32 %v387, 0.0
        %v436 = vmax.f32 %v392, 0.0
        %v437 = vmax.f32 %v395, 0.0
        %v438 = vmax.f32 %v400, 0.0
        %v439 = vmax.f32 %v403, 0.0
        %v440 = vmax.f32 %v408, 0.0
        %v441 = vmax.f32 %v411, 0.0
        %v442 = vmax.f32 %v416, 0.0
        %v443 = vmax.f32 %v419, 0.0
        %v444 = vmax.f32 %v424, 0.0
        %v445 = vmax.f32 %v427, 0.0
        %v446 = vpack.c.bf16 %v431, %v430
        %v447 = vpack.c.bf16 %v433, %v432
        %v448 = vpack.c.bf16 %v435, %v434
        %v449 = vpack.c.bf16 %v437, %v436
        %v450 = vpack.c.bf16 %v439, %v438
        %v451 = vpack.c.bf16 %v441, %v440
        %v452 = vpack.c.bf16 %v443, %v442
        %v453 = vpack.c.bf16 %v445, %v444
        %v462 = vunpack.c.l.b16 %v446
        %v463 = vunpack.c.h.b16 %v446
        %v464 = vunpack.c.l.b16 %v447
        %v465 = vunpack.c.h.b16 %v447
        %v466 = vunpack.c.l.b16 %v448
        %v467 = vunpack.c.h.b16 %v448
        %v468 = vunpack.c.l.b16 %v449
        %v469 = vunpack.c.h.b16 %v449
        %v470 = vunpack.c.l.b16 %v450
        %v471 = vunpack.c.h.b16 %v450
        %v472 = vunpack.c.l.b16 %v451
        %v473 = vunpack.c.h.b16 %v451
        %v474 = vunpack.c.l.b16 %v452
        %v475 = vunpack.c.h.b16 %v452
        %v476 = vunpack.c.l.b16 %v453
        %v477 = vunpack.c.h.b16 %v453
        %v478 = vpack.c.b16 %v462, %v462
        %v479 = vpack.c.b16 %v463, %v463
        %v480 = vpack.c.b16 %v464, %v464
        %v481 = vpack.c.b16 %v465, %v465
        %v482 = vpack.c.b16 %v466, %v466
        %v483 = vpack.c.b16 %v467, %v467
        %v484 = vpack.c.b16 %v468, %v468
        %v485 = vpack.c.b16 %v469, %v469
        %v486 = vpack.c.b16 %v470, %v470
        %v487 = vpack.c.b16 %v471, %v471
        %v488 = vpack.c.b16 %v472, %v472
        %v489 = vpack.c.b16 %v473, %v473
        %v490 = vpack.c.b16 %v474, %v474
        %v491 = vpack.c.b16 %v475, %v475
        %v492 = vpack.c.b16 %v476, %v476
        %v493 = vpack.c.b16 %v477, %v477
        %510 = vst [vmem:[%s234] sm:$0xf] %v478
        %511 = vst [vmem:[%s234 + $0x4] sm:$0xf] %v479
        %512 = vst [vmem:[%s234 + $0x8] sm:$0xf] %v480
        %513 = vst [vmem:[%s234 + $0xc] sm:$0xf] %v481
        %514 = vst [vmem:[%s234 + $0x10] sm:$0xf] %v482
        %515 = vst [vmem:[%s234 + $0x14] sm:$0xf] %v483
        %516 = vst [vmem:[%s234 + $0x18] sm:$0xf] %v484
        %517 = vst [vmem:[%s234 + $0x1c] sm:$0xf] %v485
        %518 = vst [vmem:[%s234 + $0x20] sm:$0xf] %v486
        %519 = vst [vmem:[%s234 + $0x24] sm:$0xf] %v487
        %520 = vst [vmem:[%s234 + $0x28] sm:$0xf] %v488
        %521 = vst [vmem:[%s234 + $0x2c] sm:$0xf] %v489
        %522 = vst [vmem:[%s234 + $0x30] sm:$0xf] %v490
        %523 = vst [vmem:[%s234 + $0x34] sm:$0xf] %v491
        %524 = vst [vmem:[%s234 + $0x38] sm:$0xf] %v492
        %525 = vst [vmem:[%s234 + $0x3c] sm:$0xf] %v493
        %s526 = smul.u32 16, %s20
        %p527 = scmp.lt.s32.totalorder %s526, 63
        %s528 = scalar_select %p527, %s526, 63
        %p529 = scmp.lt.s32.totalorder %s21, 0
        %s530 = scalar_select %p529, %s21, 0
        %s531 = sadd.s32 %s530, %s528
        %s532 = smul.addr %s531, 4
        %s533 = scalar_lea.vmem %s3, %s532
        // Predicated region
        $region41: #{inception_d.5} parent=31 // pred_check
          %p534 = pneg %p126
        $region42: #{inception_d.5} parent=31 // pred_check_branch
          %536 = sbr.rel (%p534) target = $region44
        $region43: #{inception_d.5} parent=31 // pred_region
          %s537 = smul.u32 16, %s20
        $region44: #{inception_d.5} parent=31 // pred_fallthru
          _
      $region32: #{inception_d.5} parent=5 // pred_fallthru
        _
      %p538 = scmp.le.s32.totalorder 2, %s11
      // Predicated region
      $region45: #{inception_d.5} parent=5 // pred_check
        %p539 = pneg %p538
      $region46: #{inception_d.5} parent=5 // pred_check_branch
        %541 = sbr.rel (%p539) target = $region48
      $region47: #{inception_d.5} parent=5 // pred_region
        %s542 = ssub.s32 %s11, 2
        // Predicated region
        $region49: #{inception_d.5} parent=47 // pred_check
          %p543 = pneg %p132
        $region50: #{inception_d.5} parent=47 // pred_check_branch
          %545 = sbr.rel (%p543) target = $region52
        $region51: #{inception_d.5} parent=47 // pred_region
          %s546 = smul.u32 16, %s22
          %p547 = scmp.lt.s32.totalorder %s546, 63
          %s548 = scalar_select %p547, %s546, 63
          %p549 = scmp.lt.s32.totalorder %s23, 0
          %s550 = scalar_select %p549, %s23, 0
          %s551 = sadd.s32 %s550, %s548
          %s552 = smul.addr %s551, 4
          %s553 = scalar_lea.vmem %s3, %s552
        $region52: #{inception_d.5} parent=47 // pred_fallthru
          _
      $region48: #{inception_d.5} parent=5 // pred_fallthru
        _
    $region6: #{inception_d.5} parent=1 // loop_footer
      %s15 = sadd.s32 1, %s11
    $region7: #{inception_d.5} parent=1 // loop_footer_branch
      %10 = sbr.rel target = $region3
    $region8: #{inception_d.5} parent=1 // loop_exit
      _
    %554 = vsyncpa [#allocation3], 1
    %s555 = scalar_lea.sflag [#allocation3], 1
    %556 = vsyncpa %s555, 1
    %557 = vsyncpa [#allocation5], 1

// kernel: inception_d.7
$region0: #{inception_d.7}
  #allocation0 [shape = 'u32[]', space=smem, size = 0x4, offset = 0x4, fixed_abs, tag = 'smem constant byte address 0x4 - core index']
  #allocation1 [shape = 'u32[144,128]{1,0:T(1,128)}', space=vmem, size = 0x12000, scoped, tag = 'internal scratch']
  %s0 = inlined_call_operand.vmem [shape: bf16[512,640], index: 0, kind: input, shape index: {}]
  %s1 = inlined_call_operand.vmem [shape: bf16[640,256], index: 1, kind: input, shape index: {}]
  %s2 = inlined_call_operand.vmem [shape: f32[1,256], index: 2, kind: input, shape index: {}]
  %s3 = inlined_call_operand.vmem [shape: bf16[512,256], index: 3, kind: output, shape index: {}]
  %s4 = sld [smem:[#allocation0]]
  $region45: #{inception_d.7} parent=0
    _
  %s6 = ssub.s32 1, %s4
  %s7 = scalar_select 0, %s6, %s4
  loop: start=0, step=1, limit=6
  $region2: #{inception_d.7} parent=0 // loop_pre_header
    _
  $region3: #{inception_d.7} parent=0 // loop_header
    %s9 = sphi 0, %s13
    %p10 = scmp.ge.s32.totalorder %s9, 6
    %s16 = sphi 0, %s28
    %s17 = sphi 0, %s24
    %s18 = sphi 0, %s16
    %s19 = sphi 0, %s17
    %s20 = sphi 0, %s18
    %s21 = sphi 0, %s19
    %s31 = sphi 0, %s33
    %s34 = sphi 0, %s31
    %s35 = sphi 0, %s34
    %s51 = sphi 0, %s35
    %s57 = sphi 0, %s59
    %s60 = sphi 0, %s57
    %s61 = sphi 0, %s60
    %s77 = sphi 0, %s61
    %s83 = sphi 0, %s85
    %s86 = sphi 0, %s83
    %s87 = sphi 0, %s86
    %s103 = sphi 0, %s87
    %s111 = sphi 0, %s113
    %s114 = sphi 0, %s111
    %s115 = sphi 0, %s114
    %s131 = sphi 0, %s115
  $region4: #{inception_d.7} parent=0 // loop_header_branch
    %12 = sbr.rel (%p10) target = $region8
  $region5: #{inception_d.7} parent=0 // loop_body
    %s14 = ssub.s32 %s9, 1
    %s15 = ssub.s32 %s9, 2
    %s22 = sadd.s32 1, %s17
    %p23 = scmp.ge.s32.totalorder %s22, 1
    %s24 = scalar_select %p23, 0, %s22
    %s25 = sadd.s32 1, %s16
    %s26 = scalar_select %p23, %s25, %s16
    %p27 = scmp.ge.s32.totalorder %s26, 4
    %s28 = scalar_select %p27, 0, %s26
    %s29 = ssub.s32 %s16, %s28
    %p30 = scmp.eq.s32.totalorder %s29, 0
    %s32 = sadd.s32 %s31, 1
    %s33 = scalar_select %p30, %s31, %s32
    %p36 = pneg %p30
    %p37 = scmp.eq.s32.totalorder %s9, 3
    %p38 = por %p36, %p37
    %p39 = scmp.ne.s32.totalorder %s31, %s34
    %p40 = scmp.eq.s32.totalorder %s9, 0
    %p41 = por %p39, %p40
    %p42 = scmp.ne.s32.totalorder %s31, %s34
    %p43 = scmp.eq.s32.totalorder %s14, 3
    %p44 = por %p42, %p43
    %p45 = scmp.ne.s32.totalorder %s34, %s35
    %p46 = scmp.eq.s32.totalorder %s14, 0
    %p47 = por %p45, %p46
    %p48 = scmp.ne.s32.totalorder %s34, %s35
    %p49 = scmp.eq.s32.totalorder %s15, 3
    %p50 = por %p48, %p49
    %p52 = scmp.ne.s32.totalorder %s35, %s51
    %p53 = scmp.eq.s32.totalorder %s15, 0
    %p54 = por %p52, %p53
    %s55 = ssub.s32 %s17, %s24
    %p56 = scmp.eq.s32.totalorder %s55, 0
    %s58 = sadd.s32 %s57, 1
    %s59 = scalar_select %p56, %s57, %s58
    %p62 = pneg %p56
    %p63 = scmp.eq.s32.totalorder %s9, 3
    %p64 = por %p62, %p63
    %p65 = scmp.ne.s32.totalorder %s57, %s60
    %p66 = scmp.eq.s32.totalorder %s9, 0
    %p67 = por %p65, %p66
    %p68 = scmp.ne.s32.totalorder %s57, %s60
    %p69 = scmp.eq.s32.totalorder %s14, 3
    %p70 = por %p68, %p69
    %p71 = scmp.ne.s32.totalorder %s60, %s61
    %p72 = scmp.eq.s32.totalorder %s14, 0
    %p73 = por %p71, %p72
    %p74 = scmp.ne.s32.totalorder %s60, %s61
    %p75 = scmp.eq.s32.totalorder %s15, 3
    %p76 = por %p74, %p75
    %p78 = scmp.ne.s32.totalorder %s61, %s77
    %p79 = scmp.eq.s32.totalorder %s15, 0
    %p80 = por %p78, %p79
    %s81 = ssub.s32 %s17, %s24
    %p82 = scmp.eq.s32.totalorder %s81, 0
    %s84 = sadd.s32 %s83, 1
    %s85 = scalar_select %p82, %s83, %s84
    %p88 = pneg %p82
    %p89 = scmp.eq.s32.totalorder %s9, 3
    %p90 = por %p88, %p89
    %p91 = scmp.ne.s32.totalorder %s83, %s86
    %p92 = scmp.eq.s32.totalorder %s9, 0
    %p93 = por %p91, %p92
    %p94 = scmp.ne.s32.totalorder %s83, %s86
    %p95 = scmp.eq.s32.totalorder %s14, 3
    %p96 = por %p94, %p95
    %p97 = scmp.ne.s32.totalorder %s86, %s87
    %p98 = scmp.eq.s32.totalorder %s14, 0
    %p99 = por %p97, %p98
    %p100 = scmp.ne.s32.totalorder %s86, %s87
    %p101 = scmp.eq.s32.totalorder %s15, 3
    %p102 = por %p100, %p101
    %p104 = scmp.ne.s32.totalorder %s87, %s103
    %p105 = scmp.eq.s32.totalorder %s15, 0
    %p106 = por %p104, %p105
    %s107 = ssub.s32 %s16, %s28
    %s108 = ssub.s32 %s17, %s24
    %s109 = sor.u32 %s107, %s108
    %p110 = scmp.eq.s32.totalorder %s109, 0
    %s112 = sadd.s32 %s111, 1
    %s113 = scalar_select %p110, %s111, %s112
    %p116 = pneg %p110
    %p117 = scmp.eq.s32.totalorder %s9, 3
    %p118 = por %p116, %p117
    %p119 = scmp.ne.s32.totalorder %s111, %s114
    %p120 = scmp.eq.s32.totalorder %s9, 0
    %p121 = por %p119, %p120
    %p122 = scmp.ne.s32.totalorder %s111, %s114
    %p123 = scmp.eq.s32.totalorder %s14, 3
    %p124 = por %p122, %p123
    %p125 = scmp.ne.s32.totalorder %s114, %s115
    %p126 = scmp.eq.s32.totalorder %s14, 0
    %p127 = por %p125, %p126
    %p128 = scmp.ne.s32.totalorder %s114, %s115
    %p129 = scmp.eq.s32.totalorder %s15, 3
    %p130 = por %p128, %p129
    %p132 = scmp.ne.s32.totalorder %s115, %s131
    %p133 = scmp.eq.s32.totalorder %s15, 0
    %p134 = por %p132, %p133
    %p135 = scmp.le.s32.totalorder 1, %s9
    %p136 = scmp.lt.s32.totalorder %s9, 5
    %p137 = pnand %p135, %p136
    %p138 = pneg %p137
    // Predicated region
    $region9: #{inception_d.7} parent=5 // pred_check
      _
    $region10: #{inception_d.7} parent=5 // pred_check_branch
      %140 = sbr.rel (%p137) target = $region12
    $region11: #{inception_d.7} parent=5 // pred_region
      %s141 = ssub.s32 %s9, 1
      // Predicated region
      $region13: #{inception_d.7} parent=11 // pred_check
        %p142 = pneg %p73
      $region14: #{inception_d.7} parent=11 // pred_check_branch
        %144 = sbr.rel (%p142) target = $region16
      $region15: #{inception_d.7} parent=11 // pred_region
        %s145 = smul.u32 2, %s19
        %p146 = scmp.lt.s32.totalorder %s145, 1
        %s147 = scalar_select %p146, %s145, 1
        %s148 = smul.addr %s147, 4
        %s149 = scalar_lea.vmem %s1, %s148
        %s150 = smul.u32 2, %s19
      $region16: #{inception_d.7} parent=11 // pred_fallthru
        _
      // Predicated region
      $region17: #{inception_d.7} parent=11 // pred_check
        %p151 = pneg %p99
      $region18: #{inception_d.7} parent=11 // pred_check_branch
        %153 = sbr.rel (%p151) target = $region20
      $region19: #{inception_d.7} parent=11 // pred_region
        %s154 = smul.u32 2, %s19
        %p155 = scmp.lt.s32.totalorder %s154, 1
        %s156 = scalar_select %p155, %s154, 1
        %s157 = scalar_lea.vmem %s2, %s156
        %s158 = smul.u32 2, %s19
      $region20: #{inception_d.7} parent=11 // pred_fallthru
        _
    $region12: #{inception_d.7} parent=5 // pred_fallthru
      _
    %p159 = scmp.lt.s32.totalorder %s9, 4
    // Predicated region
    $region21: #{inception_d.7} parent=5 // pred_check
      %p160 = pneg %p159
    $region22: #{inception_d.7} parent=5 // pred_check_branch
      %162 = sbr.rel (%p160) target = $region24
    $region23: #{inception_d.7} parent=5 // pred_region
      // Predicated region
      $region25: #{inception_d.7} parent=23 // pred_check
        %p163 = pneg %p41
      $region26: #{inception_d.7} parent=23 // pred_check_branch
        %165 = sbr.rel (%p163) target = $region28
      $region27: #{inception_d.7} parent=23 // pred_region
        %s166 = smul.u32 16, %s16
        %p167 = scmp.lt.s32.totalorder %s166, 63
        %s168 = scalar_select %p167, %s166, 63
        %s169 = smul.addr %s168, 5
        %s170 = smul.addr %s169, 4
        %s171 = scalar_lea.vmem %s0, %s170
        %s172 = smul.u32 16, %s16
      $region28: #{inception_d.7} parent=23 // pred_fallthru
        _
    $region24: #{inception_d.7} parent=5 // pred_fallthru
      _
    %p173 = scmp.le.s32.totalorder 1, %s9
    %p174 = scmp.lt.s32.totalorder %s9, 5
    %p175 = pnand %p173, %p174
    %p176 = pneg %p175
    // Predicated region
    $region29: #{inception_d.7} parent=5 // pred_check
      _
    $region30: #{inception_d.7} parent=5 // pred_check_branch
      %178 = sbr.rel (%p175) target = $region32
    $region31: #{inception_d.7} parent=5 // pred_region
      %s179 = ssub.s32 %s9, 1
      %s180 = smul.u32 16, %s18
      %p181 = scmp.lt.s32.totalorder %s180, 63
      %s182 = scalar_select %p181, %s180, 63
      %s183 = smul.addr %s182, 5
      %s184 = smul.addr %s183, 4
      %s185 = scalar_lea.vmem %s0, %s184
      %p186 = pneg %p47
      %p187 = pneg %p44
      %s188 = smul.u32 2, %s19
      %p189 = scmp.lt.s32.totalorder %s188, 1
      %s190 = scalar_select %p189, %s188, 1
      %s191 = smul.addr %s190, 4
      %s192 = scalar_lea.vmem %s1, %s191
      %p193 = pneg %p73
      %p194 = pneg %p70
      %s195 = smul.u32 2, %s19
      %p196 = scmp.lt.s32.totalorder %s195, 1
      %s197 = scalar_select %p196, %s195, 1
      %s198 = scalar_lea.vmem %s2, %s197
      %p199 = pneg %p99
      %p200 = pneg %p96
      %p201 = pneg %p127
      %p202 = pneg %p124
      %s203 = smul.u32 16, %s18
      %s204 = smul.u32 2, %s19
      %p205 = scmp.lt.s32.totalorder %s203, 63
      %s206 = scalar_select %p205, %s203, 63
      %p207 = scmp.lt.s32.totalorder %s204, 1
      %s208 = scalar_select %p207, %s204, 1
      %s209 = smul.addr %s206, 2
      %s210 = sadd.s32 %s208, %s209
      %s211 = smul.addr %s210, 4
      %s212 = scalar_lea.vmem %s3, %s211
      %s213 = smul.u32 16, %s18
      %p214 = scmp.lt.s32.totalorder %s213, 63
      %s215 = scalar_select %p214, %s213, 63
      %s216 = smul.addr %s215, 5
      %s217 = smul.addr %s216, 4
      %s218 = scalar_lea.vmem %s0, %s217
      %s219 = smul.u32 16, %s18
      %s220 = smul.u32 2, %s19
      %p221 = scmp.lt.s32.totalorder %s220, 1
      %s222 = scalar_select %p221, %s220, 1
      %s223 = smul.addr %s222, 4
      %s224 = scalar_lea.vmem %s1, %s223
      %s225 = smul.u32 2, %s19
      %s226 = smul.u32 2, %s19
      %p227 = scmp.lt.s32.totalorder %s226, 1
      %s228 = scalar_select %p227, %s226, 1
      %s229 = scalar_lea.vmem %s2, %s228
      %s230 = smul.u32 2, %s19
      %s231 = smul.u32 16, %s18
      %s232 = smul.u32 2, %s19
      %p233 = scmp.lt.s32.totalorder %s231, 63
      %s234 = scalar_select %p233, %s231, 63
      %p235 = scmp.lt.s32.totalorder %s232, 1
      %s236 = scalar_select %p235, %s232, 1
      %s237 = smul.addr %s234, 2
      %s238 = sadd.s32 %s236, %s237
      %s239 = smul.addr %s238, 4
      %s240 = scalar_lea.vmem %s3, %s239
      %s241 = smul.u32 16, %s18
      %s242 = smul.u32 2, %s19
      %v244 = vld [vmem:[%s218] sm:$0xff]
      %v245 = vld [vmem:[%s218 + $0x8] sm:$0xff]
      %v246 = vld [vmem:[%s218 + $0x10] sm:$0xf]
      %v247 = vld [vmem:[%s218 + $0x14] sm:$0xff]
      %v248 = vld [vmem:[%s218 + $0x1c] sm:$0xff]
      %v249 = vld [vmem:[%s218 + $0x24] sm:$0xf]
      %v250 = vld [vmem:[%s218 + $0x28] sm:$0xff]
      %v251 = vld [vmem:[%s218 + $0x30] sm:$0xff]
      %v252 = vld [vmem:[%s218 + $0x38] sm:$0xf]
      %v253 = vld [vmem:[%s218 + $0x3c] sm:$0xff]
      %v254 = vld [vmem:[%s218 + $0x44] sm:$0xff]
      %v255 = vld [vmem:[%s218 + $0x4c] sm:$0xf]
      %v256 = vld [vmem:[%s218 + $0x50] sm:$0xff]
      %v257 = vld [vmem:[%s218 + $0x58] sm:$0xff]
      %v258 = vld [vmem:[%s218 + $0x60] sm:$0xf]
      %v259 = vld [vmem:[%s218 + $0x64] sm:$0xff]
      %v260 = vld [vmem:[%s218 + $0x6c] sm:$0xff]
      %v261 = vld [vmem:[%s218 + $0x74] sm:$0xf]
      %v262 = vld [vmem:[%s218 + $0x78] sm:$0xff]
      %v263 = vld [vmem:[%s218 + $0x80] sm:$0xff]
      %v264 = vld [vmem:[%s218 + $0x88] sm:$0xf]
      %v265 = vld [vmem:[%s218 + $0x8c] sm:$0xff]
      %v266 = vld [vmem:[%s218 + $0x94] sm:$0xff]
      %v267 = vld [vmem:[%s218 + $0x9c] sm:$0xf]
      %v268 = vld [vmem:[%s218 + $0xa0] sm:$0xff]
      %v269 = vld [vmem:[%s218 + $0xa8] sm:$0xff]
      %v270 = vld [vmem:[%s218 + $0xb0] sm:$0xf]
      %v271 = vld [vmem:[%s218 + $0xb4] sm:$0xff]
      %v272 = vld [vmem:[%s218 + $0xbc] sm:$0xff]
      %v273 = vld [vmem:[%s218 + $0xc4] sm:$0xf]
      %v274 = vld [vmem:[%s218 + $0xc8] sm:$0xff]
      %v275 = vld [vmem:[%s218 + $0xd0] sm:$0xff]
      %v276 = vld [vmem:[%s218 + $0xd8] sm:$0xf]
      %v277 = vld [vmem:[%s218 + $0xdc] sm:$0xff]
      %v278 = vld [vmem:[%s218 + $0xe4] sm:$0xff]
      %v279 = vld [vmem:[%s218 + $0xec] sm:$0xf]
      %v280 = vld [vmem:[%s218 + $0xf0] sm:$0xff]
      %v281 = vld [vmem:[%s218 + $0xf8] sm:$0xff]
      %v282 = vld [vmem:[%s218 + $0x100] sm:$0xf]
      %v283 = vld [vmem:[%s218 + $0x104] sm:$0xff]
      %v284 = vld [vmem:[%s218 + $0x10c] sm:$0xff]
      %v285 = vld [vmem:[%s218 + $0x114] sm:$0xf]
      %v286 = vld [vmem:[%s218 + $0x118] sm:$0xff]
      %v287 = vld [vmem:[%s218 + $0x120] sm:$0xff]
      %v288 = vld [vmem:[%s218 + $0x128] sm:$0xf]
      %v289 = vld [vmem:[%s218 + $0x12c] sm:$0xff]
      %v290 = vld [vmem:[%s218 + $0x134] sm:$0xff]
      %v291 = vld [vmem:[%s218 + $0x13c] sm:$0xf]
      %v292 = vld [vmem:[%s224] sm:$0xff]
      %v293 = vld [vmem:[%s224 + $0x8] sm:$0xff]
      %v294 = vld [vmem:[%s224 + $0x10] sm:$0xff]
      %v295 = vld [vmem:[%s224 + $0x18] sm:$0xff]
      %v296 = vld [vmem:[%s224 + $0x20] sm:$0xff]
      %v297 = vld [vmem:[%s224 + $0x28] sm:$0xff]
      %v298 = vld [vmem:[%s224 + $0x30] sm:$0xff]
      %v299 = vld [vmem:[%s224 + $0x38] sm:$0xff]
      %v300 = vld [vmem:[%s224 + $0x40] sm:$0xff]
      %v301 = vld [vmem:[%s224 + $0x48] sm:$0xff]
      %v302 = vld [vmem:[%s224 + $0x50] sm:$0xff]
      %v303 = vld [vmem:[%s224 + $0x58] sm:$0xff]
      %v304 = vld [vmem:[%s224 + $0x60] sm:$0xff]
      %v305 = vld [vmem:[%s224 + $0x68] sm:$0xff]
      %v306 = vld [vmem:[%s224 + $0x70] sm:$0xff]
      %v307 = vld [vmem:[%s224 + $0x78] sm:$0xff]
      %v308 = vld [vmem:[%s224 + $0x80] sm:$0xff]
      %v309 = vld [vmem:[%s224 + $0x88] sm:$0xff]
      %v310 = vld [vmem:[%s224 + $0x90] sm:$0xff]
      %v311 = vld [vmem:[%s224 + $0x98] sm:$0xff]
      %v312 = vld [vmem:[%s224 + $0xa0] sm:$0xff]
      %v313 = vld [vmem:[%s224 + $0xa8] sm:$0xff]
      %v314 = vld [vmem:[%s224 + $0xb0] sm:$0xff]
      %v315 = vld [vmem:[%s224 + $0xb8] sm:$0xff]
      %v316 = vld [vmem:[%s224 + $0xc0] sm:$0xff]
      %v317 = vld [vmem:[%s224 + $0xc8] sm:$0xff]
      %v318 = vld [vmem:[%s224 + $0xd0] sm:$0xff]
      %v319 = vld [vmem:[%s224 + $0xd8] sm:$0xff]
      %v320 = vld [vmem:[%s224 + $0xe0] sm:$0xff]
      %v321 = vld [vmem:[%s224 + $0xe8] sm:$0xff]
      %v322 = vld [vmem:[%s224 + $0xf0] sm:$0xff]
      %v323 = vld [vmem:[%s224 + $0xf8] sm:$0xff]
      %v324 = vld [vmem:[%s224 + $0x100] sm:$0xff]
      %v325 = vld [vmem:[%s224 + $0x108] sm:$0xff]
      %v326 = vld [vmem:[%s224 + $0x110] sm:$0xff]
      %v327 = vld [vmem:[%s224 + $0x118] sm:$0xff]
      %v328 = vld [vmem:[%s224 + $0x120] sm:$0xff]
      %v329 = vld [vmem:[%s224 + $0x128] sm:$0xff]
      %v330 = vld [vmem:[%s224 + $0x130] sm:$0xff]
      %v331 = vld [vmem:[%s224 + $0x138] sm:$0xff]
      %v332 = vld [vmem:[%s224 + $0x140] sm:$0xff]
      %v333 = vld [vmem:[%s224 + $0x148] sm:$0xff]
      %v334 = vld [vmem:[%s224 + $0x150] sm:$0xff]
      %v335 = vld [vmem:[%s224 + $0x158] sm:$0xff]
      %v336 = vld [vmem:[%s224 + $0x160] sm:$0xff]
      %v337 = vld [vmem:[%s224 + $0x168] sm:$0xff]
      %v338 = vld [vmem:[%s224 + $0x170] sm:$0xff]
      %v339 = vld [vmem:[%s224 + $0x178] sm:$0xff]
      %v340 = vld [vmem:[%s224 + $0x180] sm:$0xff]
      %v341 = vld [vmem:[%s224 + $0x188] sm:$0xff]
      %v342 = vld [vmem:[%s224 + $0x190] sm:$0xff]
      %v343 = vld [vmem:[%s224 + $0x198] sm:$0xff]
      %v344 = vld [vmem:[%s224 + $0x1a0] sm:$0xff]
      %v345 = vld [vmem:[%s224 + $0x1a8] sm:$0xff]
      %v346 = vld [vmem:[%s224 + $0x1b0] sm:$0xff]
      %v347 = vld [vmem:[%s224 + $0x1b8] sm:$0xff]
      %v348 = vld [vmem:[%s224 + $0x1c0] sm:$0xff]
      %v349 = vld [vmem:[%s224 + $0x1c8] sm:$0xff]
      %v350 = vld [vmem:[%s224 + $0x1d0] sm:$0xff]
      %v351 = vld [vmem:[%s224 + $0x1d8] sm:$0xff]
      %v352 = vld [vmem:[%s224 + $0x1e0] sm:$0xff]
      %v353 = vld [vmem:[%s224 + $0x1e8] sm:$0xff]
      %v354 = vld [vmem:[%s224 + $0x1f0] sm:$0xff]
      %v355 = vld [vmem:[%s224 + $0x1f8] sm:$0xff]
      %v356 = vld [vmem:[%s224 + $0x200] sm:$0xff]
      %v357 = vld [vmem:[%s224 + $0x208] sm:$0xff]
      %v358 = vld [vmem:[%s224 + $0x210] sm:$0xff]
      %v359 = vld [vmem:[%s224 + $0x218] sm:$0xff]
      %v360 = vld [vmem:[%s224 + $0x220] sm:$0xff]
      %v361 = vld [vmem:[%s224 + $0x228] sm:$0xff]
      %v362 = vld [vmem:[%s224 + $0x230] sm:$0xff]
      %v363 = vld [vmem:[%s224 + $0x238] sm:$0xff]
      %v364 = vld [vmem:[%s224 + $0x240] sm:$0xff]
      %v365 = vld [vmem:[%s224 + $0x248] sm:$0xff]
      %v366 = vld [vmem:[%s224 + $0x250] sm:$0xff]
      %v367 = vld [vmem:[%s224 + $0x258] sm:$0xff]
      %v368 = vld [vmem:[%s224 + $0x260] sm:$0xff]
      %v369 = vld [vmem:[%s224 + $0x268] sm:$0xff]
      %v370 = vld [vmem:[%s224 + $0x270] sm:$0xff]
      %v371 = vld [vmem:[%s224 + $0x278] sm:$0xff]
      %v372 = vld [vmem:[%s229] sm:$0x3]
      %v374 = vlaneseq
      %v375 = vshrl.u32 %v374, 7
      %v376 = vsub.s32 0, %v375
      %v377 = vrot.slane %v372, %v376
      %v378 = vlaneseq
      %v379 = vshrl.u32 %v378, 7
      %v380 = vsub.s32 1, %v379
      %v381 = vrot.slane %v372, %v380
      %v432 = vunpack.c.l.b16 %v244
      %v433 = vunpack.c.h.b16 %v244
      %v434 = vunpack.c.l.b16 %v245
      %v435 = vunpack.c.h.b16 %v245
      %v436 = vunpack.c.l.b16 %v246
      %v437 = vunpack.c.l.b16 %v247
      %v438 = vunpack.c.h.b16 %v247
      %v439 = vunpack.c.l.b16 %v248
      %v440 = vunpack.c.h.b16 %v248
      %v441 = vunpack.c.l.b16 %v249
      %v442 = vunpack.c.l.b16 %v250
      %v443 = vunpack.c.h.b16 %v250
      %v444 = vunpack.c.l.b16 %v251
      %v445 = vunpack.c.h.b16 %v251
      %v446 = vunpack.c.l.b16 %v252
      %v447 = vunpack.c.l.b16 %v253
      %v448 = vunpack.c.h.b16 %v253
      %v449 = vunpack.c.l.b16 %v254
      %v450 = vunpack.c.h.b16 %v254
      %v451 = vunpack.c.l.b16 %v255
      %v452 = vunpack.c.l.b16 %v256
      %v453 = vunpack.c.h.b16 %v256
      %v454 = vunpack.c.l.b16 %v257
      %v455 = vunpack.c.h.b16 %v257
      %v456 = vunpack.c.l.b16 %v258
      %v457 = vunpack.c.l.b16 %v259
      %v458 = vunpack.c.h.b16 %v259
      %v459 = vunpack.c.l.b16 %v260
      %v460 = vunpack.c.h.b16 %v260
      %v461 = vunpack.c.l.b16 %v261
      %v462 = vunpack.c.l.b16 %v262
      %v463 = vunpack.c.h.b16 %v262
      %v464 = vunpack.c.l.b16 %v263
      %v465 = vunpack.c.h.b16 %v263
      %v466 = vunpack.c.l.b16 %v264
      %v467 = vunpack.c.l.b16 %v265
      %v468 = vunpack.c.h.b16 %v265
      %v469 = vunpack.c.l.b16 %v266
      %v470 = vunpack.c.h.b16 %v266
      %v471 = vunpack.c.l.b16 %v267
      %v472 = vunpack.c.l.b16 %v268
      %v473 = vunpack.c.h.b16 %v268
      %v474 = vunpack.c.l.b16 %v269
      %v475 = vunpack.c.h.b16 %v269
      %v476 = vunpack.c.l.b16 %v270
      %v477 = vunpack.c.l.b16 %v271
      %v478 = vunpack.c.h.b16 %v271
      %v479 = vunpack.c.l.b16 %v272
      %v480 = vunpack.c.h.b16 %v272
      %v481 = vunpack.c.l.b16 %v273
      %v482 = vunpack.c.l.b16 %v274
      %v483 = vunpack.c.h.b16 %v274
      %v484 = vunpack.c.l.b16 %v275
      %v485 = vunpack.c.h.b16 %v275
      %v486 = vunpack.c.l.b16 %v276
      %v487 = vunpack.c.l.b16 %v277
      %v488 = vunpack.c.h.b16 %v277
      %v489 = vunpack.c.l.b16 %v278
      %v490 = vunpack.c.h.b16 %v278
      %v491 = vunpack.c.l.b16 %v279
      %v492 = vunpack.c.l.b16 %v280
      %v493 = vunpack.c.h.b16 %v280
      %v494 = vunpack.c.l.b16 %v281
      %v495 = vunpack.c.h.b16 %v281
      %v496 = vunpack.c.l.b16 %v282
      %v497 = vunpack.c.l.b16 %v283
      %v498 = vunpack.c.h.b16 %v283
      %v499 = vunpack.c.l.b16 %v284
      %v500 = vunpack.c.h.b16 %v284
      %v501 = vunpack.c.l.b16 %v285
      %v502 = vunpack.c.l.b16 %v286
      %v503 = vunpack.c.h.b16 %v286
      %v504 = vunpack.c.l.b16 %v287
      %v505 = vunpack.c.h.b16 %v287
      %v506 = vunpack.c.l.b16 %v288
      %v507 = vunpack.c.l.b16 %v289
      %v508 = vunpack.c.h.b16 %v289
      %v509 = vunpack.c.l.b16 %v290
      %v510 = vunpack.c.h.b16 %v290
      %v511 = vunpack.c.l.b16 %v291
      %v512 = vpack.c.b16 %v437, %v432
      %v513 = vpack.c.b16 %v438, %v433
      %v514 = vpack.c.b16 %v439, %v434
      %v515 = vpack.c.b16 %v440, %v435
      %v516 = vpack.c.b16 %v441, %v436
      %v517 = vpack.c.b16 %v447, %v442
      %v518 = vpack.c.b16 %v448, %v443
      %v519 = vpack.c.b16 %v449, %v444
      %v520 = vpack.c.b16 %v450, %v445
      %v521 = vpack.c.b16 %v451, %v446
      %v522 = vpack.c.b16 %v457, %v452
      %v523 = vpack.c.b16 %v458, %v453
      %v524 = vpack.c.b16 %v459, %v454
      %v525 = vpack.c.b16 %v460, %v455
      %v526 = vpack.c.b16 %v461, %v456
      %v527 = vpack.c.b16 %v467, %v462
      %v528 = vpack.c.b16 %v468, %v463
      %v529 = vpack.c.b16 %v469, %v464
      %v530 = vpack.c.b16 %v470, %v465
      %v531 = vpack.c.b16 %v471, %v466
      %v532 = vpack.c.b16 %v477, %v472
      %v533 = vpack.c.b16 %v478, %v473
      %v534 = vpack.c.b16 %v479, %v474
      %v535 = vpack.c.b16 %v480, %v475
      %v536 = vpack.c.b16 %v481, %v476
      %v537 = vpack.c.b16 %v487, %v482
      %v538 = vpack.c.b16 %v488, %v483
      %v539 = vpack.c.b16 %v489, %v484
      %v540 = vpack.c.b16 %v490, %v485
      %v541 = vpack.c.b16 %v491, %v486
      %v542 = vpack.c.b16 %v497, %v492
      %v543 = vpack.c.b16 %v498, %v493
      %v544 = vpack.c.b16 %v499, %v494
      %v545 = vpack.c.b16 %v500, %v495
      %v546 = vpack.c.b16 %v501, %v496
      %v547 = vpack.c.b16 %v507, %v502
      %v548 = vpack.c.b16 %v508, %v503
      %v549 = vpack.c.b16 %v509, %v504
      %v550 = vpack.c.b16 %v510, %v505
      %v551 = vpack.c.b16 %v511, %v506
      %v672 = vunpack.c.l.b16 %v292
      %v673 = vunpack.c.h.b16 %v292
      %v674 = vunpack.c.l.b16 %v293
      %v675 = vunpack.c.h.b16 %v293
      %v676 = vunpack.c.l.b16 %v294
      %v677 = vunpack.c.h.b16 %v294
      %v678 = vunpack.c.l.b16 %v295
      %v679 = vunpack.c.h.b16 %v295
      %v680 = vunpack.c.l.b16 %v296
      %v681 = vunpack.c.h.b16 %v296
      %v682 = vunpack.c.l.b16 %v297
      %v683 = vunpack.c.h.b16 %v297
      %v684 = vunpack.c.l.b16 %v298
      %v685 = vunpack.c.h.b16 %v298
      %v686 = vunpack.c.l.b16 %v299
      %v687 = vunpack.c.h.b16 %v299
      %v688 = vunpack.c.l.b16 %v300
      %v689 = vunpack.c.h.b16 %v300
      %v690 = vunpack.c.l.b16 %v301
      %v691 = vunpack.c.h.b16 %v301
      %v692 = vunpack.c.l.b16 %v302
      %v693 = vunpack.c.h.b16 %v302
      %v694 = vunpack.c.l.b16 %v303
      %v695 = vunpack.c.h.b16 %v303
      %v696 = vunpack.c.l.b16 %v304
      %v697 = vunpack.c.h.b16 %v304
      %v698 = vunpack.c.l.b16 %v305
      %v699 = vunpack.c.h.b16 %v305
      %v700 = vunpack.c.l.b16 %v306
      %v701 = vunpack.c.h.b16 %v306
      %v702 = vunpack.c.l.b16 %v307
      %v703 = vunpack.c.h.b16 %v307
      %v704 = vunpack.c.l.b16 %v308
      %v705 = vunpack.c.h.b16 %v308
      %v706 = vunpack.c.l.b16 %v309
      %v707 = vunpack.c.h.b16 %v309
      %v708 = vunpack.c.l.b16 %v310
      %v709 = vunpack.c.h.b16 %v310
      %v710 = vunpack.c.l.b16 %v311
      %v711 = vunpack.c.h.b16 %v311
      %v712 = vunpack.c.l.b16 %v312
      %v713 = vunpack.c.h.b16 %v312
      %v714 = vunpack.c.l.b16 %v313
      %v715 = vunpack.c.h.b16 %v313
      %v716 = vunpack.c.l.b16 %v314
      %v717 = vunpack.c.h.b16 %v314
      %v718 = vunpack.c.l.b16 %v315
      %v719 = vunpack.c.h.b16 %v315
      %v720 = vunpack.c.l.b16 %v316
      %v721 = vunpack.c.h.b16 %v316
      %v722 = vunpack.c.l.b16 %v317
      %v723 = vunpack.c.h.b16 %v317
      %v724 = vunpack.c.l.b16 %v318
      %v725 = vunpack.c.h.b16 %v318
      %v726 = vunpack.c.l.b16 %v319
      %v727 = vunpack.c.h.b16 %v319
      %v728 = vunpack.c.l.b16 %v320
      %v729 = vunpack.c.h.b16 %v320
      %v730 = vunpack.c.l.b16 %v321
      %v731 = vunpack.c.h.b16 %v321
      %v732 = vunpack.c.l.b16 %v322
      %v733 = vunpack.c.h.b16 %v322
      %v734 = vunpack.c.l.b16 %v323
      %v735 = vunpack.c.h.b16 %v323
      %v736 = vunpack.c.l.b16 %v324
      %v737 = vunpack.c.h.b16 %v324
      %v738 = vunpack.c.l.b16 %v325
      %v739 = vunpack.c.h.b16 %v325
      %v740 = vunpack.c.l.b16 %v326
      %v741 = vunpack.c.h.b16 %v326
      %v742 = vunpack.c.l.b16 %v327
      %v743 = vunpack.c.h.b16 %v327
      %v744 = vunpack.c.l.b16 %v328
      %v745 = vunpack.c.h.b16 %v328
      %v746 = vunpack.c.l.b16 %v329
      %v747 = vunpack.c.h.b16 %v329
      %v748 = vunpack.c.l.b16 %v330
      %v749 = vunpack.c.h.b16 %v330
      %v750 = vunpack.c.l.b16 %v331
      %v751 = vunpack.c.h.b16 %v331
      %v752 = vunpack.c.l.b16 %v332
      %v753 = vunpack.c.h.b16 %v332
      %v754 = vunpack.c.l.b16 %v333
      %v755 = vunpack.c.h.b16 %v333
      %v756 = vunpack.c.l.b16 %v334
      %v757 = vunpack.c.h.b16 %v334
      %v758 = vunpack.c.l.b16 %v335
      %v759 = vunpack.c.h.b16 %v335
      %v760 = vunpack.c.l.b16 %v336
      %v761 = vunpack.c.h.b16 %v336
      %v762 = vunpack.c.l.b16 %v337
      %v763 = vunpack.c.h.b16 %v337
      %v764 = vunpack.c.l.b16 %v338
      %v765 = vunpack.c.h.b16 %v338
      %v766 = vunpack.c.l.b16 %v339
      %v767 = vunpack.c.h.b16 %v339
      %v768 = vunpack.c.l.b16 %v340
      %v769 = vunpack.c.h.b16 %v340
      %v770 = vunpack.c.l.b16 %v341
      %v771 = vunpack.c.h.b16 %v341
      %v772 = vunpack.c.l.b16 %v342
      %v773 = vunpack.c.h.b16 %v342
      %v774 = vunpack.c.l.b16 %v343
      %v775 = vunpack.c.h.b16 %v343
      %v776 = vunpack.c.l.b16 %v344
      %v777 = vunpack.c.h.b16 %v344
      %v778 = vunpack.c.l.b16 %v345
      %v779 = vunpack.c.h.b16 %v345
      %v780 = vunpack.c.l.b16 %v346
      %v781 = vunpack.c.h.b16 %v346
      %v782 = vunpack.c.l.b16 %v347
      %v783 = vunpack.c.h.b16 %v347
      %v784 = vunpack.c.l.b16 %v348
      %v785 = vunpack.c.h.b16 %v348
      %v786 = vunpack.c.l.b16 %v349
      %v787 = vunpack.c.h.b16 %v349
      %v788 = vunpack.c.l.b16 %v350
      %v789 = vunpack.c.h.b16 %v350
      %v790 = vunpack.c.l.b16 %v351
      %v791 = vunpack.c.h.b16 %v351
      %v792 = vunpack.c.l.b16 %v352
      %v793 = vunpack.c.h.b16 %v352
      %v794 = vunpack.c.l.b16 %v353
      %v795 = vunpack.c.h.b16 %v353
      %v796 = vunpack.c.l.b16 %v354
      %v797 = vunpack.c.h.b16 %v354
      %v798 = vunpack.c.l.b16 %v355
      %v799 = vunpack.c.h.b16 %v355
      %v800 = vunpack.c.l.b16 %v356
      %v801 = vunpack.c.h.b16 %v356
      %v802 = vunpack.c.l.b16 %v357
      %v803 = vunpack.c.h.b16 %v357
      %v804 = vunpack.c.l.b16 %v358
      %v805 = vunpack.c.h.b16 %v358
      %v806 = vunpack.c.l.b16 %v359
      %v807 = vunpack.c.h.b16 %v359
      %v808 = vunpack.c.l.b16 %v360
      %v809 = vunpack.c.h.b16 %v360
      %v810 = vunpack.c.l.b16 %v361
      %v811 = vunpack.c.h.b16 %v361
      %v812 = vunpack.c.l.b16 %v362
      %v813 = vunpack.c.h.b16 %v362
      %v814 = vunpack.c.l.b16 %v363
      %v815 = vunpack.c.h.b16 %v363
      %v816 = vunpack.c.l.b16 %v364
      %v817 = vunpack.c.h.b16 %v364
      %v818 = vunpack.c.l.b16 %v365
      %v819 = vunpack.c.h.b16 %v365
      %v820 = vunpack.c.l.b16 %v366
      %v821 = vunpack.c.h.b16 %v366
      %v822 = vunpack.c.l.b16 %v367
      %v823 = vunpack.c.h.b16 %v367
      %v824 = vunpack.c.l.b16 %v368
      %v825 = vunpack.c.h.b16 %v368
      %v826 = vunpack.c.l.b16 %v369
      %v827 = vunpack.c.h.b16 %v369
      %v828 = vunpack.c.l.b16 %v370
      %v829 = vunpack.c.h.b16 %v370
      %v830 = vunpack.c.l.b16 %v371
      %v831 = vunpack.c.h.b16 %v371
      %v832 = vpack.c.b16 %v674, %v672
      %v833 = vpack.c.b16 %v675, %v673
      %v834 = vpack.c.b16 %v678, %v676
      %v835 = vpack.c.b16 %v679, %v677
      %v836 = vpack.c.b16 %v682, %v680
      %v837 = vpack.c.b16 %v683, %v681
      %v838 = vpack.c.b16 %v686, %v684
      %v839 = vpack.c.b16 %v687, %v685
      %v840 = vpack.c.b16 %v690, %v688
      %v841 = vpack.c.b16 %v691, %v689
      %v842 = vpack.c.b16 %v694, %v692
      %v843 = vpack.c.b16 %v695, %v693
      %v844 = vpack.c.b16 %v698, %v696
      %v845 = vpack.c.b16 %v699, %v697
      %v846 = vpack.c.b16 %v702, %v700
      %v847 = vpack.c.b16 %v703, %v701
      %v848 = vpack.c.b16 %v706, %v704
      %v849 = vpack.c.b16 %v707, %v705
      %v850 = vpack.c.b16 %v710, %v708
      %v851 = vpack.c.b16 %v711, %v709
      %v852 = vpack.c.b16 %v714, %v712
      %v853 = vpack.c.b16 %v715, %v713
      %v854 = vpack.c.b16 %v718, %v716
      %v855 = vpack.c.b16 %v719, %v717
      %v856 = vpack.c.b16 %v722, %v720
      %v857 = vpack.c.b16 %v723, %v721
      %v858 = vpack.c.b16 %v726, %v724
      %v859 = vpack.c.b16 %v727, %v725
      %v860 = vpack.c.b16 %v730, %v728
      %v861 = vpack.c.b16 %v731, %v729
      %v862 = vpack.c.b16 %v734, %v732
      %v863 = vpack.c.b16 %v735, %v733
      %v864 = vpack.c.b16 %v738, %v736
      %v865 = vpack.c.b16 %v739, %v737
      %v866 = vpack.c.b16 %v742, %v740
      %v867 = vpack.c.b16 %v743, %v741
      %v868 = vpack.c.b16 %v746, %v744
      %v869 = vpack.c.b16 %v747, %v745
      %v870 = vpack.c.b16 %v750, %v748
      %v871 = vpack.c.b16 %v751, %v749
      %v872 = vpack.c.b16 %v754, %v752
      %v873 = vpack.c.b16 %v755, %v753
      %v874 = vpack.c.b16 %v758, %v756
      %v875 = vpack.c.b16 %v759, %v757
      %v876 = vpack.c.b16 %v762, %v760
      %v877 = vpack.c.b16 %v763, %v761
      %v878 = vpack.c.b16 %v766, %v764
      %v879 = vpack.c.b16 %v767, %v765
      %v880 = vpack.c.b16 %v770, %v768
      %v881 = vpack.c.b16 %v771, %v769
      %v882 = vpack.c.b16 %v774, %v772
      %v883 = vpack.c.b16 %v775, %v773
      %v884 = vpack.c.b16 %v778, %v776
      %v885 = vpack.c.b16 %v779, %v777
      %v886 = vpack.c.b16 %v782, %v780
      %v887 = vpack.c.b16 %v783, %v781
      %v888 = vpack.c.b16 %v786, %v784
      %v889 = vpack.c.b16 %v787, %v785
      %v890 = vpack.c.b16 %v790, %v788
      %v891 = vpack.c.b16 %v791, %v789
      %v892 = vpack.c.b16 %v794, %v792
      %v893 = vpack.c.b16 %v795, %v793
      %v894 = vpack.c.b16 %v798, %v796
      %v895 = vpack.c.b16 %v799, %v797
      %v896 = vpack.c.b16 %v802, %v800
      %v897 = vpack.c.b16 %v803, %v801
      %v898 = vpack.c.b16 %v806, %v804
      %v899 = vpack.c.b16 %v807, %v805
      %v900 = vpack.c.b16 %v810, %v808
      %v901 = vpack.c.b16 %v811, %v809
      %v902 = vpack.c.b16 %v814, %v812
      %v903 = vpack.c.b16 %v815, %v813
      %v904 = vpack.c.b16 %v818, %v816
      %v905 = vpack.c.b16 %v819, %v817
      %v906 = vpack.c.b16 %v822, %v820
      %v907 = vpack.c.b16 %v823, %v821
      %v908 = vpack.c.b16 %v826, %v824
      %v909 = vpack.c.b16 %v827, %v825
      %v910 = vpack.c.b16 %v830, %v828
      %v911 = vpack.c.b16 %v831, %v829
      %992 = vmatprep.subr.bf16.mxu0 %v833
      %993 = vmatpush1.bf16.msra.mxu0 %v832
      %994 = vmatprep.subr.bf16.mxu0 %v835
      %995 = vmatpush1.bf16.msra.mxu0 %v834
      %996 = vmatprep.subr.bf16.mxu0 %v837
      %997 = vmatpush1.bf16.msra.mxu0 %v836
      %998 = vmatprep.subr.bf16.mxu0 %v839
      %999 = vmatpush1.bf16.msra.mxu0 %v838
      %1000 = vmatprep.subr.bf16.mxu0 %v841
      %1001 = vmatpush1.bf16.msra.mxu0 %v840
      %1002 = vmatprep.subr.bf16.mxu0 %v843
      %1003 = vmatpush1.bf16.msra.mxu0 %v842
      %1004 = vmatprep.subr.bf16.mxu0 %v845
      %1005 = vmatpush1.bf16.msra.mxu0 %v844
      %1006 = vmatprep.subr.bf16.mxu0 %v847
      %1007 = vmatpush1.bf16.msra.mxu0 %v846
      %1008 = vmatprep.subr.bf16.mxu0 %v849
      %1009 = vmatpush1.bf16.msra.mxu0 %v848
      %1010 = vmatprep.subr.bf16.mxu0 %v851
      %1011 = vmatpush1.bf16.msra.mxu0 %v850
      %1012 = vmatprep.subr.bf16.mxu0 %v853
      %1013 = vmatpush1.bf16.msra.mxu0 %v852
      %1014 = vmatprep.subr.bf16.mxu0 %v855
      %1015 = vmatpush1.bf16.msra.mxu0 %v854
      %1016 = vmatprep.subr.bf16.mxu0 %v857
      %1017 = vmatpush1.bf16.msra.mxu0 %v856
      %1018 = vmatprep.subr.bf16.mxu0 %v859
      %1019 = vmatpush1.bf16.msra.mxu0 %v858
      %1020 = vmatprep.subr.bf16.mxu0 %v861
      %1021 = vmatpush1.bf16.msra.mxu0 %v860
      %1022 = vmatprep.subr.bf16.mxu0 %v863
      %1023 = vmatpush1.bf16.msra.mxu0 %v862
      %1024 = vmatprep.mubr.bf16.mxu0 %v513
      %1025 = vmatmul.mubr.bf16.gmra.mrb[0].mxu0 %v512
      %v1026 = vpop.f32.mrb[0].mxu0
      %v1027 = vadd.f32 %v377, %v1026
      %v1028 = vpop.f32.mrb[0].mxu0
      %v1029 = vadd.f32 %v381, %v1028
      %v1030 = vpop.f32.mrb[0].mxu0
      %v1031 = vadd.f32 %v377, %v1030
      %v1032 = vpop.f32.mrb[0].mxu0
      %v1033 = vadd.f32 %v381, %v1032
      %1034 = vmatprep.mubr.bf16.mxu0 %v518
      %1035 = vmatmul.mubr.bf16.gmra.mrb[0].mxu0 %v517
      %v1036 = vpop.f32.mrb[0].mxu0
      %v1037 = vadd.f32 %v377, %v1036
      %v1038 = vpop.f32.mrb[0].mxu0
      %v1039 = vadd.f32 %v381, %v1038
      %v1040 = vpop.f32.mrb[0].mxu0
      %v1041 = vadd.f32 %v377, %v1040
      %v1042 = vpop.f32.mrb[0].mxu0
      %v1043 = vadd.f32 %v381, %v1042
      %1044 = vmatprep.mubr.bf16.mxu0 %v523
      %1045 = vmatmul.mubr.bf16.gmra.mrb[0].mxu0 %v522
      %v1046 = vpop.f32.mrb[0].mxu0
      %v1047 = vadd.f32 %v377, %v1046
      %v1048 = vpop.f32.mrb[0].mxu0
      %v1049 = vadd.f32 %v381, %v1048
      %v1050 = vpop.f32.mrb[0].mxu0
      %v1051 = vadd.f32 %v377, %v1050
      %v1052 = vpop.f32.mrb[0].mxu0
      %v1053 = vadd.f32 %v381, %v1052
      %1054 = vmatprep.mubr.bf16.mxu0 %v528
      %1055 = vmatmul.mubr.bf16.gmra.mrb[0].mxu0 %v527
      %v1056 = vpop.f32.mrb[0].mxu0
      %v1057 = vadd.f32 %v377, %v1056
      %v1058 = vpop.f32.mrb[0].mxu0
      %v1059 = vadd.f32 %v381, %v1058
      %v1060 = vpop.f32.mrb[0].mxu0
      %v1061 = vadd.f32 %v377, %v1060
      %v1062 = vpop.f32.mrb[0].mxu0
      %v1063 = vadd.f32 %v381, %v1062
      %1064 = vmatprep.mubr.bf16.mxu0 %v533
      %1065 = vmatmul.mubr.bf16.gmra.mrb[0].mxu0 %v532
      %v1066 = vpop.f32.mrb[0].mxu0
      %v1067 = vadd.f32 %v377, %v1066
      %v1068 = vpop.f32.mrb[0].mxu0
      %v1069 = vadd.f32 %v381, %v1068
      %v1070 = vpop.f32.mrb[0].mxu0
      %v1071 = vadd.f32 %v377, %v1070
      %v1072 = vpop.f32.mrb[0].mxu0
      %v1073 = vadd.f32 %v381, %v1072
      %1074 = vmatprep.mubr.bf16.mxu0 %v538
      %1075 = vmatmul.mubr.bf16.gmra.mrb[0].mxu0 %v537
      %v1076 = vpop.f32.mrb[0].mxu0
      %v1077 = vadd.f32 %v377, %v1076
      %v1078 = vpop.f32.mrb[0].mxu0
      %v1079 = vadd.f32 %v381, %v1078
      %v1080 = vpop.f32.mrb[0].mxu0
      %v1081 = vadd.f32 %v377, %v1080
      %v1082 = vpop.f32.mrb[0].mxu0
      %v1083 = vadd.f32 %v381, %v1082
      %1084 = vmatprep.mubr.bf16.mxu0 %v543
      %1085 = vmatmul.mubr.bf16.gmra.mrb[0].mxu0 %v542
      %v1086 = vpop.f32.mrb[0].mxu0
      %v1087 = vadd.f32 %v377, %v1086
      %v1088 = vpop.f32.mrb[0].mxu0
      %v1089 = vadd.f32 %v381, %v1088
      %v1090 = vpop.f32.mrb[0].mxu0
      %v1091 = vadd.f32 %v377, %v1090
      %v1092 = vpop.f32.mrb[0].mxu0
      %v1093 = vadd.f32 %v381, %v1092
      %1094 = vmatprep.mubr.bf16.mxu0 %v548
      %1095 = vmatmul.mubr.bf16.gmra.mrb[0].mxu0 %v547
      %v1096 = vpop.f32.mrb[0].mxu0
      %v1097 = vadd.f32 %v377, %v1096
      %v1098 = vpop.f32.mrb[0].mxu0
      %v1099 = vadd.f32 %v381, %v1098
      %v1100 = vpop.f32.mrb[0].mxu0
      %v1101 = vadd.f32 %v377, %v1100
      %v1102 = vpop.f32.mrb[0].mxu0
      %v1103 = vadd.f32 %v381, %v1102
      %1104 = vdwg.mxu0
      %1105 = vmatprep.subr.bf16.mxu0 %v865
      %1106 = vmatpush1.bf16.msra.mxu0 %v864
      %1107 = vmatprep.subr.bf16.mxu0 %v867
      %1108 = vmatpush1.bf16.msra.mxu0 %v866
      %1109 = vmatprep.subr.bf16.mxu0 %v869
      %1110 = vmatpush1.bf16.msra.mxu0 %v868
      %1111 = vmatprep.subr.bf16.mxu0 %v871
      %1112 = vmatpush1.bf16.msra.mxu0 %v870
      %1113 = vmatprep.subr.bf16.mxu0 %v873
      %1114 = vmatpush1.bf16.msra.mxu0 %v872
      %1115 = vmatprep.subr.bf16.mxu0 %v875
      %1116 = vmatpush1.bf16.msra.mxu0 %v874
      %1117 = vmatprep.subr.bf16.mxu0 %v877
      %1118 = vmatpush1.bf16.msra.mxu0 %v876
      %1119 = vmatprep.subr.bf16.mxu0 %v879
      %1120 = vmatpush1.bf16.msra.mxu0 %v878
      %1121 = vmatprep.subr.bf16.mxu0 %v881
      %1122 = vmatpush1.bf16.msra.mxu0 %v880
      %1123 = vmatprep.subr.bf16.mxu0 %v883
      %1124 = vmatpush1.bf16.msra.mxu0 %v882
      %1125 = vmatprep.subr.bf16.mxu0 %v885
      %1126 = vmatpush1.bf16.msra.mxu0 %v884
      %1127 = vmatprep.subr.bf16.mxu0 %v887
      %1128 = vmatpush1.bf16.msra.mxu0 %v886
      %1129 = vmatprep.subr.bf16.mxu0 %v889
      %1130 = vmatpush1.bf16.msra.mxu0 %v888
      %1131 = vmatprep.subr.bf16.mxu0 %v891
      %1132 = vmatpush1.bf16.msra.mxu0 %v890
      %1133 = vmatprep.subr.bf16.mxu0 %v893
      %1134 = vmatpush1.bf16.msra.mxu0 %v892
      %1135 = vmatprep.subr.bf16.mxu0 %v895
      %1136 = vmatpush1.bf16.msra.mxu0 %v894
      %1137 = vmatprep.mubr.bf16.mxu0 %v515
      %1138 = vmatmul.mubr.bf16.gmra.mrb[0].mxu0 %v514
      %v1139 = vpop.f32.mrb[0].mxu0
      %v1140 = vadd.f32 %v1027, %v1139
      %v1141 = vpop.f32.mrb[0].mxu0
      %v1142 = vadd.f32 %v1029, %v1141
      %v1143 = vpop.f32.mrb[0].mxu0
      %v1144 = vadd.f32 %v1031, %v1143
      %v1145 = vpop.f32.mrb[0].mxu0
      %v1146 = vadd.f32 %v1033, %v1145
      %1147 = vmatprep.mubr.bf16.mxu0 %v520
      %1148 = vmatmul.mubr.bf16.gmra.mrb[0].mxu0 %v519
      %v1149 = vpop.f32.mrb[0].mxu0
      %v1150 = vadd.f32 %v1037, %v1149
      %v1151 = vpop.f32.mrb[0].mxu0
      %v1152 = vadd.f32 %v1039, %v1151
      %v1153 = vpop.f32.mrb[0].mxu0
      %v1154 = vadd.f32 %v1041, %v1153
      %v1155 = vpop.f32.mrb[0].mxu0
      %v1156 = vadd.f32 %v1043, %v1155
      %1157 = vmatprep.mubr.bf16.mxu0 %v525
      %1158 = vmatmul.mubr.bf16.gmra.mrb[0].mxu0 %v524
      %v1159 = vpop.f32.mrb[0].mxu0
      %v1160 = vadd.f32 %v1047, %v1159
      %v1161 = vpop.f32.mrb[0].mxu0
      %v1162 = vadd.f32 %v1049, %v1161
      %v1163 = vpop.f32.mrb[0].mxu0
      %v1164 = vadd.f32 %v1051, %v1163
      %v1165 = vpop.f32.mrb[0].mxu0
      %v1166 = vadd.f32 %v1053, %v1165
      %1167 = vmatprep.mubr.bf16.mxu0 %v530
      %1168 = vmatmul.mubr.bf16.gmra.mrb[0].mxu0 %v529
      %v1169 = vpop.f32.mrb[0].mxu0
      %v1170 = vadd.f32 %v1057, %v1169
      %v1171 = vpop.f32.mrb[0].mxu0
      %v1172 = vadd.f32 %v1059, %v1171
      %v1173 = vpop.f32.mrb[0].mxu0
      %v1174 = vadd.f32 %v1061, %v1173
      %v1175 = vpop.f32.mrb[0].mxu0
      %v1176 = vadd.f32 %v1063, %v1175
      %1177 = vmatprep.mubr.bf16.mxu0 %v535
      %1178 = vmatmul.mubr.bf16.gmra.mrb[0].mxu0 %v534
      %v1179 = vpop.f32.mrb[0].mxu0
      %v1180 = vadd.f32 %v1067, %v1179
      %v1181 = vpop.f32.mrb[0].mxu0
      %v1182 = vadd.f32 %v1069, %v1181
      %v1183 = vpop.f32.mrb[0].mxu0
      %v1184 = vadd.f32 %v1071, %v1183
      %v1185 = vpop.f32.mrb[0].mxu0
      %v1186 = vadd.f32 %v1073, %v1185
      %1187 = vmatprep.mubr.bf16.mxu0 %v540
      %1188 = vmatmul.mubr.bf16.gmra.mrb[0].mxu0 %v539
      %v1189 = vpop.f32.mrb[0].mxu0
      %v1190 = vadd.f32 %v1077, %v1189
      %v1191 = vpop.f32.mrb[0].mxu0
      %v1192 = vadd.f32 %v1079, %v1191
      %v1193 = vpop.f32.mrb[0].mxu0
      %v1194 = vadd.f32 %v1081, %v1193
      %v1195 = vpop.f32.mrb[0].mxu0
      %v1196 = vadd.f32 %v1083, %v1195
      %1197 = vmatprep.mubr.bf16.mxu0 %v545
      %1198 = vmatmul.mubr.bf16.gmra.mrb[0].mxu0 %v544
      %v1199 = vpop.f32.mrb[0].mxu0
      %v1200 = vadd.f32 %v1087, %v1199
      %v1201 = vpop.f32.mrb[0].mxu0
      %v1202 = vadd.f32 %v1089, %v1201
      %v1203 = vpop.f32.mrb[0].mxu0
      %v1204 = vadd.f32 %v1091, %v1203
      %v1205 = vpop.f32.mrb[0].mxu0
      %v1206 = vadd.f32 %v1093, %v1205
      %1207 = vmatprep.mubr.bf16.mxu0 %v550
      %1208 = vmatmul.mubr.bf16.gmra.mrb[0].mxu0 %v549
      %v1209 = vpop.f32.mrb[0].mxu0
      %v1210 = vadd.f32 %v1097, %v1209
      %v1211 = vpop.f32.mrb[0].mxu0
      %v1212 = vadd.f32 %v1099, %v1211
      %v1213 = vpop.f32.mrb[0].mxu0
      %v1214 = vadd.f32 %v1101, %v1213
      %v1215 = vpop.f32.mrb[0].mxu0
      %v1216 = vadd.f32 %v1103, %v1215
      %1217 = vdwg.mxu0
      %1218 = vmatprep.subr.bf16.mxu0 %v897
      %1219 = vmatpush1.bf16.msra.mxu0 %v896
      %1220 = vmatprep.subr.bf16.mxu0 %v899
      %1221 = vmatpush1.bf16.msra.mxu0 %v898
      %1222 = vmatprep.subr.bf16.mxu0 %v901
      %1223 = vmatpush1.bf16.msra.mxu0 %v900
      %1224 = vmatprep.subr.bf16.mxu0 %v903
      %1225 = vmatpush1.bf16.msra.mxu0 %v902
      %1226 = vmatprep.subr.bf16.mxu0 %v905
      %1227 = vmatpush1.bf16.msra.mxu0 %v904
      %1228 = vmatprep.subr.bf16.mxu0 %v907
      %1229 = vmatpush1.bf16.msra.mxu0 %v906
      %1230 = vmatprep.subr.bf16.mxu0 %v909
      %1231 = vmatpush1.bf16.msra.mxu0 %v908
      %1232 = vmatprep.subr.bf16.mxu0 %v911
      %1233 = vmatpush1.bf16.msra.mxu0 %v910
      %1234 = vmatprep.subr.bf16.mxu0 0
      %1235 = vmatpush1.bf16.msra.mxu0 0
      %1236 = vmatprep.subr.bf16.mxu0 0
      %1237 = vmatpush1.bf16.msra.mxu0 0
      %1238 = vmatprep.subr.bf16.mxu0 0
      %1239 = vmatpush1.bf16.msra.mxu0 0
      %1240 = vmatprep.subr.bf16.mxu0 0
      %1241 = vmatpush1.bf16.msra.mxu0 0
      %1242 = vmatprep.subr.bf16.mxu0 0
      %1243 = vmatpush1.bf16.msra.mxu0 0
      %1244 = vmatprep.subr.bf16.mxu0 0
      %1245 = vmatpush1.bf16.msra.mxu0 0
      %1246 = vmatprep.subr.bf16.mxu0 0
      %1247 = vmatpush1.bf16.msra.mxu0 0
      %1248 = vmatprep.subr.bf16.mxu0 0
      %1249 = vmatpush1.bf16.msra.mxu0 0
      %1250 = vmatprep.mubr.bf16.mxu0 0
      %1251 = vmatmul.mubr.bf16.gmra.mrb[0].mxu0 %v516
      %v1252 = vpop.f32.mrb[0].mxu0
      %v1253 = vadd.f32 %v1140, %v1252
      %v1254 = vpop.f32.mrb[0].mxu0
      %v1255 = vadd.f32 %v1142, %v1254
      %v1256 = vpop.f32.mrb[0].mxu0
      %v1257 = vadd.f32 %v1144, %v1256
      %v1258 = vpop.f32.mrb[0].mxu0
      %v1259 = vadd.f32 %v1146, %v1258
      %1260 = vmatprep.mubr.bf16.mxu0 0
      %1261 = vmatmul.mubr.bf16.gmra.mrb[0].mxu0 %v521
      %v1262 = vpop.f32.mrb[0].mxu0
      %v1263 = vadd.f32 %v1150, %v1262
      %v1264 = vpop.f32.mrb[0].mxu0
      %v1265 = vadd.f32 %v1152, %v1264
      %v1266 = vpop.f32.mrb[0].mxu0
      %v1267 = vadd.f32 %v1154, %v1266
      %v1268 = vpop.f32.mrb[0].mxu0
      %v1269 = vadd.f32 %v1156, %v1268
      %1270 = vmatprep.mubr.bf16.mxu0 0
      %1271 = vmatmul.mubr.bf16.gmra.mrb[0].mxu0 %v526
      %v1272 = vpop.f32.mrb[0].mxu0
      %v1273 = vadd.f32 %v1160, %v1272
      %v1274 = vpop.f32.mrb[0].mxu0
      %v1275 = vadd.f32 %v1162, %v1274
      %v1276 = vpop.f32.mrb[0].mxu0
      %v1277 = vadd.f32 %v1164, %v1276
      %v1278 = vpop.f32.mrb[0].mxu0
      %v1279 = vadd.f32 %v1166, %v1278
      %1280 = vmatprep.mubr.bf16.mxu0 0
      %1281 = vmatmul.mubr.bf16.gmra.mrb[0].mxu0 %v531
      %v1282 = vpop.f32.mrb[0].mxu0
      %v1283 = vadd.f32 %v1170, %v1282
      %v1284 = vpop.f32.mrb[0].mxu0
      %v1285 = vadd.f32 %v1172, %v1284
      %v1286 = vpop.f32.mrb[0].mxu0
      %v1287 = vadd.f32 %v1174, %v1286
      %v1288 = vpop.f32.mrb[0].mxu0
      %v1289 = vadd.f32 %v1176, %v1288
      %1290 = vmatprep.mubr.bf16.mxu0 0
      %1291 = vmatmul.mubr.bf16.gmra.mrb[0].mxu0 %v536
      %v1292 = vpop.f32.mrb[0].mxu0
      %v1293 = vadd.f32 %v1180, %v1292
      %v1294 = vpop.f32.mrb[0].mxu0
      %v1295 = vadd.f32 %v1182, %v1294
      %v1296 = vpop.f32.mrb[0].mxu0
      %v1297 = vadd.f32 %v1184, %v1296
      %v1298 = vpop.f32.mrb[0].mxu0
      %v1299 = vadd.f32 %v1186, %v1298
      %1300 = vmatprep.mubr.bf16.mxu0 0
      %1301 = vmatmul.mubr.bf16.gmra.mrb[0].mxu0 %v541
      %v1302 = vpop.f32.mrb[0].mxu0
      %v1303 = vadd.f32 %v1190, %v1302
      %v1304 = vpop.f32.mrb[0].mxu0
      %v1305 = vadd.f32 %v1192, %v1304
      %v1306 = vpop.f32.mrb[0].mxu0
      %v1307 = vadd.f32 %v1194, %v1306
      %v1308 = vpop.f32.mrb[0].mxu0
      %v1309 = vadd.f32 %v1196, %v1308
      %1310 = vmatprep.mubr.bf16.mxu0 0
      %1311 = vmatmul.mubr.bf16.gmra.mrb[0].mxu0 %v546
      %v1312 = vpop.f32.mrb[0].mxu0
      %v1313 = vadd.f32 %v1200, %v1312
      %v1314 = vpop.f32.mrb[0].mxu0
      %v1315 = vadd.f32 %v1202, %v1314
      %v1316 = vpop.f32.mrb[0].mxu0
      %v1317 = vadd.f32 %v1204, %v1316
      %v1318 = vpop.f32.mrb[0].mxu0
      %v1319 = vadd.f32 %v1206, %v1318
      %1320 = vmatprep.mubr.bf16.mxu0 0
      %1321 = vmatmul.mubr.bf16.gmra.mrb[0].mxu0 %v551
      %v1322 = vpop.f32.mrb[0].mxu0
      %v1323 = vadd.f32 %v1210, %v1322
      %v1324 = vpop.f32.mrb[0].mxu0
      %v1325 = vadd.f32 %v1212, %v1324
      %v1326 = vpop.f32.mrb[0].mxu0
      %v1327 = vadd.f32 %v1214, %v1326
      %v1328 = vpop.f32.mrb[0].mxu0
      %v1329 = vadd.f32 %v1216, %v1328
      %1330 = vdwg.mxu0
      %v1331 = vmax.f32 %v1253, 0.0
      %v1332 = vmax.f32 %v1255, 0.0
      %v1333 = vmax.f32 %v1257, 0.0
      %v1334 = vmax.f32 %v1259, 0.0
      %v1335 = vmax.f32 %v1263, 0.0
      %v1336 = vmax.f32 %v1265, 0.0
      %v1337 = vmax.f32 %v1267, 0.0
      %v1338 = vmax.f32 %v1269, 0.0
      %v1339 = vmax.f32 %v1273, 0.0
      %v1340 = vmax.f32 %v1275, 0.0
      %v1341 = vmax.f32 %v1277, 0.0
      %v1342 = vmax.f32 %v1279, 0.0
      %v1343 = vmax.f32 %v1283, 0.0
      %v1344 = vmax.f32 %v1285, 0.0
      %v1345 = vmax.f32 %v1287, 0.0
      %v1346 = vmax.f32 %v1289, 0.0
      %v1347 = vmax.f32 %v1293, 0.0
      %v1348 = vmax.f32 %v1295, 0.0
      %v1349 = vmax.f32 %v1297, 0.0
      %v1350 = vmax.f32 %v1299, 0.0
      %v1351 = vmax.f32 %v1303, 0.0
      %v1352 = vmax.f32 %v1305, 0.0
      %v1353 = vmax.f32 %v1307, 0.0
      %v1354 = vmax.f32 %v1309, 0.0
      %v1355 = vmax.f32 %v1313, 0.0
      %v1356 = vmax.f32 %v1315, 0.0
      %v1357 = vmax.f32 %v1317, 0.0
      %v1358 = vmax.f32 %v1319, 0.0
      %v1359 = vmax.f32 %v1323, 0.0
      %v1360 = vmax.f32 %v1325, 0.0
      %v1361 = vmax.f32 %v1327, 0.0
      %v1362 = vmax.f32 %v1329, 0.0
      %v1363 = vpack.c.bf16 %v1333, %v1331
      %v1364 = vpack.c.bf16 %v1334, %v1332
      %v1365 = vpack.c.bf16 %v1337, %v1335
      %v1366 = vpack.c.bf16 %v1338, %v1336
      %v1367 = vpack.c.bf16 %v1341, %v1339
      %v1368 = vpack.c.bf16 %v1342, %v1340
      %v1369 = vpack.c.bf16 %v1345, %v1343
      %v1370 = vpack.c.bf16 %v1346, %v1344
      %v1371 = vpack.c.bf16 %v1349, %v1347
      %v1372 = vpack.c.bf16 %v1350, %v1348
      %v1373 = vpack.c.bf16 %v1353, %v1351
      %v1374 = vpack.c.bf16 %v1354, %v1352
      %v1375 = vpack.c.bf16 %v1357, %v1355
      %v1376 = vpack.c.bf16 %v1358, %v1356
      %v1377 = vpack.c.bf16 %v1361, %v1359
      %v1378 = vpack.c.bf16 %v1362, %v1360
      %v1395 = vunpack.c.l.b16 %v1363
      %v1396 = vunpack.c.l.b16 %v1364
      %v1397 = vunpack.c.h.b16 %v1363
      %v1398 = vunpack.c.h.b16 %v1364
      %v1399 = vunpack.c.l.b16 %v1365
      %v1400 = vunpack.c.l.b16 %v1366
      %v1401 = vunpack.c.h.b16 %v1365
      %v1402 = vunpack.c.h.b16 %v1366
      %v1403 = vunpack.c.l.b16 %v1367
      %v1404 = vunpack.c.l.b16 %v1368
      %v1405 = vunpack.c.h.b16 %v1367
      %v1406 = vunpack.c.h.b16 %v1368
      %v1407 = vunpack.c.l.b16 %v1369
      %v1408 = vunpack.c.l.b16 %v1370
      %v1409 = vunpack.c.h.b16 %v1369
      %v1410 = vunpack.c.h.b16 %v1370
      %v1411 = vunpack.c.l.b16 %v1371
      %v1412 = vunpack.c.l.b16 %v1372
      %v1413 = vunpack.c.h.b16 %v1371
      %v1414 = vunpack.c.h.b16 %v1372
      %v1415 = vunpack.c.l.b16 %v1373
      %v1416 = vunpack.c.l.b16 %v1374
      %v1417 = vunpack.c.h.b16 %v1373
      %v1418 = vunpack.c.h.b16 %v1374
      %v1419 = vunpack.c.l.b16 %v1375
      %v1420 = vunpack.c.l.b16 %v1376
      %v1421 = vunpack.c.h.b16 %v1375
      %v1422 = vunpack.c.h.b16 %v1376
      %v1423 = vunpack.c.l.b16 %v1377
      %v1424 = vunpack.c.l.b16 %v1378
      %v1425 = vunpack.c.h.b16 %v1377
      %v1426 = vunpack.c.h.b16 %v1378
      %v1427 = vpack.c.b16 %v1396, %v1395
      %v1428 = vpack.c.b16 %v1398, %v1397
      %v1429 = vpack.c.b16 %v1400, %v1399
      %v1430 = vpack.c.b16 %v1402, %v1401
      %v1431 = vpack.c.b16 %v1404, %v1403
      %v1432 = vpack.c.b16 %v1406, %v1405
      %v1433 = vpack.c.b16 %v1408, %v1407
      %v1434 = vpack.c.b16 %v1410, %v1409
      %v1435 = vpack.c.b16 %v1412, %v1411
      %v1436 = vpack.c.b16 %v1414, %v1413
      %v1437 = vpack.c.b16 %v1416, %v1415
      %v1438 = vpack.c.b16 %v1418, %v1417
      %v1439 = vpack.c.b16 %v1420, %v1419
      %v1440 = vpack.c.b16 %v1422, %v1421
      %v1441 = vpack.c.b16 %v1424, %v1423
      %v1442 = vpack.c.b16 %v1426, %v1425
      %1459 = vst [vmem:[%s240] sm:$0xff] %v1427
      %1460 = vst [vmem:[%s240 + $0x8] sm:$0xff] %v1428
      %1461 = vst [vmem:[%s240 + $0x10] sm:$0xff] %v1429
      %1462 = vst [vmem:[%s240 + $0x18] sm:$0xff] %v1430
      %1463 = vst [vmem:[%s240 + $0x20] sm:$0xff] %v1431
      %1464 = vst [vmem:[%s240 + $0x28] sm:$0xff] %v1432
      %1465 = vst [vmem:[%s240 + $0x30] sm:$0xff] %v1433
      %1466 = vst [vmem:[%s240 + $0x38] sm:$0xff] %v1434
      %1467 = vst [vmem:[%s240 + $0x40] sm:$0xff] %v1435
      %1468 = vst [vmem:[%s240 + $0x48] sm:$0xff] %v1436
      %1469 = vst [vmem:[%s240 + $0x50] sm:$0xff] %v1437
      %1470 = vst [vmem:[%s240 + $0x58] sm:$0xff] %v1438
      %1471 = vst [vmem:[%s240 + $0x60] sm:$0xff] %v1439
      %1472 = vst [vmem:[%s240 + $0x68] sm:$0xff] %v1440
      %1473 = vst [vmem:[%s240 + $0x70] sm:$0xff] %v1441
      %1474 = vst [vmem:[%s240 + $0x78] sm:$0xff] %v1442
      %s1475 = smul.u32 16, %s18
      %s1476 = smul.u32 2, %s19
      %p1477 = scmp.lt.s32.totalorder %s1475, 63
      %s1478 = scalar_select %p1477, %s1475, 63
      %p1479 = scmp.lt.s32.totalorder %s1476, 1
      %s1480 = scalar_select %p1479, %s1476, 1
      %s1481 = smul.addr %s1478, 2
      %s1482 = sadd.s32 %s1480, %s1481
      %s1483 = smul.addr %s1482, 4
      %s1484 = scalar_lea.vmem %s3, %s1483
      // Predicated region
      $region33: #{inception_d.7} parent=31 // pred_check
        %p1485 = pneg %p124
      $region34: #{inception_d.7} parent=31 // pred_check_branch
        %1487 = sbr.rel (%p1485) target = $region36
      $region35: #{inception_d.7} parent=31 // pred_region
        %s1488 = smul.u32 16, %s18
        %s1489 = smul.u32 2, %s19
      $region36: #{inception_d.7} parent=31 // pred_fallthru
        _
    $region32: #{inception_d.7} parent=5 // pred_fallthru
      _
    %p1490 = scmp.le.s32.totalorder 2, %s9
    // Predicated region
    $region37: #{inception_d.7} parent=5 // pred_check
      %p1491 = pneg %p1490
    $region38: #{inception_d.7} parent=5 // pred_check_branch
      %1493 = sbr.rel (%p1491) target = $region40
    $region39: #{inception_d.7} parent=5 // pred_region
      %s1494 = ssub.s32 %s9, 2
      // Predicated region
      $region41: #{inception_d.7} parent=39 // pred_check
        %p1495 = pneg %p130
      $region42: #{inception_d.7} parent=39 // pred_check_branch
        %1497 = sbr.rel (%p1495) target = $region44
      $region43: #{inception_d.7} parent=39 // pred_region
        %s1498 = smul.u32 16, %s20
        %s1499 = smul.u32 2, %s21
        %p1500 = scmp.lt.s32.totalorder %s1498, 63
        %s1501 = scalar_select %p1500, %s1498, 63
        %p1502 = scmp.lt.s32.totalorder %s1499, 1
        %s1503 = scalar_select %p1502, %s1499, 1
        %s1504 = smul.addr %s1501, 2
        %s1505 = sadd.s32 %s1503, %s1504
        %s1506 = smul.addr %s1505, 4
        %s1507 = scalar_lea.vmem %s3, %s1506
      $region44: #{inception_d.7} parent=39 // pred_fallthru
        _
    $region40: #{inception_d.7} parent=5 // pred_fallthru
      _
  $region6: #{inception_d.7} parent=0 // loop_footer
    %s13 = sadd.s32 1, %s9
  $region7: #{inception_d.7} parent=0 // loop_footer_branch
    %8 = sbr.rel target = $region3
  $region8: #{inception_d.7} parent=0 // loop_exit
    _

// kernel: inception_d.8
$region0: #{inception_d.8}
  #allocation0 [shape = 'u32[]', space=smem, size = 0x4, offset = 0x4, fixed_abs, tag = 'smem constant byte address 0x4 - core index']
  #allocation1 [shape = 'u32[144,128]{1,0:T(1,128)}', space=vmem, size = 0x12000, scoped, tag = 'internal scratch']
  %s0 = inlined_call_operand.vmem [shape: bf16[112,1664], index: 0, kind: input, shape index: {}]
  %s1 = inlined_call_operand.vmem [shape: bf16[1664,256], index: 1, kind: input, shape index: {}]
  %s2 = inlined_call_operand.vmem [shape: f32[1,256], index: 2, kind: input, shape index: {}]
  %s3 = inlined_call_operand.vmem [shape: f32[112,256], index: 3, kind: output, shape index: {}]
  %s4 = sld [smem:[#allocation0]]
  $region22: #{inception_d.8} parent=0
    _
  %s6 = ssub.s32 1, %s4
  %s7 = scalar_select 0, %s6, %s4
  // Predicated region
  $region2: #{inception_d.8} parent=0 // pred_check
    _
  $region3: #{inception_d.8} parent=0 // pred_check_branch
    %9 = sbr.rel (0) target = $region5
  $region4: #{inception_d.8} parent=0 // pred_region
    _
  $region5: #{inception_d.8} parent=0 // pred_fallthru
    _
  // Predicated region
  $region6: #{inception_d.8} parent=0 // pred_check
    _
  $region7: #{inception_d.8} parent=0 // pred_check_branch
    %11 = sbr.rel (0) target = $region9
  $region8: #{inception_d.8} parent=0 // pred_region
    _
  $region9: #{inception_d.8} parent=0 // pred_fallthru
    _
  // Predicated region
  $region10: #{inception_d.8} parent=0 // pred_check
    _
  $region11: #{inception_d.8} parent=0 // pred_check_branch
    %13 = sbr.rel (0) target = $region13
  $region12: #{inception_d.8} parent=0 // pred_region
    _
  $region13: #{inception_d.8} parent=0 // pred_fallthru
    _
  %v15 = vld [vmem:[%s0] sm:$0xff]
  %v16 = vld [vmem:[%s0 + $0x8] sm:$0xff]
  %v17 = vld [vmem:[%s0 + $0x10] sm:$0xff]
  %v18 = vld [vmem:[%s0 + $0x18] sm:$0xff]
  %v19 = vld [vmem:[%s0 + $0x20] sm:$0xff]
  %v20 = vld [vmem:[%s0 + $0x28] sm:$0xff]
  %v21 = vld [vmem:[%s0 + $0x30] sm:$0xf]
  %v22 = vld [vmem:[%s0 + $0x34] sm:$0xff]
  %v23 = vld [vmem:[%s0 + $0x3c] sm:$0xff]
  %v24 = vld [vmem:[%s0 + $0x44] sm:$0xff]
  %v25 = vld [vmem:[%s0 + $0x4c] sm:$0xff]
  %v26 = vld [vmem:[%s0 + $0x54] sm:$0xff]
  %v27 = vld [vmem:[%s0 + $0x5c] sm:$0xff]
  %v28 = vld [vmem:[%s0 + $0x64] sm:$0xf]
  %v29 = vld [vmem:[%s0 + $0x68] sm:$0xff]
  %v30 = vld [vmem:[%s0 + $0x70] sm:$0xff]
  %v31 = vld [vmem:[%s0 + $0x78] sm:$0xff]
  %v32 = vld [vmem:[%s0 + $0x80] sm:$0xff]
  %v33 = vld [vmem:[%s0 + $0x88] sm:$0xff]
  %v34 = vld [vmem:[%s0 + $0x90] sm:$0xff]
  %v35 = vld [vmem:[%s0 + $0x98] sm:$0xf]
  %v36 = vld [vmem:[%s0 + $0x9c] sm:$0xff]
  %v37 = vld [vmem:[%s0 + $0xa4] sm:$0xff]
  %v38 = vld [vmem:[%s0 + $0xac] sm:$0xff]
  %v39 = vld [vmem:[%s0 + $0xb4] sm:$0xff]
  %v40 = vld [vmem:[%s0 + $0xbc] sm:$0xff]
  %v41 = vld [vmem:[%s0 + $0xc4] sm:$0xff]
  %v42 = vld [vmem:[%s0 + $0xcc] sm:$0xf]
  %v43 = vld [vmem:[%s0 + $0xd0] sm:$0xff]
  %v44 = vld [vmem:[%s0 + $0xd8] sm:$0xff]
  %v45 = vld [vmem:[%s0 + $0xe0] sm:$0xff]
  %v46 = vld [vmem:[%s0 + $0xe8] sm:$0xff]
  %v47 = vld [vmem:[%s0 + $0xf0] sm:$0xff]
  %v48 = vld [vmem:[%s0 + $0xf8] sm:$0xff]
  %v49 = vld [vmem:[%s0 + $0x100] sm:$0xf]
  %v50 = vld [vmem:[%s0 + $0x104] sm:$0xff]
  %v51 = vld [vmem:[%s0 + $0x10c] sm:$0xff]
  %v52 = vld [vmem:[%s0 + $0x114] sm:$0xff]
  %v53 = vld [vmem:[%s0 + $0x11c] sm:$0xff]
  %v54 = vld [vmem:[%s0 + $0x124] sm:$0xff]
  %v55 = vld [vmem:[%s0 + $0x12c] sm:$0xff]
  %v56 = vld [vmem:[%s0 + $0x134] sm:$0xf]
  %v57 = vld [vmem:[%s0 + $0x138] sm:$0xff]
  %v58 = vld [vmem:[%s0 + $0x140] sm:$0xff]
  %v59 = vld [vmem:[%s0 + $0x148] sm:$0xff]
  %v60 = vld [vmem:[%s0 + $0x150] sm:$0xff]
  %v61 = vld [vmem:[%s0 + $0x158] sm:$0xff]
  %v62 = vld [vmem:[%s0 + $0x160] sm:$0xff]
  %v63 = vld [vmem:[%s0 + $0x168] sm:$0xf]
  %v64 = vld [vmem:[%s0 + $0x16c] sm:$0xff]
  %v65 = vld [vmem:[%s0 + $0x174] sm:$0xff]
  %v66 = vld [vmem:[%s0 + $0x17c] sm:$0xff]
  %v67 = vld [vmem:[%s0 + $0x184] sm:$0xff]
  %v68 = vld [vmem:[%s0 + $0x18c] sm:$0xff]
  %v69 = vld [vmem:[%s0 + $0x194] sm:$0xff]
  %v70 = vld [vmem:[%s0 + $0x19c] sm:$0xf]
  %v71 = vld [vmem:[%s0 + $0x1a0] sm:$0xff]
  %v72 = vld [vmem:[%s0 + $0x1a8] sm:$0xff]
  %v73 = vld [vmem:[%s0 + $0x1b0] sm:$0xff]
  %v74 = vld [vmem:[%s0 + $0x1b8] sm:$0xff]
  %v75 = vld [vmem:[%s0 + $0x1c0] sm:$0xff]
  %v76 = vld [vmem:[%s0 + $0x1c8] sm:$0xff]
  %v77 = vld [vmem:[%s0 + $0x1d0] sm:$0xf]
  %v78 = vld [vmem:[%s0 + $0x1d4] sm:$0xff]
  %v79 = vld [vmem:[%s0 + $0x1dc] sm:$0xff]
  %v80 = vld [vmem:[%s0 + $0x1e4] sm:$0xff]
  %v81 = vld [vmem:[%s0 + $0x1ec] sm:$0xff]
  %v82 = vld [vmem:[%s0 + $0x1f4] sm:$0xff]
  %v83 = vld [vmem:[%s0 + $0x1fc] sm:$0xff]
  %v84 = vld [vmem:[%s0 + $0x204] sm:$0xf]
  %v85 = vld [vmem:[%s0 + $0x208] sm:$0xff]
  %v86 = vld [vmem:[%s0 + $0x210] sm:$0xff]
  %v87 = vld [vmem:[%s0 + $0x218] sm:$0xff]
  %v88 = vld [vmem:[%s0 + $0x220] sm:$0xff]
  %v89 = vld [vmem:[%s0 + $0x228] sm:$0xff]
  %v90 = vld [vmem:[%s0 + $0x230] sm:$0xff]
  %v91 = vld [vmem:[%s0 + $0x238] sm:$0xf]
  %v92 = vld [vmem:[%s0 + $0x23c] sm:$0xff]
  %v93 = vld [vmem:[%s0 + $0x244] sm:$0xff]
  %v94 = vld [vmem:[%s0 + $0x24c] sm:$0xff]
  %v95 = vld [vmem:[%s0 + $0x254] sm:$0xff]
  %v96 = vld [vmem:[%s0 + $0x25c] sm:$0xff]
  %v97 = vld [vmem:[%s0 + $0x264] sm:$0xff]
  %v98 = vld [vmem:[%s0 + $0x26c] sm:$0xf]
  %v99 = vld [vmem:[%s0 + $0x270] sm:$0xff]
  %v100 = vld [vmem:[%s0 + $0x278] sm:$0xff]
  %v101 = vld [vmem:[%s0 + $0x280] sm:$0xff]
  %v102 = vld [vmem:[%s0 + $0x288] sm:$0xff]
  %v103 = vld [vmem:[%s0 + $0x290] sm:$0xff]
  %v104 = vld [vmem:[%s0 + $0x298] sm:$0xff]
  %v105 = vld [vmem:[%s0 + $0x2a0] sm:$0xf]
  %v106 = vld [vmem:[%s0 + $0x2a4] sm:$0xff]
  %v107 = vld [vmem:[%s0 + $0x2ac] sm:$0xff]
  %v108 = vld [vmem:[%s0 + $0x2b4] sm:$0xff]
  %v109 = vld [vmem:[%s0 + $0x2bc] sm:$0xff]
  %v110 = vld [vmem:[%s0 + $0x2c4] sm:$0xff]
  %v111 = vld [vmem:[%s0 + $0x2cc] sm:$0xff]
  %v112 = vld [vmem:[%s0 + $0x2d4] sm:$0xf]
  %v113 = vld [vmem:[%s1] sm:$0xff]
  %v114 = vld [vmem:[%s1 + $0x8] sm:$0xff]
  %v115 = vld [vmem:[%s1 + $0x10] sm:$0xff]
  %v116 = vld [vmem:[%s1 + $0x18] sm:$0xff]
  %v117 = vld [vmem:[%s1 + $0x20] sm:$0xff]
  %v118 = vld [vmem:[%s1 + $0x28] sm:$0xff]
  %v119 = vld [vmem:[%s1 + $0x30] sm:$0xff]
  %v120 = vld [vmem:[%s1 + $0x38] sm:$0xff]
  %v121 = vld [vmem:[%s1 + $0x40] sm:$0xff]
  %v122 = vld [vmem:[%s1 + $0x48] sm:$0xff]
  %v123 = vld [vmem:[%s1 + $0x50] sm:$0xff]
  %v124 = vld [vmem:[%s1 + $0x58] sm:$0xff]
  %v125 = vld [vmem:[%s1 + $0x60] sm:$0xff]
  %v126 = vld [vmem:[%s1 + $0x68] sm:$0xff]
  %v127 = vld [vmem:[%s1 + $0x70] sm:$0xff]
  %v128 = vld [vmem:[%s1 + $0x78] sm:$0xff]
  %v129 = vld [vmem:[%s1 + $0x80] sm:$0xff]
  %v130 = vld [vmem:[%s1 + $0x88] sm:$0xff]
  %v131 = vld [vmem:[%s1 + $0x90] sm:$0xff]
  %v132 = vld [vmem:[%s1 + $0x98] sm:$0xff]
  %v133 = vld [vmem:[%s1 + $0xa0] sm:$0xff]
  %v134 = vld [vmem:[%s1 + $0xa8] sm:$0xff]
  %v135 = vld [vmem:[%s1 + $0xb0] sm:$0xff]
  %v136 = vld [vmem:[%s1 + $0xb8] sm:$0xff]
  %v137 = vld [vmem:[%s1 + $0xc0] sm:$0xff]
  %v138 = vld [vmem:[%s1 + $0xc8] sm:$0xff]
  %v139 = vld [vmem:[%s1 + $0xd0] sm:$0xff]
  %v140 = vld [vmem:[%s1 + $0xd8] sm:$0xff]
  %v141 = vld [vmem:[%s1 + $0xe0] sm:$0xff]
  %v142 = vld [vmem:[%s1 + $0xe8] sm:$0xff]
  %v143 = vld [vmem:[%s1 + $0xf0] sm:$0xff]
  %v144 = vld [vmem:[%s1 + $0xf8] sm:$0xff]
  %v145 = vld [vmem:[%s1 + $0x100] sm:$0xff]
  %v146 = vld [vmem:[%s1 + $0x108] sm:$0xff]
  %v147 = vld [vmem:[%s1 + $0x110] sm:$0xff]
  %v148 = vld [vmem:[%s1 + $0x118] sm:$0xff]
  %v149 = vld [vmem:[%s1 + $0x120] sm:$0xff]
  %v150 = vld [vmem:[%s1 + $0x128] sm:$0xff]
  %v151 = vld [vmem:[%s1 + $0x130] sm:$0xff]
  %v152 = vld [vmem:[%s1 + $0x138] sm:$0xff]
  %v153 = vld [vmem:[%s1 + $0x140] sm:$0xff]
  %v154 = vld [vmem:[%s1 + $0x148] sm:$0xff]
  %v155 = vld [vmem:[%s1 + $0x150] sm:$0xff]
  %v156 = vld [vmem:[%s1 + $0x158] sm:$0xff]
  %v157 = vld [vmem:[%s1 + $0x160] sm:$0xff]
  %v158 = vld [vmem:[%s1 + $0x168] sm:$0xff]
  %v159 = vld [vmem:[%s1 + $0x170] sm:$0xff]
  %v160 = vld [vmem:[%s1 + $0x178] sm:$0xff]
  %v161 = vld [vmem:[%s1 + $0x180] sm:$0xff]
  %v162 = vld [vmem:[%s1 + $0x188] sm:$0xff]
  %v163 = vld [vmem:[%s1 + $0x190] sm:$0xff]
  %v164 = vld [vmem:[%s1 + $0x198] sm:$0xff]
  %v165 = vld [vmem:[%s1 + $0x1a0] sm:$0xff]
  %v166 = vld [vmem:[%s1 + $0x1a8] sm:$0xff]
  %v167 = vld [vmem:[%s1 + $0x1b0] sm:$0xff]
  %v168 = vld [vmem:[%s1 + $0x1b8] sm:$0xff]
  %v169 = vld [vmem:[%s1 + $0x1c0] sm:$0xff]
  %v170 = vld [vmem:[%s1 + $0x1c8] sm:$0xff]
  %v171 = vld [vmem:[%s1 + $0x1d0] sm:$0xff]
  %v172 = vld [vmem:[%s1 + $0x1d8] sm:$0xff]
  %v173 = vld [vmem:[%s1 + $0x1e0] sm:$0xff]
  %v174 = vld [vmem:[%s1 + $0x1e8] sm:$0xff]
  %v175 = vld [vmem:[%s1 + $0x1f0] sm:$0xff]
  %v176 = vld [vmem:[%s1 + $0x1f8] sm:$0xff]
  %v177 = vld [vmem:[%s1 + $0x200] sm:$0xff]
  %v178 = vld [vmem:[%s1 + $0x208] sm:$0xff]
  %v179 = vld [vmem:[%s1 + $0x210] sm:$0xff]
  %v180 = vld [vmem:[%s1 + $0x218] sm:$0xff]
  %v181 = vld [vmem:[%s1 + $0x220] sm:$0xff]
  %v182 = vld [vmem:[%s1 + $0x228] sm:$0xff]
  %v183 = vld [vmem:[%s1 + $0x230] sm:$0xff]
  %v184 = vld [vmem:[%s1 + $0x238] sm:$0xff]
  %v185 = vld [vmem:[%s1 + $0x240] sm:$0xff]
  %v186 = vld [vmem:[%s1 + $0x248] sm:$0xff]
  %v187 = vld [vmem:[%s1 + $0x250] sm:$0xff]
  %v188 = vld [vmem:[%s1 + $0x258] sm:$0xff]
  %v189 = vld [vmem:[%s1 + $0x260] sm:$0xff]
  %v190 = vld [vmem:[%s1 + $0x268] sm:$0xff]
  %v191 = vld [vmem:[%s1 + $0x270] sm:$0xff]
  %v192 = vld [vmem:[%s1 + $0x278] sm:$0xff]
  %v193 = vld [vmem:[%s1 + $0x280] sm:$0xff]
  %v194 = vld [vmem:[%s1 + $0x288] sm:$0xff]
  %v195 = vld [vmem:[%s1 + $0x290] sm:$0xff]
  %v196 = vld [vmem:[%s1 + $0x298] sm:$0xff]
  %v197 = vld [vmem:[%s1 + $0x2a0] sm:$0xff]
  %v198 = vld [vmem:[%s1 + $0x2a8] sm:$0xff]
  %v199 = vld [vmem:[%s1 + $0x2b0] sm:$0xff]
  %v200 = vld [vmem:[%s1 + $0x2b8] sm:$0xff]
  %v201 = vld [vmem:[%s1 + $0x2c0] sm:$0xff]
  %v202 = vld [vmem:[%s1 + $0x2c8] sm:$0xff]
  %v203 = vld [vmem:[%s1 + $0x2d0] sm:$0xff]
  %v204 = vld [vmem:[%s1 + $0x2d8] sm:$0xff]
  %v205 = vld [vmem:[%s1 + $0x2e0] sm:$0xff]
  %v206 = vld [vmem:[%s1 + $0x2e8] sm:$0xff]
  %v207 = vld [vmem:[%s1 + $0x2f0] sm:$0xff]
  %v208 = vld [vmem:[%s1 + $0x2f8] sm:$0xff]
  %v209 = vld [vmem:[%s1 + $0x300] sm:$0xff]
  %v210 = vld [vmem:[%s1 + $0x308] sm:$0xff]
  %v211 = vld [vmem:[%s1 + $0x310] sm:$0xff]
  %v212 = vld [vmem:[%s1 + $0x318] sm:$0xff]
  %v213 = vld [vmem:[%s1 + $0x320] sm:$0xff]
  %v214 = vld [vmem:[%s1 + $0x328] sm:$0xff]
  %v215 = vld [vmem:[%s1 + $0x330] sm:$0xff]
  %v216 = vld [vmem:[%s1 + $0x338] sm:$0xff]
  %v217 = vld [vmem:[%s1 + $0x340] sm:$0xff]
  %v218 = vld [vmem:[%s1 + $0x348] sm:$0xff]
  %v219 = vld [vmem:[%s1 + $0x350] sm:$0xff]
  %v220 = vld [vmem:[%s1 + $0x358] sm:$0xff]
  %v221 = vld [vmem:[%s1 + $0x360] sm:$0xff]
  %v222 = vld [vmem:[%s1 + $0x368] sm:$0xff]
  %v223 = vld [vmem:[%s1 + $0x370] sm:$0xff]
  %v224 = vld [vmem:[%s1 + $0x378] sm:$0xff]
  %v225 = vld [vmem:[%s1 + $0x380] sm:$0xff]
  %v226 = vld [vmem:[%s1 + $0x388] sm:$0xff]
  %v227 = vld [vmem:[%s1 + $0x390] sm:$0xff]
  %v228 = vld [vmem:[%s1 + $0x398] sm:$0xff]
  %v229 = vld [vmem:[%s1 + $0x3a0] sm:$0xff]
  %v230 = vld [vmem:[%s1 + $0x3a8] sm:$0xff]
  %v231 = vld [vmem:[%s1 + $0x3b0] sm:$0xff]
  %v232 = vld [vmem:[%s1 + $0x3b8] sm:$0xff]
  %v233 = vld [vmem:[%s1 + $0x3c0] sm:$0xff]
  %v234 = vld [vmem:[%s1 + $0x3c8] sm:$0xff]
  %v235 = vld [vmem:[%s1 + $0x3d0] sm:$0xff]
  %v236 = vld [vmem:[%s1 + $0x3d8] sm:$0xff]
  %v237 = vld [vmem:[%s1 + $0x3e0] sm:$0xff]
  %v238 = vld [vmem:[%s1 + $0x3e8] sm:$0xff]
  %v239 = vld [vmem:[%s1 + $0x3f0] sm:$0xff]
  %v240 = vld [vmem:[%s1 + $0x3f8] sm:$0xff]
  %v241 = vld [vmem:[%s1 + $0x400] sm:$0xff]
  %v242 = vld [vmem:[%s1 + $0x408] sm:$0xff]
  %v243 = vld [vmem:[%s1 + $0x410] sm:$0xff]
  %v244 = vld [vmem:[%s1 + $0x418] sm:$0xff]
  %v245 = vld [vmem:[%s1 + $0x420] sm:$0xff]
  %v246 = vld [vmem:[%s1 + $0x428] sm:$0xff]
  %v247 = vld [vmem:[%s1 + $0x430] sm:$0xff]
  %v248 = vld [vmem:[%s1 + $0x438] sm:$0xff]
  %v249 = vld [vmem:[%s1 + $0x440] sm:$0xff]
  %v250 = vld [vmem:[%s1 + $0x448] sm:$0xff]
  %v251 = vld [vmem:[%s1 + $0x450] sm:$0xff]
  %v252 = vld [vmem:[%s1 + $0x458] sm:$0xff]
  %v253 = vld [vmem:[%s1 + $0x460] sm:$0xff]
  %v254 = vld [vmem:[%s1 + $0x468] sm:$0xff]
  %v255 = vld [vmem:[%s1 + $0x470] sm:$0xff]
  %v256 = vld [vmem:[%s1 + $0x478] sm:$0xff]
  %v257 = vld [vmem:[%s1 + $0x480] sm:$0xff]
  %v258 = vld [vmem:[%s1 + $0x488] sm:$0xff]
  %v259 = vld [vmem:[%s1 + $0x490] sm:$0xff]
  %v260 = vld [vmem:[%s1 + $0x498] sm:$0xff]
  %v261 = vld [vmem:[%s1 + $0x4a0] sm:$0xff]
  %v262 = vld [vmem:[%s1 + $0x4a8] sm:$0xff]
  %v263 = vld [vmem:[%s1 + $0x4b0] sm:$0xff]
  %v264 = vld [vmem:[%s1 + $0x4b8] sm:$0xff]
  %v265 = vld [vmem:[%s1 + $0x4c0] sm:$0xff]
  %v266 = vld [vmem:[%s1 + $0x4c8] sm:$0xff]
  %v267 = vld [vmem:[%s1 + $0x4d0] sm:$0xff]
  %v268 = vld [vmem:[%s1 + $0x4d8] sm:$0xff]
  %v269 = vld [vmem:[%s1 + $0x4e0] sm:$0xff]
  %v270 = vld [vmem:[%s1 + $0x4e8] sm:$0xff]
  %v271 = vld [vmem:[%s1 + $0x4f0] sm:$0xff]
  %v272 = vld [vmem:[%s1 + $0x4f8] sm:$0xff]
  %v273 = vld [vmem:[%s1 + $0x500] sm:$0xff]
  %v274 = vld [vmem:[%s1 + $0x508] sm:$0xff]
  %v275 = vld [vmem:[%s1 + $0x510] sm:$0xff]
  %v276 = vld [vmem:[%s1 + $0x518] sm:$0xff]
  %v277 = vld [vmem:[%s1 + $0x520] sm:$0xff]
  %v278 = vld [vmem:[%s1 + $0x528] sm:$0xff]
  %v279 = vld [vmem:[%s1 + $0x530] sm:$0xff]
  %v280 = vld [vmem:[%s1 + $0x538] sm:$0xff]
  %v281 = vld [vmem:[%s1 + $0x540] sm:$0xff]
  %v282 = vld [vmem:[%s1 + $0x548] sm:$0xff]
  %v283 = vld [vmem:[%s1 + $0x550] sm:$0xff]
  %v284 = vld [vmem:[%s1 + $0x558] sm:$0xff]
  %v285 = vld [vmem:[%s1 + $0x560] sm:$0xff]
  %v286 = vld [vmem:[%s1 + $0x568] sm:$0xff]
  %v287 = vld [vmem:[%s1 + $0x570] sm:$0xff]
  %v288 = vld [vmem:[%s1 + $0x578] sm:$0xff]
  %v289 = vld [vmem:[%s1 + $0x580] sm:$0xff]
  %v290 = vld [vmem:[%s1 + $0x588] sm:$0xff]
  %v291 = vld [vmem:[%s1 + $0x590] sm:$0xff]
  %v292 = vld [vmem:[%s1 + $0x598] sm:$0xff]
  %v293 = vld [vmem:[%s1 + $0x5a0] sm:$0xff]
  %v294 = vld [vmem:[%s1 + $0x5a8] sm:$0xff]
  %v295 = vld [vmem:[%s1 + $0x5b0] sm:$0xff]
  %v296 = vld [vmem:[%s1 + $0x5b8] sm:$0xff]
  %v297 = vld [vmem:[%s1 + $0x5c0] sm:$0xff]
  %v298 = vld [vmem:[%s1 + $0x5c8] sm:$0xff]
  %v299 = vld [vmem:[%s1 + $0x5d0] sm:$0xff]
  %v300 = vld [vmem:[%s1 + $0x5d8] sm:$0xff]
  %v301 = vld [vmem:[%s1 + $0x5e0] sm:$0xff]
  %v302 = vld [vmem:[%s1 + $0x5e8] sm:$0xff]
  %v303 = vld [vmem:[%s1 + $0x5f0] sm:$0xff]
  %v304 = vld [vmem:[%s1 + $0x5f8] sm:$0xff]
  %v305 = vld [vmem:[%s1 + $0x600] sm:$0xff]
  %v306 = vld [vmem:[%s1 + $0x608] sm:$0xff]
  %v307 = vld [vmem:[%s1 + $0x610] sm:$0xff]
  %v308 = vld [vmem:[%s1 + $0x618] sm:$0xff]
  %v309 = vld [vmem:[%s1 + $0x620] sm:$0xff]
  %v310 = vld [vmem:[%s1 + $0x628] sm:$0xff]
  %v311 = vld [vmem:[%s1 + $0x630] sm:$0xff]
  %v312 = vld [vmem:[%s1 + $0x638] sm:$0xff]
  %v313 = vld [vmem:[%s1 + $0x640] sm:$0xff]
  %v314 = vld [vmem:[%s1 + $0x648] sm:$0xff]
  %v315 = vld [vmem:[%s1 + $0x650] sm:$0xff]
  %v316 = vld [vmem:[%s1 + $0x658] sm:$0xff]
  %v317 = vld [vmem:[%s1 + $0x660] sm:$0xff]
  %v318 = vld [vmem:[%s1 + $0x668] sm:$0xff]
  %v319 = vld [vmem:[%s1 + $0x670] sm:$0xff]
  %v320 = vld [vmem:[%s1 + $0x678] sm:$0xff]
  %v321 = vld [vmem:[%s2] sm:$0x3]
  %v323 = vlaneseq
  %v324 = vshrl.u32 %v323, 7
  %v325 = vsub.s32 0, %v324
  %v326 = vrot.slane %v321, %v325
  %v327 = vlaneseq
  %v328 = vshrl.u32 %v327, 7
  %v329 = vsub.s32 1, %v328
  %v330 = vrot.slane %v321, %v329
  %v431 = vunpack.c.l.b16 %v15
  %v432 = vunpack.c.h.b16 %v15
  %v433 = vunpack.c.l.b16 %v16
  %v434 = vunpack.c.h.b16 %v16
  %v435 = vunpack.c.l.b16 %v17
  %v436 = vunpack.c.h.b16 %v17
  %v437 = vunpack.c.l.b16 %v18
  %v438 = vunpack.c.h.b16 %v18
  %v439 = vunpack.c.l.b16 %v19
  %v440 = vunpack.c.h.b16 %v19
  %v441 = vunpack.c.l.b16 %v20
  %v442 = vunpack.c.h.b16 %v20
  %v443 = vunpack.c.l.b16 %v21
  %v444 = vunpack.c.l.b16 %v22
  %v445 = vunpack.c.h.b16 %v22
  %v446 = vunpack.c.l.b16 %v23
  %v447 = vunpack.c.h.b16 %v23
  %v448 = vunpack.c.l.b16 %v24
  %v449 = vunpack.c.h.b16 %v24
  %v450 = vunpack.c.l.b16 %v25
  %v451 = vunpack.c.h.b16 %v25
  %v452 = vunpack.c.l.b16 %v26
  %v453 = vunpack.c.h.b16 %v26
  %v454 = vunpack.c.l.b16 %v27
  %v455 = vunpack.c.h.b16 %v27
  %v456 = vunpack.c.l.b16 %v28
  %v457 = vunpack.c.l.b16 %v29
  %v458 = vunpack.c.h.b16 %v29
  %v459 = vunpack.c.l.b16 %v30
  %v460 = vunpack.c.h.b16 %v30
  %v461 = vunpack.c.l.b16 %v31
  %v462 = vunpack.c.h.b16 %v31
  %v463 = vunpack.c.l.b16 %v32
  %v464 = vunpack.c.h.b16 %v32
  %v465 = vunpack.c.l.b16 %v33
  %v466 = vunpack.c.h.b16 %v33
  %v467 = vunpack.c.l.b16 %v34
  %v468 = vunpack.c.h.b16 %v34
  %v469 = vunpack.c.l.b16 %v35
  %v470 = vunpack.c.l.b16 %v36
  %v471 = vunpack.c.h.b16 %v36
  %v472 = vunpack.c.l.b16 %v37
  %v473 = vunpack.c.h.b16 %v37
  %v474 = vunpack.c.l.b16 %v38
  %v475 = vunpack.c.h.b16 %v38
  %v476 = vunpack.c.l.b16 %v39
  %v477 = vunpack.c.h.b16 %v39
  %v478 = vunpack.c.l.b16 %v40
  %v479 = vunpack.c.h.b16 %v40
  %v480 = vunpack.c.l.b16 %v41
  %v481 = vunpack.c.h.b16 %v41
  %v482 = vunpack.c.l.b16 %v42
  %v483 = vunpack.c.l.b16 %v43
  %v484 = vunpack.c.h.b16 %v43
  %v485 = vunpack.c.l.b16 %v44
  %v486 = vunpack.c.h.b16 %v44
  %v487 = vunpack.c.l.b16 %v45
  %v488 = vunpack.c.h.b16 %v45
  %v489 = vunpack.c.l.b16 %v46
  %v490 = vunpack.c.h.b16 %v46
  %v491 = vunpack.c.l.b16 %v47
  %v492 = vunpack.c.h.b16 %v47
  %v493 = vunpack.c.l.b16 %v48
  %v494 = vunpack.c.h.b16 %v48
  %v495 = vunpack.c.l.b16 %v49
  %v496 = vunpack.c.l.b16 %v50
  %v497 = vunpack.c.h.b16 %v50
  %v498 = vunpack.c.l.b16 %v51
  %v499 = vunpack.c.h.b16 %v51
  %v500 = vunpack.c.l.b16 %v52
  %v501 = vunpack.c.h.b16 %v52
  %v502 = vunpack.c.l.b16 %v53
  %v503 = vunpack.c.h.b16 %v53
  %v504 = vunpack.c.l.b16 %v54
  %v505 = vunpack.c.h.b16 %v54
  %v506 = vunpack.c.l.b16 %v55
  %v507 = vunpack.c.h.b16 %v55
  %v508 = vunpack.c.l.b16 %v56
  %v509 = vunpack.c.l.b16 %v57
  %v510 = vunpack.c.h.b16 %v57
  %v511 = vunpack.c.l.b16 %v58
  %v512 = vunpack.c.h.b16 %v58
  %v513 = vunpack.c.l.b16 %v59
  %v514 = vunpack.c.h.b16 %v59
  %v515 = vunpack.c.l.b16 %v60
  %v516 = vunpack.c.h.b16 %v60
  %v517 = vunpack.c.l.b16 %v61
  %v518 = vunpack.c.h.b16 %v61
  %v519 = vunpack.c.l.b16 %v62
  %v520 = vunpack.c.h.b16 %v62
  %v521 = vunpack.c.l.b16 %v63
  %v522 = vunpack.c.l.b16 %v64
  %v523 = vunpack.c.h.b16 %v64
  %v524 = vunpack.c.l.b16 %v65
  %v525 = vunpack.c.h.b16 %v65
  %v526 = vunpack.c.l.b16 %v66
  %v527 = vunpack.c.h.b16 %v66
  %v528 = vunpack.c.l.b16 %v67
  %v529 = vunpack.c.h.b16 %v67
  %v530 = vunpack.c.l.b16 %v68
  %v531 = vunpack.c.h.b16 %v68
  %v532 = vunpack.c.l.b16 %v69
  %v533 = vunpack.c.h.b16 %v69
  %v534 = vunpack.c.l.b16 %v70
  %v535 = vunpack.c.l.b16 %v71
  %v536 = vunpack.c.h.b16 %v71
  %v537 = vunpack.c.l.b16 %v72
  %v538 = vunpack.c.h.b16 %v72
  %v539 = vunpack.c.l.b16 %v73
  %v540 = vunpack.c.h.b16 %v73
  %v541 = vunpack.c.l.b16 %v74
  %v542 = vunpack.c.h.b16 %v74
  %v543 = vunpack.c.l.b16 %v75
  %v544 = vunpack.c.h.b16 %v75
  %v545 = vunpack.c.l.b16 %v76
  %v546 = vunpack.c.h.b16 %v76
  %v547 = vunpack.c.l.b16 %v77
  %v548 = vunpack.c.l.b16 %v78
  %v549 = vunpack.c.h.b16 %v78
  %v550 = vunpack.c.l.b16 %v79
  %v551 = vunpack.c.h.b16 %v79
  %v552 = vunpack.c.l.b16 %v80
  %v553 = vunpack.c.h.b16 %v80
  %v554 = vunpack.c.l.b16 %v81
  %v555 = vunpack.c.h.b16 %v81
  %v556 = vunpack.c.l.b16 %v82
  %v557 = vunpack.c.h.b16 %v82
  %v558 = vunpack.c.l.b16 %v83
  %v559 = vunpack.c.h.b16 %v83
  %v560 = vunpack.c.l.b16 %v84
  %v561 = vunpack.c.l.b16 %v85
  %v562 = vunpack.c.h.b16 %v85
  %v563 = vunpack.c.l.b16 %v86
  %v564 = vunpack.c.h.b16 %v86
  %v565 = vunpack.c.l.b16 %v87
  %v566 = vunpack.c.h.b16 %v87
  %v567 = vunpack.c.l.b16 %v88
  %v568 = vunpack.c.h.b16 %v88
  %v569 = vunpack.c.l.b16 %v89
  %v570 = vunpack.c.h.b16 %v89
  %v571 = vunpack.c.l.b16 %v90
  %v572 = vunpack.c.h.b16 %v90
  %v573 = vunpack.c.l.b16 %v91
  %v574 = vunpack.c.l.b16 %v92
  %v575 = vunpack.c.h.b16 %v92
  %v576 = vunpack.c.l.b16 %v93
  %v577 = vunpack.c.h.b16 %v93
  %v578 = vunpack.c.l.b16 %v94
  %v579 = vunpack.c.h.b16 %v94
  %v580 = vunpack.c.l.b16 %v95
  %v581 = vunpack.c.h.b16 %v95
  %v582 = vunpack.c.l.b16 %v96
  %v583 = vunpack.c.h.b16 %v96
  %v584 = vunpack.c.l.b16 %v97
  %v585 = vunpack.c.h.b16 %v97
  %v586 = vunpack.c.l.b16 %v98
  %v587 = vunpack.c.l.b16 %v99
  %v588 = vunpack.c.h.b16 %v99
  %v589 = vunpack.c.l.b16 %v100
  %v590 = vunpack.c.h.b16 %v100
  %v591 = vunpack.c.l.b16 %v101
  %v592 = vunpack.c.h.b16 %v101
  %v593 = vunpack.c.l.b16 %v102
  %v594 = vunpack.c.h.b16 %v102
  %v595 = vunpack.c.l.b16 %v103
  %v596 = vunpack.c.h.b16 %v103
  %v597 = vunpack.c.l.b16 %v104
  %v598 = vunpack.c.h.b16 %v104
  %v599 = vunpack.c.l.b16 %v105
  %v600 = vunpack.c.l.b16 %v106
  %v601 = vunpack.c.h.b16 %v106
  %v602 = vunpack.c.l.b16 %v107
  %v603 = vunpack.c.h.b16 %v107
  %v604 = vunpack.c.l.b16 %v108
  %v605 = vunpack.c.h.b16 %v108
  %v606 = vunpack.c.l.b16 %v109
  %v607 = vunpack.c.h.b16 %v109
  %v608 = vunpack.c.l.b16 %v110
  %v609 = vunpack.c.h.b16 %v110
  %v610 = vunpack.c.l.b16 %v111
  %v611 = vunpack.c.h.b16 %v111
  %v612 = vunpack.c.l.b16 %v112
  %v613 = vpack.c.b16 %v444, %v431
  %v614 = vpack.c.b16 %v445, %v432
  %v615 = vpack.c.b16 %v446, %v433
  %v616 = vpack.c.b16 %v447, %v434
  %v617 = vpack.c.b16 %v448, %v435
  %v618 = vpack.c.b16 %v449, %v436
  %v619 = vpack.c.b16 %v450, %v437
  %v620 = vpack.c.b16 %v451, %v438
  %v621 = vpack.c.b16 %v452, %v439
  %v622 = vpack.c.b16 %v453, %v440
  %v623 = vpack.c.b16 %v454, %v441
  %v624 = vpack.c.b16 %v455, %v442
  %v625 = vpack.c.b16 %v456, %v443
  %v626 = vpack.c.b16 %v470, %v457
  %v627 = vpack.c.b16 %v471, %v458
  %v628 = vpack.c.b16 %v472, %v459
  %v629 = vpack.c.b16 %v473, %v460
  %v630 = vpack.c.b16 %v474, %v461
  %v631 = vpack.c.b16 %v475, %v462
  %v632 = vpack.c.b16 %v476, %v463
  %v633 = vpack.c.b16 %v477, %v464
  %v634 = vpack.c.b16 %v478, %v465
  %v635 = vpack.c.b16 %v479, %v466
  %v636 = vpack.c.b16 %v480, %v467
  %v637 = vpack.c.b16 %v481, %v468
  %v638 = vpack.c.b16 %v482, %v469
  %v639 = vpack.c.b16 %v496, %v483
  %v640 = vpack.c.b16 %v497, %v484
  %v641 = vpack.c.b16 %v498, %v485
  %v642 = vpack.c.b16 %v499, %v486
  %v643 = vpack.c.b16 %v500, %v487
  %v644 = vpack.c.b16 %v501, %v488
  %v645 = vpack.c.b16 %v502, %v489
  %v646 = vpack.c.b16 %v503, %v490
  %v647 = vpack.c.b16 %v504, %v491
  %v648 = vpack.c.b16 %v505, %v492
  %v649 = vpack.c.b16 %v506, %v493
  %v650 = vpack.c.b16 %v507, %v494
  %v651 = vpack.c.b16 %v508, %v495
  %v652 = vpack.c.b16 %v522, %v509
  %v653 = vpack.c.b16 %v523, %v510
  %v654 = vpack.c.b16 %v524, %v511
  %v655 = vpack.c.b16 %v525, %v512
  %v656 = vpack.c.b16 %v526, %v513
  %v657 = vpack.c.b16 %v527, %v514
  %v658 = vpack.c.b16 %v528, %v515
  %v659 = vpack.c.b16 %v529, %v516
  %v660 = vpack.c.b16 %v530, %v517
  %v661 = vpack.c.b16 %v531, %v518
  %v662 = vpack.c.b16 %v532, %v519
  %v663 = vpack.c.b16 %v533, %v520
  %v664 = vpack.c.b16 %v534, %v521
  %v665 = vpack.c.b16 %v548, %v535
  %v666 = vpack.c.b16 %v549, %v536
  %v667 = vpack.c.b16 %v550, %v537
  %v668 = vpack.c.b16 %v551, %v538
  %v669 = vpack.c.b16 %v552, %v539
  %v670 = vpack.c.b16 %v553, %v540
  %v671 = vpack.c.b16 %v554, %v541
  %v672 = vpack.c.b16 %v555, %v542
  %v673 = vpack.c.b16 %v556, %v543
  %v674 = vpack.c.b16 %v557, %v544
  %v675 = vpack.c.b16 %v558, %v545
  %v676 = vpack.c.b16 %v559, %v546
  %v677 = vpack.c.b16 %v560, %v547
  %v678 = vpack.c.b16 %v574, %v561
  %v679 = vpack.c.b16 %v575, %v562
  %v680 = vpack.c.b16 %v576, %v563
  %v681 = vpack.c.b16 %v577, %v564
  %v682 = vpack.c.b16 %v578, %v565
  %v683 = vpack.c.b16 %v579, %v566
  %v684 = vpack.c.b16 %v580, %v567
  %v685 = vpack.c.b16 %v581, %v568
  %v686 = vpack.c.b16 %v582, %v569
  %v687 = vpack.c.b16 %v583, %v570
  %v688 = vpack.c.b16 %v584, %v571
  %v689 = vpack.c.b16 %v585, %v572
  %v690 = vpack.c.b16 %v586, %v573
  %v691 = vpack.c.b16 %v600, %v587
  %v692 = vpack.c.b16 %v601, %v588
  %v693 = vpack.c.b16 %v602, %v589
  %v694 = vpack.c.b16 %v603, %v590
  %v695 = vpack.c.b16 %v604, %v591
  %v696 = vpack.c.b16 %v605, %v592
  %v697 = vpack.c.b16 %v606, %v593
  %v698 = vpack.c.b16 %v607, %v594
  %v699 = vpack.c.b16 %v608, %v595
  %v700 = vpack.c.b16 %v609, %v596
  %v701 = vpack.c.b16 %v610, %v597
  %v702 = vpack.c.b16 %v611, %v598
  %v703 = vpack.c.b16 %v612, %v599
  %v1003 = vunpack.c.l.b16 %v113
  %v1004 = vunpack.c.h.b16 %v113
  %v1005 = vunpack.c.l.b16 %v114
  %v1006 = vunpack.c.h.b16 %v114
  %v1007 = vunpack.c.l.b16 %v115
  %v1008 = vunpack.c.h.b16 %v115
  %v1009 = vunpack.c.l.b16 %v116
  %v1010 = vunpack.c.h.b16 %v116
  %v1011 = vunpack.c.l.b16 %v117
  %v1012 = vunpack.c.h.b16 %v117
  %v1013 = vunpack.c.l.b16 %v118
  %v1014 = vunpack.c.h.b16 %v118
  %v1015 = vunpack.c.l.b16 %v119
  %v1016 = vunpack.c.h.b16 %v119
  %v1017 = vunpack.c.l.b16 %v120
  %v1018 = vunpack.c.h.b16 %v120
  %v1019 = vunpack.c.l.b16 %v121
  %v1020 = vunpack.c.h.b16 %v121
  %v1021 = vunpack.c.l.b16 %v122
  %v1022 = vunpack.c.h.b16 %v122
  %v1023 = vunpack.c.l.b16 %v123
  %v1024 = vunpack.c.h.b16 %v123
  %v1025 = vunpack.c.l.b16 %v124
  %v1026 = vunpack.c.h.b16 %v124
  %v1027 = vunpack.c.l.b16 %v125
  %v1028 = vunpack.c.h.b16 %v125
  %v1029 = vunpack.c.l.b16 %v126
  %v1030 = vunpack.c.h.b16 %v126
  %v1031 = vunpack.c.l.b16 %v127
  %v1032 = vunpack.c.h.b16 %v127
  %v1033 = vunpack.c.l.b16 %v128
  %v1034 = vunpack.c.h.b16 %v128
  %v1035 = vunpack.c.l.b16 %v129
  %v1036 = vunpack.c.h.b16 %v129
  %v1037 = vunpack.c.l.b16 %v130
  %v1038 = vunpack.c.h.b16 %v130
  %v1039 = vunpack.c.l.b16 %v131
  %v1040 = vunpack.c.h.b16 %v131
  %v1041 = vunpack.c.l.b16 %v132
  %v1042 = vunpack.c.h.b16 %v132
  %v1043 = vunpack.c.l.b16 %v133
  %v1044 = vunpack.c.h.b16 %v133
  %v1045 = vunpack.c.l.b16 %v134
  %v1046 = vunpack.c.h.b16 %v134
  %v1047 = vunpack.c.l.b16 %v135
  %v1048 = vunpack.c.h.b16 %v135
  %v1049 = vunpack.c.l.b16 %v136
  %v1050 = vunpack.c.h.b16 %v136
  %v1051 = vunpack.c.l.b16 %v137
  %v1052 = vunpack.c.h.b16 %v137
  %v1053 = vunpack.c.l.b16 %v138
  %v1054 = vunpack.c.h.b16 %v138
  %v1055 = vunpack.c.l.b16 %v139
  %v1056 = vunpack.c.h.b16 %v139
  %v1057 = vunpack.c.l.b16 %v140
  %v1058 = vunpack.c.h.b16 %v140
  %v1059 = vunpack.c.l.b16 %v141
  %v1060 = vunpack.c.h.b16 %v141
  %v1061 = vunpack.c.l.b16 %v142
  %v1062 = vunpack.c.h.b16 %v142
  %v1063 = vunpack.c.l.b16 %v143
  %v1064 = vunpack.c.h.b16 %v143
  %v1065 = vunpack.c.l.b16 %v144
  %v1066 = vunpack.c.h.b16 %v144
  %v1067 = vunpack.c.l.b16 %v145
  %v1068 = vunpack.c.h.b16 %v145
  %v1069 = vunpack.c.l.b16 %v146
  %v1070 = vunpack.c.h.b16 %v146
  %v1071 = vunpack.c.l.b16 %v147
  %v1072 = vunpack.c.h.b16 %v147
  %v1073 = vunpack.c.l.b16 %v148
  %v1074 = vunpack.c.h.b16 %v148
  %v1075 = vunpack.c.l.b16 %v149
  %v1076 = vunpack.c.h.b16 %v149
  %v1077 = vunpack.c.l.b16 %v150
  %v1078 = vunpack.c.h.b16 %v150
  %v1079 = vunpack.c.l.b16 %v151
  %v1080 = vunpack.c.h.b16 %v151
  %v1081 = vunpack.c.l.b16 %v152
  %v1082 = vunpack.c.h.b16 %v152
  %v1083 = vunpack.c.l.b16 %v153
  %v1084 = vunpack.c.h.b16 %v153
  %v1085 = vunpack.c.l.b16 %v154
  %v1086 = vunpack.c.h.b16 %v154
  %v1087 = vunpack.c.l.b16 %v155
  %v1088 = vunpack.c.h.b16 %v155
  %v1089 = vunpack.c.l.b16 %v156
  %v1090 = vunpack.c.h.b16 %v156
  %v1091 = vunpack.c.l.b16 %v157
  %v1092 = vunpack.c.h.b16 %v157
  %v1093 = vunpack.c.l.b16 %v158
  %v1094 = vunpack.c.h.b16 %v158
  %v1095 = vunpack.c.l.b16 %v159
  %v1096 = vunpack.c.h.b16 %v159
  %v1097 = vunpack.c.l.b16 %v160
  %v1098 = vunpack.c.h.b16 %v160
  %v1099 = vunpack.c.l.b16 %v161
  %v1100 = vunpack.c.h.b16 %v161
  %v1101 = vunpack.c.l.b16 %v162
  %v1102 = vunpack.c.h.b16 %v162
  %v1103 = vunpack.c.l.b16 %v163
  %v1104 = vunpack.c.h.b16 %v163
  %v1105 = vunpack.c.l.b16 %v164
  %v1106 = vunpack.c.h.b16 %v164
  %v1107 = vunpack.c.l.b16 %v165
  %v1108 = vunpack.c.h.b16 %v165
  %v1109 = vunpack.c.l.b16 %v166
  %v1110 = vunpack.c.h.b16 %v166
  %v1111 = vunpack.c.l.b16 %v167
  %v1112 = vunpack.c.h.b16 %v167
  %v1113 = vunpack.c.l.b16 %v168
  %v1114 = vunpack.c.h.b16 %v168
  %v1115 = vunpack.c.l.b16 %v169
  %v1116 = vunpack.c.h.b16 %v169
  %v1117 = vunpack.c.l.b16 %v170
  %v1118 = vunpack.c.h.b16 %v170
  %v1119 = vunpack.c.l.b16 %v171
  %v1120 = vunpack.c.h.b16 %v171
  %v1121 = vunpack.c.l.b16 %v172
  %v1122 = vunpack.c.h.b16 %v172
  %v1123 = vunpack.c.l.b16 %v173
  %v1124 = vunpack.c.h.b16 %v173
  %v1125 = vunpack.c.l.b16 %v174
  %v1126 = vunpack.c.h.b16 %v174
  %v1127 = vunpack.c.l.b16 %v175
  %v1128 = vunpack.c.h.b16 %v175
  %v1129 = vunpack.c.l.b16 %v176
  %v1130 = vunpack.c.h.b16 %v176
  %v1131 = vunpack.c.l.b16 %v177
  %v1132 = vunpack.c.h.b16 %v177
  %v1133 = vunpack.c.l.b16 %v178
  %v1134 = vunpack.c.h.b16 %v178
  %v1135 = vunpack.c.l.b16 %v179
  %v1136 = vunpack.c.h.b16 %v179
  %v1137 = vunpack.c.l.b16 %v180
  %v1138 = vunpack.c.h.b16 %v180
  %v1139 = vunpack.c.l.b16 %v181
  %v1140 = vunpack.c.h.b16 %v181
  %v1141 = vunpack.c.l.b16 %v182
  %v1142 = vunpack.c.h.b16 %v182
  %v1143 = vunpack.c.l.b16 %v183
  %v1144 = vunpack.c.h.b16 %v183
  %v1145 = vunpack.c.l.b16 %v184
  %v1146 = vunpack.c.h.b16 %v184
  %v1147 = vunpack.c.l.b16 %v185
  %v1148 = vunpack.c.h.b16 %v185
  %v1149 = vunpack.c.l.b16 %v186
  %v1150 = vunpack.c.h.b16 %v186
  %v1151 = vunpack.c.l.b16 %v187
  %v1152 = vunpack.c.h.b16 %v187
  %v1153 = vunpack.c.l.b16 %v188
  %v1154 = vunpack.c.h.b16 %v188
  %v1155 = vunpack.c.l.b16 %v189
  %v1156 = vunpack.c.h.b16 %v189
  %v1157 = vunpack.c.l.b16 %v190
  %v1158 = vunpack.c.h.b16 %v190
  %v1159 = vunpack.c.l.b16 %v191
  %v1160 = vunpack.c.h.b16 %v191
  %v1161 = vunpack.c.l.b16 %v192
  %v1162 = vunpack.c.h.b16 %v192
  %v1163 = vunpack.c.l.b16 %v193
  %v1164 = vunpack.c.h.b16 %v193
  %v1165 = vunpack.c.l.b16 %v194
  %v1166 = vunpack.c.h.b16 %v194
  %v1167 = vunpack.c.l.b16 %v195
  %v1168 = vunpack.c.h.b16 %v195
  %v1169 = vunpack.c.l.b16 %v196
  %v1170 = vunpack.c.h.b16 %v196
  %v1171 = vunpack.c.l.b16 %v197
  %v1172 = vunpack.c.h.b16 %v197
  %v1173 = vunpack.c.l.b16 %v198
  %v1174 = vunpack.c.h.b16 %v198
  %v1175 = vunpack.c.l.b16 %v199
  %v1176 = vunpack.c.h.b16 %v199
  %v1177 = vunpack.c.l.b16 %v200
  %v1178 = vunpack.c.h.b16 %v200
  %v1179 = vunpack.c.l.b16 %v201
  %v1180 = vunpack.c.h.b16 %v201
  %v1181 = vunpack.c.l.b16 %v202
  %v1182 = vunpack.c.h.b16 %v202
  %v1183 = vunpack.c.l.b16 %v203
  %v1184 = vunpack.c.h.b16 %v203
  %v1185 = vunpack.c.l.b16 %v204
  %v1186 = vunpack.c.h.b16 %v204
  %v1187 = vunpack.c.l.b16 %v205
  %v1188 = vunpack.c.h.b16 %v205
  %v1189 = vunpack.c.l.b16 %v206
  %v1190 = vunpack.c.h.b16 %v206
  %v1191 = vunpack.c.l.b16 %v207
  %v1192 = vunpack.c.h.b16 %v207
  %v1193 = vunpack.c.l.b16 %v208
  %v1194 = vunpack.c.h.b16 %v208
  %v1195 = vunpack.c.l.b16 %v209
  %v1196 = vunpack.c.h.b16 %v209
  %v1197 = vunpack.c.l.b16 %v210
  %v1198 = vunpack.c.h.b16 %v210
  %v1199 = vunpack.c.l.b16 %v211
  %v1200 = vunpack.c.h.b16 %v211
  %v1201 = vunpack.c.l.b16 %v212
  %v1202 = vunpack.c.h.b16 %v212
  %v1203 = vunpack.c.l.b16 %v213
  %v1204 = vunpack.c.h.b16 %v213
  %v1205 = vunpack.c.l.b16 %v214
  %v1206 = vunpack.c.h.b16 %v214
  %v1207 = vunpack.c.l.b16 %v215
  %v1208 = vunpack.c.h.b16 %v215
  %v1209 = vunpack.c.l.b16 %v216
  %v1210 = vunpack.c.h.b16 %v216
  %v1211 = vunpack.c.l.b16 %v217
  %v1212 = vunpack.c.h.b16 %v217
  %v1213 = vunpack.c.l.b16 %v218
  %v1214 = vunpack.c.h.b16 %v218
  %v1215 = vunpack.c.l.b16 %v219
  %v1216 = vunpack.c.h.b16 %v219
  %v1217 = vunpack.c.l.b16 %v220
  %v1218 = vunpack.c.h.b16 %v220
  %v1219 = vunpack.c.l.b16 %v221
  %v1220 = vunpack.c.h.b16 %v221
  %v1221 = vunpack.c.l.b16 %v222
  %v1222 = vunpack.c.h.b16 %v222
  %v1223 = vunpack.c.l.b16 %v223
  %v1224 = vunpack.c.h.b16 %v223
  %v1225 = vunpack.c.l.b16 %v224
  %v1226 = vunpack.c.h.b16 %v224
  %v1227 = vunpack.c.l.b16 %v225
  %v1228 = vunpack.c.h.b16 %v225
  %v1229 = vunpack.c.l.b16 %v226
  %v1230 = vunpack.c.h.b16 %v226
  %v1231 = vunpack.c.l.b16 %v227
  %v1232 = vunpack.c.h.b16 %v227
  %v1233 = vunpack.c.l.b16 %v228
  %v1234 = vunpack.c.h.b16 %v228
  %v1235 = vunpack.c.l.b16 %v229
  %v1236 = vunpack.c.h.b16 %v229
  %v1237 = vunpack.c.l.b16 %v230
  %v1238 = vunpack.c.h.b16 %v230
  %v1239 = vunpack.c.l.b16 %v231
  %v1240 = vunpack.c.h.b16 %v231
  %v1241 = vunpack.c.l.b16 %v232
  %v1242 = vunpack.c.h.b16 %v232
  %v1243 = vunpack.c.l.b16 %v233
  %v1244 = vunpack.c.h.b16 %v233
  %v1245 = vunpack.c.l.b16 %v234
  %v1246 = vunpack.c.h.b16 %v234
  %v1247 = vunpack.c.l.b16 %v235
  %v1248 = vunpack.c.h.b16 %v235
  %v1249 = vunpack.c.l.b16 %v236
  %v1250 = vunpack.c.h.b16 %v236
  %v1251 = vunpack.c.l.b16 %v237
  %v1252 = vunpack.c.h.b16 %v237
  %v1253 = vunpack.c.l.b16 %v238
  %v1254 = vunpack.c.h.b16 %v238
  %v1255 = vunpack.c.l.b16 %v239
  %v1256 = vunpack.c.h.b16 %v239
  %v1257 = vunpack.c.l.b16 %v240
  %v1258 = vunpack.c.h.b16 %v240
  %v1259 = vunpack.c.l.b16 %v241
  %v1260 = vunpack.c.h.b16 %v241
  %v1261 = vunpack.c.l.b16 %v242
  %v1262 = vunpack.c.h.b16 %v242
  %v1263 = vunpack.c.l.b16 %v243
  %v1264 = vunpack.c.h.b16 %v243
  %v1265 = vunpack.c.l.b16 %v244
  %v1266 = vunpack.c.h.b16 %v244
  %v1267 = vunpack.c.l.b16 %v245
  %v1268 = vunpack.c.h.b16 %v245
  %v1269 = vunpack.c.l.b16 %v246
  %v1270 = vunpack.c.h.b16 %v246
  %v1271 = vunpack.c.l.b16 %v247
  %v1272 = vunpack.c.h.b16 %v247
  %v1273 = vunpack.c.l.b16 %v248
  %v1274 = vunpack.c.h.b16 %v248
  %v1275 = vunpack.c.l.b16 %v249
  %v1276 = vunpack.c.h.b16 %v249
  %v1277 = vunpack.c.l.b16 %v250
  %v1278 = vunpack.c.h.b16 %v250
  %v1279 = vunpack.c.l.b16 %v251
  %v1280 = vunpack.c.h.b16 %v251
  %v1281 = vunpack.c.l.b16 %v252
  %v1282 = vunpack.c.h.b16 %v252
  %v1283 = vunpack.c.l.b16 %v253
  %v1284 = vunpack.c.h.b16 %v253
  %v1285 = vunpack.c.l.b16 %v254
  %v1286 = vunpack.c.h.b16 %v254
  %v1287 = vunpack.c.l.b16 %v255
  %v1288 = vunpack.c.h.b16 %v255
  %v1289 = vunpack.c.l.b16 %v256
  %v1290 = vunpack.c.h.b16 %v256
  %v1291 = vunpack.c.l.b16 %v257
  %v1292 = vunpack.c.h.b16 %v257
  %v1293 = vunpack.c.l.b16 %v258
  %v1294 = vunpack.c.h.b16 %v258
  %v1295 = vunpack.c.l.b16 %v259
  %v1296 = vunpack.c.h.b16 %v259
  %v1297 = vunpack.c.l.b16 %v260
  %v1298 = vunpack.c.h.b16 %v260
  %v1299 = vunpack.c.l.b16 %v261
  %v1300 = vunpack.c.h.b16 %v261
  %v1301 = vunpack.c.l.b16 %v262
  %v1302 = vunpack.c.h.b16 %v262
  %v1303 = vunpack.c.l.b16 %v263
  %v1304 = vunpack.c.h.b16 %v263
  %v1305 = vunpack.c.l.b16 %v264
  %v1306 = vunpack.c.h.b16 %v264
  %v1307 = vunpack.c.l.b16 %v265
  %v1308 = vunpack.c.h.b16 %v265
  %v1309 = vunpack.c.l.b16 %v266
  %v1310 = vunpack.c.h.b16 %v266
  %v1311 = vunpack.c.l.b16 %v267
  %v1312 = vunpack.c.h.b16 %v267
  %v1313 = vunpack.c.l.b16 %v268
  %v1314 = vunpack.c.h.b16 %v268
  %v1315 = vunpack.c.l.b16 %v269
  %v1316 = vunpack.c.h.b16 %v269
  %v1317 = vunpack.c.l.b16 %v270
  %v1318 = vunpack.c.h.b16 %v270
  %v1319 = vunpack.c.l.b16 %v271
  %v1320 = vunpack.c.h.b16 %v271
  %v1321 = vunpack.c.l.b16 %v272
  %v1322 = vunpack.c.h.b16 %v272
  %v1323 = vunpack.c.l.b16 %v273
  %v1324 = vunpack.c.h.b16 %v273
  %v1325 = vunpack.c.l.b16 %v274
  %v1326 = vunpack.c.h.b16 %v274
  %v1327 = vunpack.c.l.b16 %v275
  %v1328 = vunpack.c.h.b16 %v275
  %v1329 = vunpack.c.l.b16 %v276
  %v1330 = vunpack.c.h.b16 %v276
  %v1331 = vunpack.c.l.b16 %v277
  %v1332 = vunpack.c.h.b16 %v277
  %v1333 = vunpack.c.l.b16 %v278
  %v1334 = vunpack.c.h.b16 %v278
  %v1335 = vunpack.c.l.b16 %v279
  %v1336 = vunpack.c.h.b16 %v279
  %v1337 = vunpack.c.l.b16 %v280
  %v1338 = vunpack.c.h.b16 %v280
  %v1339 = vunpack.c.l.b16 %v281
  %v1340 = vunpack.c.h.b16 %v281
  %v1341 = vunpack.c.l.b16 %v282
  %v1342 = vunpack.c.h.b16 %v282
  %v1343 = vunpack.c.l.b16 %v283
  %v1344 = vunpack.c.h.b16 %v283
  %v1345 = vunpack.c.l.b16 %v284
  %v1346 = vunpack.c.h.b16 %v284
  %v1347 = vunpack.c.l.b16 %v285
  %v1348 = vunpack.c.h.b16 %v285
  %v1349 = vunpack.c.l.b16 %v286
  %v1350 = vunpack.c.h.b16 %v286
  %v1351 = vunpack.c.l.b16 %v287
  %v1352 = vunpack.c.h.b16 %v287
  %v1353 = vunpack.c.l.b16 %v288
  %v1354 = vunpack.c.h.b16 %v288
  %v1355 = vunpack.c.l.b16 %v289
  %v1356 = vunpack.c.h.b16 %v289
  %v1357 = vunpack.c.l.b16 %v290
  %v1358 = vunpack.c.h.b16 %v290
  %v1359 = vunpack.c.l.b16 %v291
  %v1360 = vunpack.c.h.b16 %v291
  %v1361 = vunpack.c.l.b16 %v292
  %v1362 = vunpack.c.h.b16 %v292
  %v1363 = vunpack.c.l.b16 %v293
  %v1364 = vunpack.c.h.b16 %v293
  %v1365 = vunpack.c.l.b16 %v294
  %v1366 = vunpack.c.h.b16 %v294
  %v1367 = vunpack.c.l.b16 %v295
  %v1368 = vunpack.c.h.b16 %v295
  %v1369 = vunpack.c.l.b16 %v296
  %v1370 = vunpack.c.h.b16 %v296
  %v1371 = vunpack.c.l.b16 %v297
  %v1372 = vunpack.c.h.b16 %v297
  %v1373 = vunpack.c.l.b16 %v298
  %v1374 = vunpack.c.h.b16 %v298
  %v1375 = vunpack.c.l.b16 %v299
  %v1376 = vunpack.c.h.b16 %v299
  %v1377 = vunpack.c.l.b16 %v300
  %v1378 = vunpack.c.h.b16 %v300
  %v1379 = vunpack.c.l.b16 %v301
  %v1380 = vunpack.c.h.b16 %v301
  %v1381 = vunpack.c.l.b16 %v302
  %v1382 = vunpack.c.h.b16 %v302
  %v1383 = vunpack.c.l.b16 %v303
  %v1384 = vunpack.c.h.b16 %v303
  %v1385 = vunpack.c.l.b16 %v304
  %v1386 = vunpack.c.h.b16 %v304
  %v1387 = vunpack.c.l.b16 %v305
  %v1388 = vunpack.c.h.b16 %v305
  %v1389 = vunpack.c.l.b16 %v306
  %v1390 = vunpack.c.h.b16 %v306
  %v1391 = vunpack.c.l.b16 %v307
  %v1392 = vunpack.c.h.b16 %v307
  %v1393 = vunpack.c.l.b16 %v308
  %v1394 = vunpack.c.h.b16 %v308
  %v1395 = vunpack.c.l.b16 %v309
  %v1396 = vunpack.c.h.b16 %v309
  %v1397 = vunpack.c.l.b16 %v310
  %v1398 = vunpack.c.h.b16 %v310
  %v1399 = vunpack.c.l.b16 %v311
  %v1400 = vunpack.c.h.b16 %v311
  %v1401 = vunpack.c.l.b16 %v312
  %v1402 = vunpack.c.h.b16 %v312
  %v1403 = vunpack.c.l.b16 %v313
  %v1404 = vunpack.c.h.b16 %v313
  %v1405 = vunpack.c.l.b16 %v314
  %v1406 = vunpack.c.h.b16 %v314
  %v1407 = vunpack.c.l.b16 %v315
  %v1408 = vunpack.c.h.b16 %v315
  %v1409 = vunpack.c.l.b16 %v316
  %v1410 = vunpack.c.h.b16 %v316
  %v1411 = vunpack.c.l.b16 %v317
  %v1412 = vunpack.c.h.b16 %v317
  %v1413 = vunpack.c.l.b16 %v318
  %v1414 = vunpack.c.h.b16 %v318
  %v1415 = vunpack.c.l.b16 %v319
  %v1416 = vunpack.c.h.b16 %v319
  %v1417 = vunpack.c.l.b16 %v320
  %v1418 = vunpack.c.h.b16 %v320
  %v1419 = vpack.c.b16 %v1005, %v1003
  %v1420 = vpack.c.b16 %v1006, %v1004
  %v1421 = vpack.c.b16 %v1009, %v1007
  %v1422 = vpack.c.b16 %v1010, %v1008
  %v1423 = vpack.c.b16 %v1013, %v1011
  %v1424 = vpack.c.b16 %v1014, %v1012
  %v1425 = vpack.c.b16 %v1017, %v1015
  %v1426 = vpack.c.b16 %v1018, %v1016
  %v1427 = vpack.c.b16 %v1021, %v1019
  %v1428 = vpack.c.b16 %v1022, %v1020
  %v1429 = vpack.c.b16 %v1025, %v1023
  %v1430 = vpack.c.b16 %v1026, %v1024
  %v1431 = vpack.c.b16 %v1029, %v1027
  %v1432 = vpack.c.b16 %v1030, %v1028
  %v1433 = vpack.c.b16 %v1033, %v1031
  %v1434 = vpack.c.b16 %v1034, %v1032
  %v1435 = vpack.c.b16 %v1037, %v1035
  %v1436 = vpack.c.b16 %v1038, %v1036
  %v1437 = vpack.c.b16 %v1041, %v1039
  %v1438 = vpack.c.b16 %v1042, %v1040
  %v1439 = vpack.c.b16 %v1045, %v1043
  %v1440 = vpack.c.b16 %v1046, %v1044
  %v1441 = vpack.c.b16 %v1049, %v1047
  %v1442 = vpack.c.b16 %v1050, %v1048
  %v1443 = vpack.c.b16 %v1053, %v1051
  %v1444 = vpack.c.b16 %v1054, %v1052
  %v1445 = vpack.c.b16 %v1057, %v1055
  %v1446 = vpack.c.b16 %v1058, %v1056
  %v1447 = vpack.c.b16 %v1061, %v1059
  %v1448 = vpack.c.b16 %v1062, %v1060
  %v1449 = vpack.c.b16 %v1065, %v1063
  %v1450 = vpack.c.b16 %v1066, %v1064
  %v1451 = vpack.c.b16 %v1069, %v1067
  %v1452 = vpack.c.b16 %v1070, %v1068
  %v1453 = vpack.c.b16 %v1073, %v1071
  %v1454 = vpack.c.b16 %v1074, %v1072
  %v1455 = vpack.c.b16 %v1077, %v1075
  %v1456 = vpack.c.b16 %v1078, %v1076
  %v1457 = vpack.c.b16 %v1081, %v1079
  %v1458 = vpack.c.b16 %v1082, %v1080
  %v1459 = vpack.c.b16 %v1085, %v1083
  %v1460 = vpack.c.b16 %v1086, %v1084
  %v1461 = vpack.c.b16 %v1089, %v1087
  %v1462 = vpack.c.b16 %v1090, %v1088
  %v1463 = vpack.c.b16 %v1093, %v1091
  %v1464 = vpack.c.b16 %v1094, %v1092
  %v1465 = vpack.c.b16 %v1097, %v1095
  %v1466 = vpack.c.b16 %v1098, %v1096
  %v1467 = vpack.c.b16 %v1101, %v1099
  %v1468 = vpack.c.b16 %v1102, %v1100
  %v1469 = vpack.c.b16 %v1105, %v1103
  %v1470 = vpack.c.b16 %v1106, %v1104
  %v1471 = vpack.c.b16 %v1109, %v1107
  %v1472 = vpack.c.b16 %v1110, %v1108
  %v1473 = vpack.c.b16 %v1113, %v1111
  %v1474 = vpack.c.b16 %v1114, %v1112
  %v1475 = vpack.c.b16 %v1117, %v1115
  %v1476 = vpack.c.b16 %v1118, %v1116
  %v1477 = vpack.c.b16 %v1121, %v1119
  %v1478 = vpack.c.b16 %v1122, %v1120
  %v1479 = vpack.c.b16 %v1125, %v1123
  %v1480 = vpack.c.b16 %v1126, %v1124
  %v1481 = vpack.c.b16 %v1129, %v1127
  %v1482 = vpack.c.b16 %v1130, %v1128
  %v1483 = vpack.c.b16 %v1133, %v1131
  %v1484 = vpack.c.b16 %v1134, %v1132
  %v1485 = vpack.c.b16 %v1137, %v1135
  %v1486 = vpack.c.b16 %v1138, %v1136
  %v1487 = vpack.c.b16 %v1141, %v1139
  %v1488 = vpack.c.b16 %v1142, %v1140
  %v1489 = vpack.c.b16 %v1145, %v1143
  %v1490 = vpack.c.b16 %v1146, %v1144
  %v1491 = vpack.c.b16 %v1149, %v1147
  %v1492 = vpack.c.b16 %v1150, %v1148
  %v1493 = vpack.c.b16 %v1153, %v1151
  %v1494 = vpack.c.b16 %v1154, %v1152
  %v1495 = vpack.c.b16 %v1157, %v1155
  %v1496 = vpack.c.b16 %v1158, %v1156
  %v1497 = vpack.c.b16 %v1161, %v1159
  %v1498 = vpack.c.b16 %v1162, %v1160
  %v1499 = vpack.c.b16 %v1165, %v1163
  %v1500 = vpack.c.b16 %v1166, %v1164
  %v1501 = vpack.c.b16 %v1169, %v1167
  %v1502 = vpack.c.b16 %v1170, %v1168
  %v1503 = vpack.c.b16 %v1173, %v1171
  %v1504 = vpack.c.b16 %v1174, %v1172
  %v1505 = vpack.c.b16 %v1177, %v1175
  %v1506 = vpack.c.b16 %v1178, %v1176
  %v1507 = vpack.c.b16 %v1181, %v1179
  %v1508 = vpack.c.b16 %v1182, %v1180
  %v1509 = vpack.c.b16 %v1185, %v1183
  %v1510 = vpack.c.b16 %v1186, %v1184
  %v1511 = vpack.c.b16 %v1189, %v1187
  %v1512 = vpack.c.b16 %v1190, %v1188
  %v1513 = vpack.c.b16 %v1193, %v1191
  %v1514 = vpack.c.b16 %v1194, %v1192
  %v1515 = vpack.c.b16 %v1197, %v1195
  %v1516 = vpack.c.b16 %v1198, %v1196
  %v1517 = vpack.c.b16 %v1201, %v1199
  %v1518 = vpack.c.b16 %v1202, %v1200
  %v1519 = vpack.c.b16 %v1205, %v1203
  %v1520 = vpack.c.b16 %v1206, %v1204
  %v1521 = vpack.c.b16 %v1209, %v1207
  %v1522 = vpack.c.b16 %v1210, %v1208
  %v1523 = vpack.c.b16 %v1213, %v1211
  %v1524 = vpack.c.b16 %v1214, %v1212
  %v1525 = vpack.c.b16 %v1217, %v1215
  %v1526 = vpack.c.b16 %v1218, %v1216
  %v1527 = vpack.c.b16 %v1221, %v1219
  %v1528 = vpack.c.b16 %v1222, %v1220
  %v1529 = vpack.c.b16 %v1225, %v1223
  %v1530 = vpack.c.b16 %v1226, %v1224
  %v1531 = vpack.c.b16 %v1229, %v1227
  %v1532 = vpack.c.b16 %v1230, %v1228
  %v1533 = vpack.c.b16 %v1233, %v1231
  %v1534 = vpack.c.b16 %v1234, %v1232
  %v1535 = vpack.c.b16 %v1237, %v1235
  %v1536 = vpack.c.b16 %v1238, %v1236
  %v1537 = vpack.c.b16 %v1241, %v1239
  %v1538 = vpack.c.b16 %v1242, %v1240
  %v1539 = vpack.c.b16 %v1245, %v1243
  %v1540 = vpack.c.b16 %v1246, %v1244
  %v1541 = vpack.c.b16 %v1249, %v1247
  %v1542 = vpack.c.b16 %v1250, %v1248
  %v1543 = vpack.c.b16 %v1253, %v1251
  %v1544 = vpack.c.b16 %v1254, %v1252
  %v1545 = vpack.c.b16 %v1257, %v1255
  %v1546 = vpack.c.b16 %v1258, %v1256
  %v1547 = vpack.c.b16 %v1261, %v1259
  %v1548 = vpack.c.b16 %v1262, %v1260
  %v1549 = vpack.c.b16 %v1265, %v1263
  %v1550 = vpack.c.b16 %v1266, %v1264
  %v1551 = vpack.c.b16 %v1269, %v1267
  %v1552 = vpack.c.b16 %v1270, %v1268
  %v1553 = vpack.c.b16 %v1273, %v1271
  %v1554 = vpack.c.b16 %v1274, %v1272
  %v1555 = vpack.c.b16 %v1277, %v1275
  %v1556 = vpack.c.b16 %v1278, %v1276
  %v1557 = vpack.c.b16 %v1281, %v1279
  %v1558 = vpack.c.b16 %v1282, %v1280
  %v1559 = vpack.c.b16 %v1285, %v1283
  %v1560 = vpack.c.b16 %v1286, %v1284
  %v1561 = vpack.c.b16 %v1289, %v1287
  %v1562 = vpack.c.b16 %v1290, %v1288
  %v1563 = vpack.c.b16 %v1293, %v1291
  %v1564 = vpack.c.b16 %v1294, %v1292
  %v1565 = vpack.c.b16 %v1297, %v1295
  %v1566 = vpack.c.b16 %v1298, %v1296
  %v1567 = vpack.c.b16 %v1301, %v1299
  %v1568 = vpack.c.b16 %v1302, %v1300
  %v1569 = vpack.c.b16 %v1305, %v1303
  %v1570 = vpack.c.b16 %v1306, %v1304
  %v1571 = vpack.c.b16 %v1309, %v1307
  %v1572 = vpack.c.b16 %v1310, %v1308
  %v1573 = vpack.c.b16 %v1313, %v1311
  %v1574 = vpack.c.b16 %v1314, %v1312
  %v1575 = vpack.c.b16 %v1317, %v1315
  %v1576 = vpack.c.b16 %v1318, %v1316
  %v1577 = vpack.c.b16 %v1321, %v1319
  %v1578 = vpack.c.b16 %v1322, %v1320
  %v1579 = vpack.c.b16 %v1325, %v1323
  %v1580 = vpack.c.b16 %v1326, %v1324
  %v1581 = vpack.c.b16 %v1329, %v1327
  %v1582 = vpack.c.b16 %v1330, %v1328
  %v1583 = vpack.c.b16 %v1333, %v1331
  %v1584 = vpack.c.b16 %v1334, %v1332
  %v1585 = vpack.c.b16 %v1337, %v1335
  %v1586 = vpack.c.b16 %v1338, %v1336
  %v1587 = vpack.c.b16 %v1341, %v1339
  %v1588 = vpack.c.b16 %v1342, %v1340
  %v1589 = vpack.c.b16 %v1345, %v1343
  %v1590 = vpack.c.b16 %v1346, %v1344
  %v1591 = vpack.c.b16 %v1349, %v1347
  %v1592 = vpack.c.b16 %v1350, %v1348
  %v1593 = vpack.c.b16 %v1353, %v1351
  %v1594 = vpack.c.b16 %v1354, %v1352
  %v1595 = vpack.c.b16 %v1357, %v1355
  %v1596 = vpack.c.b16 %v1358, %v1356
  %v1597 = vpack.c.b16 %v1361, %v1359
  %v1598 = vpack.c.b16 %v1362, %v1360
  %v1599 = vpack.c.b16 %v1365, %v1363
  %v1600 = vpack.c.b16 %v1366, %v1364
  %v1601 = vpack.c.b16 %v1369, %v1367
  %v1602 = vpack.c.b16 %v1370, %v1368
  %v1603 = vpack.c.b16 %v1373, %v1371
  %v1604 = vpack.c.b16 %v1374, %v1372
  %v1605 = vpack.c.b16 %v1377, %v1375
  %v1606 = vpack.c.b16 %v1378, %v1376
  %v1607 = vpack.c.b16 %v1381, %v1379
  %v1608 = vpack.c.b16 %v1382, %v1380
  %v1609 = vpack.c.b16 %v1385, %v1383
  %v1610 = vpack.c.b16 %v1386, %v1384
  %v1611 = vpack.c.b16 %v1389, %v1387
  %v1612 = vpack.c.b16 %v1390, %v1388
  %v1613 = vpack.c.b16 %v1393, %v1391
  %v1614 = vpack.c.b16 %v1394, %v1392
  %v1615 = vpack.c.b16 %v1397, %v1395
  %v1616 = vpack.c.b16 %v1398, %v1396
  %v1617 = vpack.c.b16 %v1401, %v1399
  %v1618 = vpack.c.b16 %v1402, %v1400
  %v1619 = vpack.c.b16 %v1405, %v1403
  %v1620 = vpack.c.b16 %v1406, %v1404
  %v1621 = vpack.c.b16 %v1409, %v1407
  %v1622 = vpack.c.b16 %v1410, %v1408
  %v1623 = vpack.c.b16 %v1413, %v1411
  %v1624 = vpack.c.b16 %v1414, %v1412
  %v1625 = vpack.c.b16 %v1417, %v1415
  %v1626 = vpack.c.b16 %v1418, %v1416
  %1835 = vmatprep.subr.bf16.mxu0 %v1420
  %1836 = vmatpush1.bf16.msra.mxu0 %v1419
  %1837 = vmatprep.subr.bf16.mxu0 %v1422
  %1838 = vmatpush1.bf16.msra.mxu0 %v1421
  %1839 = vmatprep.subr.bf16.mxu0 %v1424
  %1840 = vmatpush1.bf16.msra.mxu0 %v1423
  %1841 = vmatprep.subr.bf16.mxu0 %v1426
  %1842 = vmatpush1.bf16.msra.mxu0 %v1425
  %1843 = vmatprep.subr.bf16.mxu0 %v1428
  %1844 = vmatpush1.bf16.msra.mxu0 %v1427
  %1845 = vmatprep.subr.bf16.mxu0 %v1430
  %1846 = vmatpush1.bf16.msra.mxu0 %v1429
  %1847 = vmatprep.subr.bf16.mxu0 %v1432
  %1848 = vmatpush1.bf16.msra.mxu0 %v1431
  %1849 = vmatprep.subr.bf16.mxu0 %v1434
  %1850 = vmatpush1.bf16.msra.mxu0 %v1433
  %1851 = vmatprep.subr.bf16.mxu0 %v1436
  %1852 = vmatpush1.bf16.msra.mxu0 %v1435
  %1853 = vmatprep.subr.bf16.mxu0 %v1438
  %1854 = vmatpush1.bf16.msra.mxu0 %v1437
  %1855 = vmatprep.subr.bf16.mxu0 %v1440
  %1856 = vmatpush1.bf16.msra.mxu0 %v1439
  %1857 = vmatprep.subr.bf16.mxu0 %v1442
  %1858 = vmatpush1.bf16.msra.mxu0 %v1441
  %1859 = vmatprep.subr.bf16.mxu0 %v1444
  %1860 = vmatpush1.bf16.msra.mxu0 %v1443
  %1861 = vmatprep.subr.bf16.mxu0 %v1446
  %1862 = vmatpush1.bf16.msra.mxu0 %v1445
  %1863 = vmatprep.subr.bf16.mxu0 %v1448
  %1864 = vmatpush1.bf16.msra.mxu0 %v1447
  %1865 = vmatprep.subr.bf16.mxu0 %v1450
  %1866 = vmatpush1.bf16.msra.mxu0 %v1449
  %1867 = vmatprep.mubr.bf16.mxu0 %v614
  %1868 = vmatmul.mubr.bf16.gmra.mrb[0].mxu0 %v613
  %v1869 = vpop.f32.mrb[0].mxu0
  %v1870 = vadd.f32 %v326, %v1869
  %v1871 = vpop.f32.mrb[0].mxu0
  %v1872 = vadd.f32 %v330, %v1871
  %v1873 = vpop.f32.mrb[0].mxu0
  %v1874 = vadd.f32 %v326, %v1873
  %v1875 = vpop.f32.mrb[0].mxu0
  %v1876 = vadd.f32 %v330, %v1875
  %1877 = vmatprep.mubr.bf16.mxu0 %v627
  %1878 = vmatmul.mubr.bf16.gmra.mrb[0].mxu0 %v626
  %v1879 = vpop.f32.mrb[0].mxu0
  %v1880 = vadd.f32 %v326, %v1879
  %v1881 = vpop.f32.mrb[0].mxu0
  %v1882 = vadd.f32 %v330, %v1881
  %v1883 = vpop.f32.mrb[0].mxu0
  %v1884 = vadd.f32 %v326, %v1883
  %v1885 = vpop.f32.mrb[0].mxu0
  %v1886 = vadd.f32 %v330, %v1885
  %1887 = vmatprep.mubr.bf16.mxu0 %v640
  %1888 = vmatmul.mubr.bf16.gmra.mrb[0].mxu0 %v639
  %v1889 = vpop.f32.mrb[0].mxu0
  %v1890 = vadd.f32 %v326, %v1889
  %v1891 = vpop.f32.mrb[0].mxu0
  %v1892 = vadd.f32 %v330, %v1891
  %v1893 = vpop.f32.mrb[0].mxu0
  %v1894 = vadd.f32 %v326, %v1893
  %v1895 = vpop.f32.mrb[0].mxu0
  %v1896 = vadd.f32 %v330, %v1895
  %1897 = vmatprep.mubr.bf16.mxu0 %v653
  %1898 = vmatmul.mubr.bf16.gmra.mrb[0].mxu0 %v652
  %v1899 = vpop.f32.mrb[0].mxu0
  %v1900 = vadd.f32 %v326, %v1899
  %v1901 = vpop.f32.mrb[0].mxu0
  %v1902 = vadd.f32 %v330, %v1901
  %v1903 = vpop.f32.mrb[0].mxu0
  %v1904 = vadd.f32 %v326, %v1903
  %v1905 = vpop.f32.mrb[0].mxu0
  %v1906 = vadd.f32 %v330, %v1905
  %1907 = vmatprep.mubr.bf16.mxu0 %v666
  %1908 = vmatmul.mubr.bf16.gmra.mrb[0].mxu0 %v665
  %v1909 = vpop.f32.mrb[0].mxu0
  %v1910 = vadd.f32 %v326, %v1909
  %v1911 = vpop.f32.mrb[0].mxu0
  %v1912 = vadd.f32 %v330, %v1911
  %v1913 = vpop.f32.mrb[0].mxu0
  %v1914 = vadd.f32 %v326, %v1913
  %v1915 = vpop.f32.mrb[0].mxu0
  %v1916 = vadd.f32 %v330, %v1915
  %1917 = vmatprep.mubr.bf16.mxu0 %v679
  %1918 = vmatmul.mubr.bf16.gmra.mrb[0].mxu0 %v678
  %v1919 = vpop.f32.mrb[0].mxu0
  %v1920 = vadd.f32 %v326, %v1919
  %v1921 = vpop.f32.mrb[0].mxu0
  %v1922 = vadd.f32 %v330, %v1921
  %v1923 = vpop.f32.mrb[0].mxu0
  %v1924 = vadd.f32 %v326, %v1923
  %v1925 = vpop.f32.mrb[0].mxu0
  %v1926 = vadd.f32 %v330, %v1925
  %1927 = vmatprep.mubr.bf16.mxu0 %v692
  %1928 = vmatmul.mubr.bf16.gmra.mrb[0].mxu0 %v691
  %v1929 = vpop.f32.mrb[0].mxu0
  %v1930 = vadd.f32 %v326, %v1929
  %v1931 = vpop.f32.mrb[0].mxu0
  %v1932 = vadd.f32 %v330, %v1931
  %v1933 = vpop.f32.mrb[0].mxu0
  %v1934 = vadd.f32 %v326, %v1933
  %v1935 = vpop.f32.mrb[0].mxu0
  %v1936 = vadd.f32 %v330, %v1935
  %1937 = vdwg.mxu0
  %1938 = vmatprep.subr.bf16.mxu0 %v1452
  %1939 = vmatpush1.bf16.msra.mxu0 %v1451
  %1940 = vmatprep.subr.bf16.mxu0 %v1454
  %1941 = vmatpush1.bf16.msra.mxu0 %v1453
  %1942 = vmatprep.subr.bf16.mxu0 %v1456
  %1943 = vmatpush1.bf16.msra.mxu0 %v1455
  %1944 = vmatprep.subr.bf16.mxu0 %v1458
  %1945 = vmatpush1.bf16.msra.mxu0 %v1457
  %1946 = vmatprep.subr.bf16.mxu0 %v1460
  %1947 = vmatpush1.bf16.msra.mxu0 %v1459
  %1948 = vmatprep.subr.bf16.mxu0 %v1462
  %1949 = vmatpush1.bf16.msra.mxu0 %v1461
  %1950 = vmatprep.subr.bf16.mxu0 %v1464
  %1951 = vmatpush1.bf16.msra.mxu0 %v1463
  %1952 = vmatprep.subr.bf16.mxu0 %v1466
  %1953 = vmatpush1.bf16.msra.mxu0 %v1465
  %1954 = vmatprep.subr.bf16.mxu0 %v1468
  %1955 = vmatpush1.bf16.msra.mxu0 %v1467
  %1956 = vmatprep.subr.bf16.mxu0 %v1470
  %1957 = vmatpush1.bf16.msra.mxu0 %v1469
  %1958 = vmatprep.subr.bf16.mxu0 %v1472
  %1959 = vmatpush1.bf16.msra.mxu0 %v1471
  %1960 = vmatprep.subr.bf16.mxu0 %v1474
  %1961 = vmatpush1.bf16.msra.mxu0 %v1473
  %1962 = vmatprep.subr.bf16.mxu0 %v1476
  %1963 = vmatpush1.bf16.msra.mxu0 %v1475
  %1964 = vmatprep.subr.bf16.mxu0 %v1478
  %1965 = vmatpush1.bf16.msra.mxu0 %v1477
  %1966 = vmatprep.subr.bf16.mxu0 %v1480
  %1967 = vmatpush1.bf16.msra.mxu0 %v1479
  %1968 = vmatprep.subr.bf16.mxu0 %v1482
  %1969 = vmatpush1.bf16.msra.mxu0 %v1481
  %1970 = vmatprep.mubr.bf16.mxu0 %v616
  %1971 = vmatmul.mubr.bf16.gmra.mrb[0].mxu0 %v615
  %v1972 = vpop.f32.mrb[0].mxu0
  %v1973 = vadd.f32 %v1870, %v1972
  %v1974 = vpop.f32.mrb[0].mxu0
  %v1975 = vadd.f32 %v1872, %v1974
  %v1976 = vpop.f32.mrb[0].mxu0
  %v1977 = vadd.f32 %v1874, %v1976
  %v1978 = vpop.f32.mrb[0].mxu0
  %v1979 = vadd.f32 %v1876, %v1978
  %1980 = vmatprep.mubr.bf16.mxu0 %v629
  %1981 = vmatmul.mubr.bf16.gmra.mrb[0].mxu0 %v628
  %v1982 = vpop.f32.mrb[0].mxu0
  %v1983 = vadd.f32 %v1880, %v1982
  %v1984 = vpop.f32.mrb[0].mxu0
  %v1985 = vadd.f32 %v1882, %v1984
  %v1986 = vpop.f32.mrb[0].mxu0
  %v1987 = vadd.f32 %v1884, %v1986
  %v1988 = vpop.f32.mrb[0].mxu0
  %v1989 = vadd.f32 %v1886, %v1988
  %1990 = vmatprep.mubr.bf16.mxu0 %v642
  %1991 = vmatmul.mubr.bf16.gmra.mrb[0].mxu0 %v641
  %v1992 = vpop.f32.mrb[0].mxu0
  %v1993 = vadd.f32 %v1890, %v1992
  %v1994 = vpop.f32.mrb[0].mxu0
  %v1995 = vadd.f32 %v1892, %v1994
  %v1996 = vpop.f32.mrb[0].mxu0
  %v1997 = vadd.f32 %v1894, %v1996
  %v1998 = vpop.f32.mrb[0].mxu0
  %v1999 = vadd.f32 %v1896, %v1998
  %2000 = vmatprep.mubr.bf16.mxu0 %v655
  %2001 = vmatmul.mubr.bf16.gmra.mrb[0].mxu0 %v654
  %v2002 = vpop.f32.mrb[0].mxu0
  %v2003 = vadd.f32 %v1900, %v2002
  %v2004 = vpop.f32.mrb[0].mxu0
  %v2005 = vadd.f32 %v1902, %v2004
  %v2006 = vpop.f32.mrb[0].mxu0
  %v2007 = vadd.f32 %v1904, %v2006
  %v2008 = vpop.f32.mrb[0].mxu0
  %v2009 = vadd.f32 %v1906, %v2008
  %2010 = vmatprep.mubr.bf16.mxu0 %v668
  %2011 = vmatmul.mubr.bf16.gmra.mrb[0].mxu0 %v667
  %v2012 = vpop.f32.mrb[0].mxu0
  %v2013 = vadd.f32 %v1910, %v2012
  %v2014 = vpop.f32.mrb[0].mxu0
  %v2015 = vadd.f32 %v1912, %v2014
  %v2016 = vpop.f32.mrb[0].mxu0
  %v2017 = vadd.f32 %v1914, %v2016
  %v2018 = vpop.f32.mrb[0].mxu0
  %v2019 = vadd.f32 %v1916, %v2018
  %2020 = vmatprep.mubr.bf16.mxu0 %v681
  %2021 = vmatmul.mubr.bf16.gmra.mrb[0].mxu0 %v680
  %v2022 = vpop.f32.mrb[0].mxu0
  %v2023 = vadd.f32 %v1920, %v2022
  %v2024 = vpop.f32.mrb[0].mxu0
  %v2025 = vadd.f32 %v1922, %v2024
  %v2026 = vpop.f32.mrb[0].mxu0
  %v2027 = vadd.f32 %v1924, %v2026
  %v2028 = vpop.f32.mrb[0].mxu0
  %v2029 = vadd.f32 %v1926, %v2028
  %2030 = vmatprep.mubr.bf16.mxu0 %v694
  %2031 = vmatmul.mubr.bf16.gmra.mrb[0].mxu0 %v693
  %v2032 = vpop.f32.mrb[0].mxu0
  %v2033 = vadd.f32 %v1930, %v2032
  %v2034 = vpop.f32.mrb[0].mxu0
  %v2035 = vadd.f32 %v1932, %v2034
  %v2036 = vpop.f32.mrb[0].mxu0
  %v2037 = vadd.f32 %v1934, %v2036
  %v2038 = vpop.f32.mrb[0].mxu0
  %v2039 = vadd.f32 %v1936, %v2038
  %2040 = vdwg.mxu0
  %2041 = vmatprep.subr.bf16.mxu0 %v1484
  %2042 = vmatpush1.bf16.msra.mxu0 %v1483
  %2043 = vmatprep.subr.bf16.mxu0 %v1486
  %2044 = vmatpush1.bf16.msra.mxu0 %v1485
  %2045 = vmatprep.subr.bf16.mxu0 %v1488
  %2046 = vmatpush1.bf16.msra.mxu0 %v1487
  %2047 = vmatprep.subr.bf16.mxu0 %v1490
  %2048 = vmatpush1.bf16.msra.mxu0 %v1489
  %2049 = vmatprep.subr.bf16.mxu0 %v1492
  %2050 = vmatpush1.bf16.msra.mxu0 %v1491
  %2051 = vmatprep.subr.bf16.mxu0 %v1494
  %2052 = vmatpush1.bf16.msra.mxu0 %v1493
  %2053 = vmatprep.subr.bf16.mxu0 %v1496
  %2054 = vmatpush1.bf16.msra.mxu0 %v1495
  %2055 = vmatprep.subr.bf16.mxu0 %v1498
  %2056 = vmatpush1.bf16.msra.mxu0 %v1497
  %2057 = vmatprep.subr.bf16.mxu0 %v1500
  %2058 = vmatpush1.bf16.msra.mxu0 %v1499
  %2059 = vmatprep.subr.bf16.mxu0 %v1502
  %2060 = vmatpush1.bf16.msra.mxu0 %v1501
  %2061 = vmatprep.subr.bf16.mxu0 %v1504
  %2062 = vmatpush1.bf16.msra.mxu0 %v1503
  %2063 = vmatprep.subr.bf16.mxu0 %v1506
  %2064 = vmatpush1.bf16.msra.mxu0 %v1505
  %2065 = vmatprep.subr.bf16.mxu0 %v1508
  %2066 = vmatpush1.bf16.msra.mxu0 %v1507
  %2067 = vmatprep.subr.bf16.mxu0 %v1510
  %2068 = vmatpush1.bf16.msra.mxu0 %v1509
  %2069 = vmatprep.subr.bf16.mxu0 %v1512
  %2070 = vmatpush1.bf16.msra.mxu0 %v1511
  %2071 = vmatprep.subr.bf16.mxu0 %v1514
  %2072 = vmatpush1.bf16.msra.mxu0 %v1513
  %2073 = vmatprep.mubr.bf16.mxu0 %v618
  %2074 = vmatmul.mubr.bf16.gmra.mrb[0].mxu0 %v617
  %v2075 = vpop.f32.mrb[0].mxu0
  %v2076 = vadd.f32 %v1973, %v2075
  %v2077 = vpop.f32.mrb[0].mxu0
  %v2078 = vadd.f32 %v1975, %v2077
  %v2079 = vpop.f32.mrb[0].mxu0
  %v2080 = vadd.f32 %v1977, %v2079
  %v2081 = vpop.f32.mrb[0].mxu0
  %v2082 = vadd.f32 %v1979, %v2081
  %2083 = vmatprep.mubr.bf16.mxu0 %v631
  %2084 = vmatmul.mubr.bf16.gmra.mrb[0].mxu0 %v630
  %v2085 = vpop.f32.mrb[0].mxu0
  %v2086 = vadd.f32 %v1983, %v2085
  %v2087 = vpop.f32.mrb[0].mxu0
  %v2088 = vadd.f32 %v1985, %v2087
  %v2089 = vpop.f32.mrb[0].mxu0
  %v2090 = vadd.f32 %v1987, %v2089
  %v2091 = vpop.f32.mrb[0].mxu0
  %v2092 = vadd.f32 %v1989, %v2091
  %2093 = vmatprep.mubr.bf16.mxu0 %v644
  %2094 = vmatmul.mubr.bf16.gmra.mrb[0].mxu0 %v643
  %v2095 = vpop.f32.mrb[0].mxu0
  %v2096 = vadd.f32 %v1993, %v2095
  %v2097 = vpop.f32.mrb[0].mxu0
  %v2098 = vadd.f32 %v1995, %v2097
  %v2099 = vpop.f32.mrb[0].mxu0
  %v2100 = vadd.f32 %v1997, %v2099
  %v2101 = vpop.f32.mrb[0].mxu0
  %v2102 = vadd.f32 %v1999, %v2101
  %2103 = vmatprep.mubr.bf16.mxu0 %v657
  %2104 = vmatmul.mubr.bf16.gmra.mrb[0].mxu0 %v656
  %v2105 = vpop.f32.mrb[0].mxu0
  %v2106 = vadd.f32 %v2003, %v2105
  %v2107 = vpop.f32.mrb[0].mxu0
  %v2108 = vadd.f32 %v2005, %v2107
  %v2109 = vpop.f32.mrb[0].mxu0
  %v2110 = vadd.f32 %v2007, %v2109
  %v2111 = vpop.f32.mrb[0].mxu0
  %v2112 = vadd.f32 %v2009, %v2111
  %2113 = vmatprep.mubr.bf16.mxu0 %v670
  %2114 = vmatmul.mubr.bf16.gmra.mrb[0].mxu0 %v669
  %v2115 = vpop.f32.mrb[0].mxu0
  %v2116 = vadd.f32 %v2013, %v2115
  %v2117 = vpop.f32.mrb[0].mxu0
  %v2118 = vadd.f32 %v2015, %v2117
  %v2119 = vpop.f32.mrb[0].mxu0
  %v2120 = vadd.f32 %v2017, %v2119
  %v2121 = vpop.f32.mrb[0].mxu0
  %v2122 = vadd.f32 %v2019, %v2121
  %2123 = vmatprep.mubr.bf16.mxu0 %v683
  %2124 = vmatmul.mubr.bf16.gmra.mrb[0].mxu0 %v682
  %v2125 = vpop.f32.mrb[0].mxu0
  %v2126 = vadd.f32 %v2023, %v2125
  %v2127 = vpop.f32.mrb[0].mxu0
  %v2128 = vadd.f32 %v2025, %v2127
  %v2129 = vpop.f32.mrb[0].mxu0
  %v2130 = vadd.f32 %v2027, %v2129
  %v2131 = vpop.f32.mrb[0].mxu0
  %v2132 = vadd.f32 %v2029, %v2131
  %2133 = vmatprep.mubr.bf16.mxu0 %v696
  %2134 = vmatmul.mubr.bf16.gmra.mrb[0].mxu0 %v695
  %v2135 = vpop.f32.mrb[0].mxu0
  %v2136 = vadd.f32 %v2033, %v2135
  %v2137 = vpop.f32.mrb[0].mxu0
  %v2138 = vadd.f32 %v2035, %v2137
  %v2139 = vpop.f32.mrb[0].mxu0
  %v2140 = vadd.f32 %v2037, %v2139
  %v2141 = vpop.f32.mrb[0].mxu0
  %v2142 = vadd.f32 %v2039, %v2141
  %2143 = vdwg.mxu0
  %2144 = vmatprep.subr.bf16.mxu0 %v1516
  %2145 = vmatpush1.bf16.msra.mxu0 %v1515
  %2146 = vmatprep.subr.bf16.mxu0 %v1518
  %2147 = vmatpush1.bf16.msra.mxu0 %v1517
  %2148 = vmatprep.subr.bf16.mxu0 %v1520
  %2149 = vmatpush1.bf16.msra.mxu0 %v1519
  %2150 = vmatprep.subr.bf16.mxu0 %v1522
  %2151 = vmatpush1.bf16.msra.mxu0 %v1521
  %2152 = vmatprep.subr.bf16.mxu0 %v1524
  %2153 = vmatpush1.bf16.msra.mxu0 %v1523
  %2154 = vmatprep.subr.bf16.mxu0 %v1526
  %2155 = vmatpush1.bf16.msra.mxu0 %v1525
  %2156 = vmatprep.subr.bf16.mxu0 %v1528
  %2157 = vmatpush1.bf16.msra.mxu0 %v1527
  %2158 = vmatprep.subr.bf16.mxu0 %v1530
  %2159 = vmatpush1.bf16.msra.mxu0 %v1529
  %2160 = vmatprep.subr.bf16.mxu0 %v1532
  %2161 = vmatpush1.bf16.msra.mxu0 %v1531
  %2162 = vmatprep.subr.bf16.mxu0 %v1534
  %2163 = vmatpush1.bf16.msra.mxu0 %v1533
  %2164 = vmatprep.subr.bf16.mxu0 %v1536
  %2165 = vmatpush1.bf16.msra.mxu0 %v1535
  %2166 = vmatprep.subr.bf16.mxu0 %v1538
  %2167 = vmatpush1.bf16.msra.mxu0 %v1537
  %2168 = vmatprep.subr.bf16.mxu0 %v1540
  %2169 = vmatpush1.bf16.msra.mxu0 %v1539
  %2170 = vmatprep.subr.bf16.mxu0 %v1542
  %2171 = vmatpush1.bf16.msra.mxu0 %v1541
  %2172 = vmatprep.subr.bf16.mxu0 %v1544
  %2173 = vmatpush1.bf16.msra.mxu0 %v1543
  %2174 = vmatprep.subr.bf16.mxu0 %v1546
  %2175 = vmatpush1.bf16.msra.mxu0 %v1545
  %2176 = vmatprep.mubr.bf16.mxu0 %v620
  %2177 = vmatmul.mubr.bf16.gmra.mrb[0].mxu0 %v619
  %v2178 = vpop.f32.mrb[0].mxu0
  %v2179 = vadd.f32 %v2076, %v2178
  %v2180 = vpop.f32.mrb[0].mxu0
  %v2181 = vadd.f32 %v2078, %v2180
  %v2182 = vpop.f32.mrb[0].mxu0
  %v2183 = vadd.f32 %v2080, %v2182
  %v2184 = vpop.f32.mrb[0].mxu0
  %v2185 = vadd.f32 %v2082, %v2184
  %2186 = vmatprep.mubr.bf16.mxu0 %v633
  %2187 = vmatmul.mubr.bf16.gmra.mrb[0].mxu0 %v632
  %v2188 = vpop.f32.mrb[0].mxu0
  %v2189 = vadd.f32 %v2086, %v2188
  %v2190 = vpop.f32.mrb[0].mxu0
  %v2191 = vadd.f32 %v2088, %v2190
  %v2192 = vpop.f32.mrb[0].mxu0
  %v2193 = vadd.f32 %v2090, %v2192
  %v2194 = vpop.f32.mrb[0].mxu0
  %v2195 = vadd.f32 %v2092, %v2194
  %2196 = vmatprep.mubr.bf16.mxu0 %v646
  %2197 = vmatmul.mubr.bf16.gmra.mrb[0].mxu0 %v645
  %v2198 = vpop.f32.mrb[0].mxu0
  %v2199 = vadd.f32 %v2096, %v2198
  %v2200 = vpop.f32.mrb[0].mxu0
  %v2201 = vadd.f32 %v2098, %v2200
  %v2202 = vpop.f32.mrb[0].mxu0
  %v2203 = vadd.f32 %v2100, %v2202
  %v2204 = vpop.f32.mrb[0].mxu0
  %v2205 = vadd.f32 %v2102, %v2204
  %2206 = vmatprep.mubr.bf16.mxu0 %v659
  %2207 = vmatmul.mubr.bf16.gmra.mrb[0].mxu0 %v658
  %v2208 = vpop.f32.mrb[0].mxu0
  %v2209 = vadd.f32 %v2106, %v2208
  %v2210 = vpop.f32.mrb[0].mxu0
  %v2211 = vadd.f32 %v2108, %v2210
  %v2212 = vpop.f32.mrb[0].mxu0
  %v2213 = vadd.f32 %v2110, %v2212
  %v2214 = vpop.f32.mrb[0].mxu0
  %v2215 = vadd.f32 %v2112, %v2214
  %2216 = vmatprep.mubr.bf16.mxu0 %v672
  %2217 = vmatmul.mubr.bf16.gmra.mrb[0].mxu0 %v671
  %v2218 = vpop.f32.mrb[0].mxu0
  %v2219 = vadd.f32 %v2116, %v2218
  %v2220 = vpop.f32.mrb[0].mxu0
  %v2221 = vadd.f32 %v2118, %v2220
  %v2222 = vpop.f32.mrb[0].mxu0
  %v2223 = vadd.f32 %v2120, %v2222
  %v2224 = vpop.f32.mrb[0].mxu0
  %v2225 = vadd.f32 %v2122, %v2224
  %2226 = vmatprep.mubr.bf16.mxu0 %v685
  %2227 = vmatmul.mubr.bf16.gmra.mrb[0].mxu0 %v684
  %v2228 = vpop.f32.mrb[0].mxu0
  %v2229 = vadd.f32 %v2126, %v2228
  %v2230 = vpop.f32.mrb[0].mxu0
  %v2231 = vadd.f32 %v2128, %v2230
  %v2232 = vpop.f32.mrb[0].mxu0
  %v2233 = vadd.f32 %v2130, %v2232
  %v2234 = vpop.f32.mrb[0].mxu0
  %v2235 = vadd.f32 %v2132, %v2234
  %2236 = vmatprep.mubr.bf16.mxu0 %v698
  %2237 = vmatmul.mubr.bf16.gmra.mrb[0].mxu0 %v697
  %v2238 = vpop.f32.mrb[0].mxu0
  %v2239 = vadd.f32 %v2136, %v2238
  %v2240 = vpop.f32.mrb[0].mxu0
  %v2241 = vadd.f32 %v2138, %v2240
  %v2242 = vpop.f32.mrb[0].mxu0
  %v2243 = vadd.f32 %v2140, %v2242
  %v2244 = vpop.f32.mrb[0].mxu0
  %v2245 = vadd.f32 %v2142, %v2244
  %2246 = vdwg.mxu0
  %2247 = vmatprep.subr.bf16.mxu0 %v1548
  %2248 = vmatpush1.bf16.msra.mxu0 %v1547
  %2249 = vmatprep.subr.bf16.mxu0 %v1550
  %2250 = vmatpush1.bf16.msra.mxu0 %v1549
  %2251 = vmatprep.subr.bf16.mxu0 %v1552
  %2252 = vmatpush1.bf16.msra.mxu0 %v1551
  %2253 = vmatprep.subr.bf16.mxu0 %v1554
  %2254 = vmatpush1.bf16.msra.mxu0 %v1553
  %2255 = vmatprep.subr.bf16.mxu0 %v1556
  %2256 = vmatpush1.bf16.msra.mxu0 %v1555
  %2257 = vmatprep.subr.bf16.mxu0 %v1558
  %2258 = vmatpush1.bf16.msra.mxu0 %v1557
  %2259 = vmatprep.subr.bf16.mxu0 %v1560
  %2260 = vmatpush1.bf16.msra.mxu0 %v1559
  %2261 = vmatprep.subr.bf16.mxu0 %v1562
  %2262 = vmatpush1.bf16.msra.mxu0 %v1561
  %2263 = vmatprep.subr.bf16.mxu0 %v1564
  %2264 = vmatpush1.bf16.msra.mxu0 %v1563
  %2265 = vmatprep.subr.bf16.mxu0 %v1566
  %2266 = vmatpush1.bf16.msra.mxu0 %v1565
  %2267 = vmatprep.subr.bf16.mxu0 %v1568
  %2268 = vmatpush1.bf16.msra.mxu0 %v1567
  %2269 = vmatprep.subr.bf16.mxu0 %v1570
  %2270 = vmatpush1.bf16.msra.mxu0 %v1569
  %2271 = vmatprep.subr.bf16.mxu0 %v1572
  %2272 = vmatpush1.bf16.msra.mxu0 %v1571
  %2273 = vmatprep.subr.bf16.mxu0 %v1574
  %2274 = vmatpush1.bf16.msra.mxu0 %v1573
  %2275 = vmatprep.subr.bf16.mxu0 %v1576
  %2276 = vmatpush1.bf16.msra.mxu0 %v1575
  %2277 = vmatprep.subr.bf16.mxu0 %v1578
  %2278 = vmatpush1.bf16.msra.mxu0 %v1577
  %2279 = vmatprep.mubr.bf16.mxu0 %v622
  %2280 = vmatmul.mubr.bf16.gmra.mrb[0].mxu0 %v621
  %v2281 = vpop.f32.mrb[0].mxu0
  %v2282 = vadd.f32 %v2179, %v2281
  %v2283 = vpop.f32.mrb[0].mxu0
  %v2284 = vadd.f32 %v2181, %v2283
  %v2285 = vpop.f32.mrb[0].mxu0
  %v2286 = vadd.f32 %v2183, %v2285
  %v2287 = vpop.f32.mrb[0].mxu0
  %v2288 = vadd.f32 %v2185, %v2287
  %2289 = vmatprep.mubr.bf16.mxu0 %v635
  %2290 = vmatmul.mubr.bf16.gmra.mrb[0].mxu0 %v634
  %v2291 = vpop.f32.mrb[0].mxu0
  %v2292 = vadd.f32 %v2189, %v2291
  %v2293 = vpop.f32.mrb[0].mxu0
  %v2294 = vadd.f32 %v2191, %v2293
  %v2295 = vpop.f32.mrb[0].mxu0
  %v2296 = vadd.f32 %v2193, %v2295
  %v2297 = vpop.f32.mrb[0].mxu0
  %v2298 = vadd.f32 %v2195, %v2297
  %2299 = vmatprep.mubr.bf16.mxu0 %v648
  %2300 = vmatmul.mubr.bf16.gmra.mrb[0].mxu0 %v647
  %v2301 = vpop.f32.mrb[0].mxu0
  %v2302 = vadd.f32 %v2199, %v2301
  %v2303 = vpop.f32.mrb[0].mxu0
  %v2304 = vadd.f32 %v2201, %v2303
  %v2305 = vpop.f32.mrb[0].mxu0
  %v2306 = vadd.f32 %v2203, %v2305
  %v2307 = vpop.f32.mrb[0].mxu0
  %v2308 = vadd.f32 %v2205, %v2307
  %2309 = vmatprep.mubr.bf16.mxu0 %v661
  %2310 = vmatmul.mubr.bf16.gmra.mrb[0].mxu0 %v660
  %v2311 = vpop.f32.mrb[0].mxu0
  %v2312 = vadd.f32 %v2209, %v2311
  %v2313 = vpop.f32.mrb[0].mxu0
  %v2314 = vadd.f32 %v2211, %v2313
  %v2315 = vpop.f32.mrb[0].mxu0
  %v2316 = vadd.f32 %v2213, %v2315
  %v2317 = vpop.f32.mrb[0].mxu0
  %v2318 = vadd.f32 %v2215, %v2317
  %2319 = vmatprep.mubr.bf16.mxu0 %v674
  %2320 = vmatmul.mubr.bf16.gmra.mrb[0].mxu0 %v673
  %v2321 = vpop.f32.mrb[0].mxu0
  %v2322 = vadd.f32 %v2219, %v2321
  %v2323 = vpop.f32.mrb[0].mxu0
  %v2324 = vadd.f32 %v2221, %v2323
  %v2325 = vpop.f32.mrb[0].mxu0
  %v2326 = vadd.f32 %v2223, %v2325
  %v2327 = vpop.f32.mrb[0].mxu0
  %v2328 = vadd.f32 %v2225, %v2327
  %2329 = vmatprep.mubr.bf16.mxu0 %v687
  %2330 = vmatmul.mubr.bf16.gmra.mrb[0].mxu0 %v686
  %v2331 = vpop.f32.mrb[0].mxu0
  %v2332 = vadd.f32 %v2229, %v2331
  %v2333 = vpop.f32.mrb[0].mxu0
  %v2334 = vadd.f32 %v2231, %v2333
  %v2335 = vpop.f32.mrb[0].mxu0
  %v2336 = vadd.f32 %v2233, %v2335
  %v2337 = vpop.f32.mrb[0].mxu0
  %v2338 = vadd.f32 %v2235, %v2337
  %2339 = vmatprep.mubr.bf16.mxu0 %v700
  %2340 = vmatmul.mubr.bf16.gmra.mrb[0].mxu0 %v699
  %v2341 = vpop.f32.mrb[0].mxu0
  %v2342 = vadd.f32 %v2239, %v2341
  %v2343 = vpop.f32.mrb[0].mxu0
  %v2344 = vadd.f32 %v2241, %v2343
  %v2345 = vpop.f32.mrb[0].mxu0
  %v2346 = vadd.f32 %v2243, %v2345
  %v2347 = vpop.f32.mrb[0].mxu0
  %v2348 = vadd.f32 %v2245, %v2347
  %2349 = vdwg.mxu0
  %2350 = vmatprep.subr.bf16.mxu0 %v1580
  %2351 = vmatpush1.bf16.msra.mxu0 %v1579
  %2352 = vmatprep.subr.bf16.mxu0 %v1582
  %2353 = vmatpush1.bf16.msra.mxu0 %v1581
  %2354 = vmatprep.subr.bf16.mxu0 %v1584
  %2355 = vmatpush1.bf16.msra.mxu0 %v1583
  %2356 = vmatprep.subr.bf16.mxu0 %v1586
  %2357 = vmatpush1.bf16.msra.mxu0 %v1585
  %2358 = vmatprep.subr.bf16.mxu0 %v1588
  %2359 = vmatpush1.bf16.msra.mxu0 %v1587
  %2360 = vmatprep.subr.bf16.mxu0 %v1590
  %2361 = vmatpush1.bf16.msra.mxu0 %v1589
  %2362 = vmatprep.subr.bf16.mxu0 %v1592
  %2363 = vmatpush1.bf16.msra.mxu0 %v1591
  %2364 = vmatprep.subr.bf16.mxu0 %v1594
  %2365 = vmatpush1.bf16.msra.mxu0 %v1593
  %2366 = vmatprep.subr.bf16.mxu0 %v1596
  %2367 = vmatpush1.bf16.msra.mxu0 %v1595
  %2368 = vmatprep.subr.bf16.mxu0 %v1598
  %2369 = vmatpush1.bf16.msra.mxu0 %v1597
  %2370 = vmatprep.subr.bf16.mxu0 %v1600
  %2371 = vmatpush1.bf16.msra.mxu0 %v1599
  %2372 = vmatprep.subr.bf16.mxu0 %v1602
  %2373 = vmatpush1.bf16.msra.mxu0 %v1601
  %2374 = vmatprep.subr.bf16.mxu0 %v1604
  %2375 = vmatpush1.bf16.msra.mxu0 %v1603
  %2376 = vmatprep.subr.bf16.mxu0 %v1606
  %2377 = vmatpush1.bf16.msra.mxu0 %v1605
  %2378 = vmatprep.subr.bf16.mxu0 %v1608
  %2379 = vmatpush1.bf16.msra.mxu0 %v1607
  %2380 = vmatprep.subr.bf16.mxu0 %v1610
  %2381 = vmatpush1.bf16.msra.mxu0 %v1609
  %2382 = vmatprep.mubr.bf16.mxu0 %v624
  %2383 = vmatmul.mubr.bf16.gmra.mrb[0].mxu0 %v623
  %v2384 = vpop.f32.mrb[0].mxu0
  %v2385 = vadd.f32 %v2282, %v2384
  %v2386 = vpop.f32.mrb[0].mxu0
  %v2387 = vadd.f32 %v2284, %v2386
  %v2388 = vpop.f32.mrb[0].mxu0
  %v2389 = vadd.f32 %v2286, %v2388
  %v2390 = vpop.f32.mrb[0].mxu0
  %v2391 = vadd.f32 %v2288, %v2390
  %2392 = vmatprep.mubr.bf16.mxu0 %v637
  %2393 = vmatmul.mubr.bf16.gmra.mrb[0].mxu0 %v636
  %v2394 = vpop.f32.mrb[0].mxu0
  %v2395 = vadd.f32 %v2292, %v2394
  %v2396 = vpop.f32.mrb[0].mxu0
  %v2397 = vadd.f32 %v2294, %v2396
  %v2398 = vpop.f32.mrb[0].mxu0
  %v2399 = vadd.f32 %v2296, %v2398
  %v2400 = vpop.f32.mrb[0].mxu0
  %v2401 = vadd.f32 %v2298, %v2400
  %2402 = vmatprep.mubr.bf16.mxu0 %v650
  %2403 = vmatmul.mubr.bf16.gmra.mrb[0].mxu0 %v649
  %v2404 = vpop.f32.mrb[0].mxu0
  %v2405 = vadd.f32 %v2302, %v2404
  %v2406 = vpop.f32.mrb[0].mxu0
  %v2407 = vadd.f32 %v2304, %v2406
  %v2408 = vpop.f32.mrb[0].mxu0
  %v2409 = vadd.f32 %v2306, %v2408
  %v2410 = vpop.f32.mrb[0].mxu0
  %v2411 = vadd.f32 %v2308, %v2410
  %2412 = vmatprep.mubr.bf16.mxu0 %v663
  %2413 = vmatmul.mubr.bf16.gmra.mrb[0].mxu0 %v662
  %v2414 = vpop.f32.mrb[0].mxu0
  %v2415 = vadd.f32 %v2312, %v2414
  %v2416 = vpop.f32.mrb[0].mxu0
  %v2417 = vadd.f32 %v2314, %v2416
  %v2418 = vpop.f32.mrb[0].mxu0
  %v2419 = vadd.f32 %v2316, %v2418
  %v2420 = vpop.f32.mrb[0].mxu0
  %v2421 = vadd.f32 %v2318, %v2420
  %2422 = vmatprep.mubr.bf16.mxu0 %v676
  %2423 = vmatmul.mubr.bf16.gmra.mrb[0].mxu0 %v675
  %v2424 = vpop.f32.mrb[0].mxu0
  %v2425 = vadd.f32 %v2322, %v2424
  %v2426 = vpop.f32.mrb[0].mxu0
  %v2427 = vadd.f32 %v2324, %v2426
  %v2428 = vpop.f32.mrb[0].mxu0
  %v2429 = vadd.f32 %v2326, %v2428
  %v2430 = vpop.f32.mrb[0].mxu0
  %v2431 = vadd.f32 %v2328, %v2430
  %2432 = vmatprep.mubr.bf16.mxu0 %v689
  %2433 = vmatmul.mubr.bf16.gmra.mrb[0].mxu0 %v688
  %v2434 = vpop.f32.mrb[0].mxu0
  %v2435 = vadd.f32 %v2332, %v2434
  %v2436 = vpop.f32.mrb[0].mxu0
  %v2437 = vadd.f32 %v2334, %v2436
  %v2438 = vpop.f32.mrb[0].mxu0
  %v2439 = vadd.f32 %v2336, %v2438
  %v2440 = vpop.f32.mrb[0].mxu0
  %v2441 = vadd.f32 %v2338, %v2440
  %2442 = vmatprep.mubr.bf16.mxu0 %v702
  %2443 = vmatmul.mubr.bf16.gmra.mrb[0].mxu0 %v701
  %v2444 = vpop.f32.mrb[0].mxu0
  %v2445 = vadd.f32 %v2342, %v2444
  %v2446 = vpop.f32.mrb[0].mxu0
  %v2447 = vadd.f32 %v2344, %v2446
  %v2448 = vpop.f32.mrb[0].mxu0
  %v2449 = vadd.f32 %v2346, %v2448
  %v2450 = vpop.f32.mrb[0].mxu0
  %v2451 = vadd.f32 %v2348, %v2450
  %2452 = vdwg.mxu0
  %2453 = vmatprep.subr.bf16.mxu0 %v1612
  %2454 = vmatpush1.bf16.msra.mxu0 %v1611
  %2455 = vmatprep.subr.bf16.mxu0 %v1614
  %2456 = vmatpush1.bf16.msra.mxu0 %v1613
  %2457 = vmatprep.subr.bf16.mxu0 %v1616
  %2458 = vmatpush1.bf16.msra.mxu0 %v1615
  %2459 = vmatprep.subr.bf16.mxu0 %v1618
  %2460 = vmatpush1.bf16.msra.mxu0 %v1617
  %2461 = vmatprep.subr.bf16.mxu0 %v1620
  %2462 = vmatpush1.bf16.msra.mxu0 %v1619
  %2463 = vmatprep.subr.bf16.mxu0 %v1622
  %2464 = vmatpush1.bf16.msra.mxu0 %v1621
  %2465 = vmatprep.subr.bf16.mxu0 %v1624
  %2466 = vmatpush1.bf16.msra.mxu0 %v1623
  %2467 = vmatprep.subr.bf16.mxu0 %v1626
  %2468 = vmatpush1.bf16.msra.mxu0 %v1625
  %2469 = vmatprep.subr.bf16.mxu0 0
  %2470 = vmatpush1.bf16.msra.mxu0 0
  %2471 = vmatprep.subr.bf16.mxu0 0
  %2472 = vmatpush1.bf16.msra.mxu0 0
  %2473 = vmatprep.subr.bf16.mxu0 0
  %2474 = vmatpush1.bf16.msra.mxu0 0
  %2475 = vmatprep.subr.bf16.mxu0 0
  %2476 = vmatpush1.bf16.msra.mxu0 0
  %2477 = vmatprep.subr.bf16.mxu0 0
  %2478 = vmatpush1.bf16.msra.mxu0 0
  %2479 = vmatprep.subr.bf16.mxu0 0
  %2480 = vmatpush1.bf16.msra.mxu0 0
  %2481 = vmatprep.subr.bf16.mxu0 0
  %2482 = vmatpush1.bf16.msra.mxu0 0
  %2483 = vmatprep.subr.bf16.mxu0 0
  %2484 = vmatpush1.bf16.msra.mxu0 0
  %2485 = vmatprep.mubr.bf16.mxu0 0
  %2486 = vmatmul.mubr.bf16.gmra.mrb[0].mxu0 %v625
  %v2487 = vpop.f32.mrb[0].mxu0
  %v2488 = vadd.f32 %v2385, %v2487
  %v2489 = vpop.f32.mrb[0].mxu0
  %v2490 = vadd.f32 %v2387, %v2489
  %v2491 = vpop.f32.mrb[0].mxu0
  %v2492 = vadd.f32 %v2389, %v2491
  %v2493 = vpop.f32.mrb[0].mxu0
  %v2494 = vadd.f32 %v2391, %v2493
  %2495 = vmatprep.mubr.bf16.mxu0 0
  %2496 = vmatmul.mubr.bf16.gmra.mrb[0].mxu0 %v638
  %v2497 = vpop.f32.mrb[0].mxu0
  %v2498 = vadd.f32 %v2395, %v2497
  %v2499 = vpop.f32.mrb[0].mxu0
  %v2500 = vadd.f32 %v2397, %v2499
  %v2501 = vpop.f32.mrb[0].mxu0
  %v2502 = vadd.f32 %v2399, %v2501
  %v2503 = vpop.f32.mrb[0].mxu0
  %v2504 = vadd.f32 %v2401, %v2503
  %2505 = vmatprep.mubr.bf16.mxu0 0
  %2506 = vmatmul.mubr.bf16.gmra.mrb[0].mxu0 %v651
  %v2507 = vpop.f32.mrb[0].mxu0
  %v2508 = vadd.f32 %v2405, %v2507
  %v2509 = vpop.f32.mrb[0].mxu0
  %v2510 = vadd.f32 %v2407, %v2509
  %v2511 = vpop.f32.mrb[0].mxu0
  %v2512 = vadd.f32 %v2409, %v2511
  %v2513 = vpop.f32.mrb[0].mxu0
  %v2514 = vadd.f32 %v2411, %v2513
  %2515 = vmatprep.mubr.bf16.mxu0 0
  %2516 = vmatmul.mubr.bf16.gmra.mrb[0].mxu0 %v664
  %v2517 = vpop.f32.mrb[0].mxu0
  %v2518 = vadd.f32 %v2415, %v2517
  %v2519 = vpop.f32.mrb[0].mxu0
  %v2520 = vadd.f32 %v2417, %v2519
  %v2521 = vpop.f32.mrb[0].mxu0
  %v2522 = vadd.f32 %v2419, %v2521
  %v2523 = vpop.f32.mrb[0].mxu0
  %v2524 = vadd.f32 %v2421, %v2523
  %2525 = vmatprep.mubr.bf16.mxu0 0
  %2526 = vmatmul.mubr.bf16.gmra.mrb[0].mxu0 %v677
  %v2527 = vpop.f32.mrb[0].mxu0
  %v2528 = vadd.f32 %v2425, %v2527
  %v2529 = vpop.f32.mrb[0].mxu0
  %v2530 = vadd.f32 %v2427, %v2529
  %v2531 = vpop.f32.mrb[0].mxu0
  %v2532 = vadd.f32 %v2429, %v2531
  %v2533 = vpop.f32.mrb[0].mxu0
  %v2534 = vadd.f32 %v2431, %v2533
  %2535 = vmatprep.mubr.bf16.mxu0 0
  %2536 = vmatmul.mubr.bf16.gmra.mrb[0].mxu0 %v690
  %v2537 = vpop.f32.mrb[0].mxu0
  %v2538 = vadd.f32 %v2435, %v2537
  %v2539 = vpop.f32.mrb[0].mxu0
  %v2540 = vadd.f32 %v2437, %v2539
  %v2541 = vpop.f32.mrb[0].mxu0
  %v2542 = vadd.f32 %v2439, %v2541
  %v2543 = vpop.f32.mrb[0].mxu0
  %v2544 = vadd.f32 %v2441, %v2543
  %2545 = vmatprep.mubr.bf16.mxu0 0
  %2546 = vmatmul.mubr.bf16.gmra.mrb[0].mxu0 %v703
  %v2547 = vpop.f32.mrb[0].mxu0
  %v2548 = vadd.f32 %v2445, %v2547
  %v2549 = vpop.f32.mrb[0].mxu0
  %v2550 = vadd.f32 %v2447, %v2549
  %v2551 = vpop.f32.mrb[0].mxu0
  %v2552 = vadd.f32 %v2449, %v2551
  %v2553 = vpop.f32.mrb[0].mxu0
  %v2554 = vadd.f32 %v2451, %v2553
  %2555 = vdwg.mxu0
  %v2556 = vmax.f32 %v2488, 0.0
  %v2557 = vmax.f32 %v2490, 0.0
  %v2558 = vmax.f32 %v2492, 0.0
  %v2559 = vmax.f32 %v2494, 0.0
  %v2560 = vmax.f32 %v2498, 0.0
  %v2561 = vmax.f32 %v2500, 0.0
  %v2562 = vmax.f32 %v2502, 0.0
  %v2563 = vmax.f32 %v2504, 0.0
  %v2564 = vmax.f32 %v2508, 0.0
  %v2565 = vmax.f32 %v2510, 0.0
  %v2566 = vmax.f32 %v2512, 0.0
  %v2567 = vmax.f32 %v2514, 0.0
  %v2568 = vmax.f32 %v2518, 0.0
  %v2569 = vmax.f32 %v2520, 0.0
  %v2570 = vmax.f32 %v2522, 0.0
  %v2571 = vmax.f32 %v2524, 0.0
  %v2572 = vmax.f32 %v2528, 0.0
  %v2573 = vmax.f32 %v2530, 0.0
  %v2574 = vmax.f32 %v2532, 0.0
  %v2575 = vmax.f32 %v2534, 0.0
  %v2576 = vmax.f32 %v2538, 0.0
  %v2577 = vmax.f32 %v2540, 0.0
  %v2578 = vmax.f32 %v2542, 0.0
  %v2579 = vmax.f32 %v2544, 0.0
  %v2580 = vmax.f32 %v2548, 0.0
  %v2581 = vmax.f32 %v2550, 0.0
  %v2582 = vmax.f32 %v2552, 0.0
  %v2583 = vmax.f32 %v2554, 0.0
  %2584 = vst [vmem:[%s3] sm:$0xff] %v2556
  %2585 = vst [vmem:[%s3 + $0x8] sm:$0xff] %v2557
  %2586 = vst [vmem:[%s3 + $0x10] sm:$0xff] %v2558
  %2587 = vst [vmem:[%s3 + $0x18] sm:$0xff] %v2559
  %2588 = vst [vmem:[%s3 + $0x20] sm:$0xff] %v2560
  %2589 = vst [vmem:[%s3 + $0x28] sm:$0xff] %v2561
  %2590 = vst [vmem:[%s3 + $0x30] sm:$0xff] %v2562
  %2591 = vst [vmem:[%s3 + $0x38] sm:$0xff] %v2563
  %2592 = vst [vmem:[%s3 + $0x40] sm:$0xff] %v2564
  %2593 = vst [vmem:[%s3 + $0x48] sm:$0xff] %v2565
  %2594 = vst [vmem:[%s3 + $0x50] sm:$0xff] %v2566
  %2595 = vst [vmem:[%s3 + $0x58] sm:$0xff] %v2567
  %2596 = vst [vmem:[%s3 + $0x60] sm:$0xff] %v2568
  %2597 = vst [vmem:[%s3 + $0x68] sm:$0xff] %v2569
  %2598 = vst [vmem:[%s3 + $0x70] sm:$0xff] %v2570
  %2599 = vst [vmem:[%s3 + $0x78] sm:$0xff] %v2571
  %2600 = vst [vmem:[%s3 + $0x80] sm:$0xff] %v2572
  %2601 = vst [vmem:[%s3 + $0x88] sm:$0xff] %v2573
  %2602 = vst [vmem:[%s3 + $0x90] sm:$0xff] %v2574
  %2603 = vst [vmem:[%s3 + $0x98] sm:$0xff] %v2575
  %2604 = vst [vmem:[%s3 + $0xa0] sm:$0xff] %v2576
  %2605 = vst [vmem:[%s3 + $0xa8] sm:$0xff] %v2577
  %2606 = vst [vmem:[%s3 + $0xb0] sm:$0xff] %v2578
  %2607 = vst [vmem:[%s3 + $0xb8] sm:$0xff] %v2579
  %2608 = vst [vmem:[%s3 + $0xc0] sm:$0xff] %v2580
  %2609 = vst [vmem:[%s3 + $0xc8] sm:$0xff] %v2581
  %2610 = vst [vmem:[%s3 + $0xd0] sm:$0xff] %v2582
  %2611 = vst [vmem:[%s3 + $0xd8] sm:$0xff] %v2583
  // Predicated region
  $region14: #{inception_d.8} parent=0 // pred_check
    _
  $region15: #{inception_d.8} parent=0 // pred_check_branch
    %2613 = sbr.rel (0) target = $region17
  $region16: #{inception_d.8} parent=0 // pred_region
    _
  $region17: #{inception_d.8} parent=0 // pred_fallthru
    _
  // Predicated region
  $region18: #{inception_d.8} parent=0 // pred_check
    _
  $region19: #{inception_d.8} parent=0 // pred_check_branch
    %2615 = sbr.rel (0) target = $region21
  $region20: #{inception_d.8} parent=0 // pred_region
    _
  $region21: #{inception_d.8} parent=0 // pred_fallthru
    _

// kernel: inception_d.6
$region0: #{inception_d.6}
  #allocation0 [shape = 'u32[]', space=smem, size = 0x4, offset = 0x4, fixed_abs, tag = 'smem constant byte address 0x4 - core index']
  #allocation1 [shape = 'u32[144,128]{1,0:T(1,128)}', space=vmem, size = 0x12000, scoped, tag = 'internal scratch']
  %s0 = inlined_call_operand.vmem [shape: bf16[112,640], index: 0, kind: input, shape index: {}]
  %s1 = inlined_call_operand.vmem [shape: bf16[640,384], index: 1, kind: input, shape index: {}]
  %s2 = inlined_call_operand.vmem [shape: f32[1,384], index: 2, kind: input, shape index: {}]
  %s3 = inlined_call_operand.vmem [shape: f32[112,384], index: 3, kind: output, shape index: {}]
  %s4 = sld [smem:[#allocation0]]
  $region22: #{inception_d.6} parent=0
    _
  %s6 = ssub.s32 1, %s4
  %s7 = scalar_select 0, %s6, %s4
  // Predicated region
  $region2: #{inception_d.6} parent=0 // pred_check
    _
  $region3: #{inception_d.6} parent=0 // pred_check_branch
    %9 = sbr.rel (0) target = $region5
  $region4: #{inception_d.6} parent=0 // pred_region
    _
  $region5: #{inception_d.6} parent=0 // pred_fallthru
    _
  // Predicated region
  $region6: #{inception_d.6} parent=0 // pred_check
    _
  $region7: #{inception_d.6} parent=0 // pred_check_branch
    %11 = sbr.rel (0) target = $region9
  $region8: #{inception_d.6} parent=0 // pred_region
    _
  $region9: #{inception_d.6} parent=0 // pred_fallthru
    _
  // Predicated region
  $region10: #{inception_d.6} parent=0 // pred_check
    _
  $region11: #{inception_d.6} parent=0 // pred_check_branch
    %13 = sbr.rel (0) target = $region13
  $region12: #{inception_d.6} parent=0 // pred_region
    _
  $region13: #{inception_d.6} parent=0 // pred_fallthru
    _
  %v15 = vld [vmem:[%s0] sm:$0xff]
  %v16 = vld [vmem:[%s0 + $0x8] sm:$0xff]
  %v17 = vld [vmem:[%s0 + $0x10] sm:$0xf]
  %v18 = vld [vmem:[%s0 + $0x14] sm:$0xff]
  %v19 = vld [vmem:[%s0 + $0x1c] sm:$0xff]
  %v20 = vld [vmem:[%s0 + $0x24] sm:$0xf]
  %v21 = vld [vmem:[%s0 + $0x28] sm:$0xff]
  %v22 = vld [vmem:[%s0 + $0x30] sm:$0xff]
  %v23 = vld [vmem:[%s0 + $0x38] sm:$0xf]
  %v24 = vld [vmem:[%s0 + $0x3c] sm:$0xff]
  %v25 = vld [vmem:[%s0 + $0x44] sm:$0xff]
  %v26 = vld [vmem:[%s0 + $0x4c] sm:$0xf]
  %v27 = vld [vmem:[%s0 + $0x50] sm:$0xff]
  %v28 = vld [vmem:[%s0 + $0x58] sm:$0xff]
  %v29 = vld [vmem:[%s0 + $0x60] sm:$0xf]
  %v30 = vld [vmem:[%s0 + $0x64] sm:$0xff]
  %v31 = vld [vmem:[%s0 + $0x6c] sm:$0xff]
  %v32 = vld [vmem:[%s0 + $0x74] sm:$0xf]
  %v33 = vld [vmem:[%s0 + $0x78] sm:$0xff]
  %v34 = vld [vmem:[%s0 + $0x80] sm:$0xff]
  %v35 = vld [vmem:[%s0 + $0x88] sm:$0xf]
  %v36 = vld [vmem:[%s0 + $0x8c] sm:$0xff]
  %v37 = vld [vmem:[%s0 + $0x94] sm:$0xff]
  %v38 = vld [vmem:[%s0 + $0x9c] sm:$0xf]
  %v39 = vld [vmem:[%s0 + $0xa0] sm:$0xff]
  %v40 = vld [vmem:[%s0 + $0xa8] sm:$0xff]
  %v41 = vld [vmem:[%s0 + $0xb0] sm:$0xf]
  %v42 = vld [vmem:[%s0 + $0xb4] sm:$0xff]
  %v43 = vld [vmem:[%s0 + $0xbc] sm:$0xff]
  %v44 = vld [vmem:[%s0 + $0xc4] sm:$0xf]
  %v45 = vld [vmem:[%s0 + $0xc8] sm:$0xff]
  %v46 = vld [vmem:[%s0 + $0xd0] sm:$0xff]
  %v47 = vld [vmem:[%s0 + $0xd8] sm:$0xf]
  %v48 = vld [vmem:[%s0 + $0xdc] sm:$0xff]
  %v49 = vld [vmem:[%s0 + $0xe4] sm:$0xff]
  %v50 = vld [vmem:[%s0 + $0xec] sm:$0xf]
  %v51 = vld [vmem:[%s0 + $0xf0] sm:$0xff]
  %v52 = vld [vmem:[%s0 + $0xf8] sm:$0xff]
  %v53 = vld [vmem:[%s0 + $0x100] sm:$0xf]
  %v54 = vld [vmem:[%s0 + $0x104] sm:$0xff]
  %v55 = vld [vmem:[%s0 + $0x10c] sm:$0xff]
  %v56 = vld [vmem:[%s0 + $0x114] sm:$0xf]
  %v57 = vld [vmem:[%s1] sm:$0xff]
  %v58 = vld [vmem:[%s1 + $0x8] sm:$0xf]
  %v59 = vld [vmem:[%s1 + $0xc] sm:$0xff]
  %v60 = vld [vmem:[%s1 + $0x14] sm:$0xf]
  %v61 = vld [vmem:[%s1 + $0x18] sm:$0xff]
  %v62 = vld [vmem:[%s1 + $0x20] sm:$0xf]
  %v63 = vld [vmem:[%s1 + $0x24] sm:$0xff]
  %v64 = vld [vmem:[%s1 + $0x2c] sm:$0xf]
  %v65 = vld [vmem:[%s1 + $0x30] sm:$0xff]
  %v66 = vld [vmem:[%s1 + $0x38] sm:$0xf]
  %v67 = vld [vmem:[%s1 + $0x3c] sm:$0xff]
  %v68 = vld [vmem:[%s1 + $0x44] sm:$0xf]
  %v69 = vld [vmem:[%s1 + $0x48] sm:$0xff]
  %v70 = vld [vmem:[%s1 + $0x50] sm:$0xf]
  %v71 = vld [vmem:[%s1 + $0x54] sm:$0xff]
  %v72 = vld [vmem:[%s1 + $0x5c] sm:$0xf]
  %v73 = vld [vmem:[%s1 + $0x60] sm:$0xff]
  %v74 = vld [vmem:[%s1 + $0x68] sm:$0xf]
  %v75 = vld [vmem:[%s1 + $0x6c] sm:$0xff]
  %v76 = vld [vmem:[%s1 + $0x74] sm:$0xf]
  %v77 = vld [vmem:[%s1 + $0x78] sm:$0xff]
  %v78 = vld [vmem:[%s1 + $0x80] sm:$0xf]
  %v79 = vld [vmem:[%s1 + $0x84] sm:$0xff]
  %v80 = vld [vmem:[%s1 + $0x8c] sm:$0xf]
  %v81 = vld [vmem:[%s1 + $0x90] sm:$0xff]
  %v82 = vld [vmem:[%s1 + $0x98] sm:$0xf]
  %v83 = vld [vmem:[%s1 + $0x9c] sm:$0xff]
  %v84 = vld [vmem:[%s1 + $0xa4] sm:$0xf]
  %v85 = vld [vmem:[%s1 + $0xa8] sm:$0xff]
  %v86 = vld [vmem:[%s1 + $0xb0] sm:$0xf]
  %v87 = vld [vmem:[%s1 + $0xb4] sm:$0xff]
  %v88 = vld [vmem:[%s1 + $0xbc] sm:$0xf]
  %v89 = vld [vmem:[%s1 + $0xc0] sm:$0xff]
  %v90 = vld [vmem:[%s1 + $0xc8] sm:$0xf]
  %v91 = vld [vmem:[%s1 + $0xcc] sm:$0xff]
  %v92 = vld [vmem:[%s1 + $0xd4] sm:$0xf]
  %v93 = vld [vmem:[%s1 + $0xd8] sm:$0xff]
  %v94 = vld [vmem:[%s1 + $0xe0] sm:$0xf]
  %v95 = vld [vmem:[%s1 + $0xe4] sm:$0xff]
  %v96 = vld [vmem:[%s1 + $0xec] sm:$0xf]
  %v97 = vld [vmem:[%s1 + $0xf0] sm:$0xff]
  %v98 = vld [vmem:[%s1 + $0xf8] sm:$0xf]
  %v99 = vld [vmem:[%s1 + $0xfc] sm:$0xff]
  %v100 = vld [vmem:[%s1 + $0x104] sm:$0xf]
  %v101 = vld [vmem:[%s1 + $0x108] sm:$0xff]
  %v102 = vld [vmem:[%s1 + $0x110] sm:$0xf]
  %v103 = vld [vmem:[%s1 + $0x114] sm:$0xff]
  %v104 = vld [vmem:[%s1 + $0x11c] sm:$0xf]
  %v105 = vld [vmem:[%s1 + $0x120] sm:$0xff]
  %v106 = vld [vmem:[%s1 + $0x128] sm:$0xf]
  %v107 = vld [vmem:[%s1 + $0x12c] sm:$0xff]
  %v108 = vld [vmem:[%s1 + $0x134] sm:$0xf]
  %v109 = vld [vmem:[%s1 + $0x138] sm:$0xff]
  %v110 = vld [vmem:[%s1 + $0x140] sm:$0xf]
  %v111 = vld [vmem:[%s1 + $0x144] sm:$0xff]
  %v112 = vld [vmem:[%s1 + $0x14c] sm:$0xf]
  %v113 = vld [vmem:[%s1 + $0x150] sm:$0xff]
  %v114 = vld [vmem:[%s1 + $0x158] sm:$0xf]
  %v115 = vld [vmem:[%s1 + $0x15c] sm:$0xff]
  %v116 = vld [vmem:[%s1 + $0x164] sm:$0xf]
  %v117 = vld [vmem:[%s1 + $0x168] sm:$0xff]
  %v118 = vld [vmem:[%s1 + $0x170] sm:$0xf]
  %v119 = vld [vmem:[%s1 + $0x174] sm:$0xff]
  %v120 = vld [vmem:[%s1 + $0x17c] sm:$0xf]
  %v121 = vld [vmem:[%s1 + $0x180] sm:$0xff]
  %v122 = vld [vmem:[%s1 + $0x188] sm:$0xf]
  %v123 = vld [vmem:[%s1 + $0x18c] sm:$0xff]
  %v124 = vld [vmem:[%s1 + $0x194] sm:$0xf]
  %v125 = vld [vmem:[%s1 + $0x198] sm:$0xff]
  %v126 = vld [vmem:[%s1 + $0x1a0] sm:$0xf]
  %v127 = vld [vmem:[%s1 + $0x1a4] sm:$0xff]
  %v128 = vld [vmem:[%s1 + $0x1ac] sm:$0xf]
  %v129 = vld [vmem:[%s1 + $0x1b0] sm:$0xff]
  %v130 = vld [vmem:[%s1 + $0x1b8] sm:$0xf]
  %v131 = vld [vmem:[%s1 + $0x1bc] sm:$0xff]
  %v132 = vld [vmem:[%s1 + $0x1c4] sm:$0xf]
  %v133 = vld [vmem:[%s1 + $0x1c8] sm:$0xff]
  %v134 = vld [vmem:[%s1 + $0x1d0] sm:$0xf]
  %v135 = vld [vmem:[%s1 + $0x1d4] sm:$0xff]
  %v136 = vld [vmem:[%s1 + $0x1dc] sm:$0xf]
  %v137 = vld [vmem:[%s1 + $0x1e0] sm:$0xff]
  %v138 = vld [vmem:[%s1 + $0x1e8] sm:$0xf]
  %v139 = vld [vmem:[%s1 + $0x1ec] sm:$0xff]
  %v140 = vld [vmem:[%s1 + $0x1f4] sm:$0xf]
  %v141 = vld [vmem:[%s1 + $0x1f8] sm:$0xff]
  %v142 = vld [vmem:[%s1 + $0x200] sm:$0xf]
  %v143 = vld [vmem:[%s1 + $0x204] sm:$0xff]
  %v144 = vld [vmem:[%s1 + $0x20c] sm:$0xf]
  %v145 = vld [vmem:[%s1 + $0x210] sm:$0xff]
  %v146 = vld [vmem:[%s1 + $0x218] sm:$0xf]
  %v147 = vld [vmem:[%s1 + $0x21c] sm:$0xff]
  %v148 = vld [vmem:[%s1 + $0x224] sm:$0xf]
  %v149 = vld [vmem:[%s1 + $0x228] sm:$0xff]
  %v150 = vld [vmem:[%s1 + $0x230] sm:$0xf]
  %v151 = vld [vmem:[%s1 + $0x234] sm:$0xff]
  %v152 = vld [vmem:[%s1 + $0x23c] sm:$0xf]
  %v153 = vld [vmem:[%s1 + $0x240] sm:$0xff]
  %v154 = vld [vmem:[%s1 + $0x248] sm:$0xf]
  %v155 = vld [vmem:[%s1 + $0x24c] sm:$0xff]
  %v156 = vld [vmem:[%s1 + $0x254] sm:$0xf]
  %v157 = vld [vmem:[%s1 + $0x258] sm:$0xff]
  %v158 = vld [vmem:[%s1 + $0x260] sm:$0xf]
  %v159 = vld [vmem:[%s1 + $0x264] sm:$0xff]
  %v160 = vld [vmem:[%s1 + $0x26c] sm:$0xf]
  %v161 = vld [vmem:[%s1 + $0x270] sm:$0xff]
  %v162 = vld [vmem:[%s1 + $0x278] sm:$0xf]
  %v163 = vld [vmem:[%s1 + $0x27c] sm:$0xff]
  %v164 = vld [vmem:[%s1 + $0x284] sm:$0xf]
  %v165 = vld [vmem:[%s1 + $0x288] sm:$0xff]
  %v166 = vld [vmem:[%s1 + $0x290] sm:$0xf]
  %v167 = vld [vmem:[%s1 + $0x294] sm:$0xff]
  %v168 = vld [vmem:[%s1 + $0x29c] sm:$0xf]
  %v169 = vld [vmem:[%s1 + $0x2a0] sm:$0xff]
  %v170 = vld [vmem:[%s1 + $0x2a8] sm:$0xf]
  %v171 = vld [vmem:[%s1 + $0x2ac] sm:$0xff]
  %v172 = vld [vmem:[%s1 + $0x2b4] sm:$0xf]
  %v173 = vld [vmem:[%s1 + $0x2b8] sm:$0xff]
  %v174 = vld [vmem:[%s1 + $0x2c0] sm:$0xf]
  %v175 = vld [vmem:[%s1 + $0x2c4] sm:$0xff]
  %v176 = vld [vmem:[%s1 + $0x2cc] sm:$0xf]
  %v177 = vld [vmem:[%s1 + $0x2d0] sm:$0xff]
  %v178 = vld [vmem:[%s1 + $0x2d8] sm:$0xf]
  %v179 = vld [vmem:[%s1 + $0x2dc] sm:$0xff]
  %v180 = vld [vmem:[%s1 + $0x2e4] sm:$0xf]
  %v181 = vld [vmem:[%s1 + $0x2e8] sm:$0xff]
  %v182 = vld [vmem:[%s1 + $0x2f0] sm:$0xf]
  %v183 = vld [vmem:[%s1 + $0x2f4] sm:$0xff]
  %v184 = vld [vmem:[%s1 + $0x2fc] sm:$0xf]
  %v185 = vld [vmem:[%s1 + $0x300] sm:$0xff]
  %v186 = vld [vmem:[%s1 + $0x308] sm:$0xf]
  %v187 = vld [vmem:[%s1 + $0x30c] sm:$0xff]
  %v188 = vld [vmem:[%s1 + $0x314] sm:$0xf]
  %v189 = vld [vmem:[%s1 + $0x318] sm:$0xff]
  %v190 = vld [vmem:[%s1 + $0x320] sm:$0xf]
  %v191 = vld [vmem:[%s1 + $0x324] sm:$0xff]
  %v192 = vld [vmem:[%s1 + $0x32c] sm:$0xf]
  %v193 = vld [vmem:[%s1 + $0x330] sm:$0xff]
  %v194 = vld [vmem:[%s1 + $0x338] sm:$0xf]
  %v195 = vld [vmem:[%s1 + $0x33c] sm:$0xff]
  %v196 = vld [vmem:[%s1 + $0x344] sm:$0xf]
  %v197 = vld [vmem:[%s1 + $0x348] sm:$0xff]
  %v198 = vld [vmem:[%s1 + $0x350] sm:$0xf]
  %v199 = vld [vmem:[%s1 + $0x354] sm:$0xff]
  %v200 = vld [vmem:[%s1 + $0x35c] sm:$0xf]
  %v201 = vld [vmem:[%s1 + $0x360] sm:$0xff]
  %v202 = vld [vmem:[%s1 + $0x368] sm:$0xf]
  %v203 = vld [vmem:[%s1 + $0x36c] sm:$0xff]
  %v204 = vld [vmem:[%s1 + $0x374] sm:$0xf]
  %v205 = vld [vmem:[%s1 + $0x378] sm:$0xff]
  %v206 = vld [vmem:[%s1 + $0x380] sm:$0xf]
  %v207 = vld [vmem:[%s1 + $0x384] sm:$0xff]
  %v208 = vld [vmem:[%s1 + $0x38c] sm:$0xf]
  %v209 = vld [vmem:[%s1 + $0x390] sm:$0xff]
  %v210 = vld [vmem:[%s1 + $0x398] sm:$0xf]
  %v211 = vld [vmem:[%s1 + $0x39c] sm:$0xff]
  %v212 = vld [vmem:[%s1 + $0x3a4] sm:$0xf]
  %v213 = vld [vmem:[%s1 + $0x3a8] sm:$0xff]
  %v214 = vld [vmem:[%s1 + $0x3b0] sm:$0xf]
  %v215 = vld [vmem:[%s1 + $0x3b4] sm:$0xff]
  %v216 = vld [vmem:[%s1 + $0x3bc] sm:$0xf]
  %v217 = vld [vmem:[%s2] sm:$0x7]
  %v219 = vlaneseq
  %v220 = vshrl.u32 %v219, 7
  %v221 = vsub.s32 0, %v220
  %v222 = vrot.slane %v217, %v221
  %v223 = vlaneseq
  %v224 = vshrl.u32 %v223, 7
  %v225 = vsub.s32 1, %v224
  %v226 = vrot.slane %v217, %v225
  %v227 = vlaneseq
  %v228 = vshrl.u32 %v227, 7
  %v229 = vsub.s32 2, %v228
  %v230 = vrot.slane %v217, %v229
  %v276 = vunpack.c.l.b16 %v15
  %v277 = vunpack.c.h.b16 %v15
  %v278 = vunpack.c.l.b16 %v16
  %v279 = vunpack.c.h.b16 %v16
  %v280 = vunpack.c.l.b16 %v17
  %v281 = vunpack.c.l.b16 %v18
  %v282 = vunpack.c.h.b16 %v18
  %v283 = vunpack.c.l.b16 %v19
  %v284 = vunpack.c.h.b16 %v19
  %v285 = vunpack.c.l.b16 %v20
  %v286 = vunpack.c.l.b16 %v21
  %v287 = vunpack.c.h.b16 %v21
  %v288 = vunpack.c.l.b16 %v22
  %v289 = vunpack.c.h.b16 %v22
  %v290 = vunpack.c.l.b16 %v23
  %v291 = vunpack.c.l.b16 %v24
  %v292 = vunpack.c.h.b16 %v24
  %v293 = vunpack.c.l.b16 %v25
  %v294 = vunpack.c.h.b16 %v25
  %v295 = vunpack.c.l.b16 %v26
  %v296 = vunpack.c.l.b16 %v27
  %v297 = vunpack.c.h.b16 %v27
  %v298 = vunpack.c.l.b16 %v28
  %v299 = vunpack.c.h.b16 %v28
  %v300 = vunpack.c.l.b16 %v29
  %v301 = vunpack.c.l.b16 %v30
  %v302 = vunpack.c.h.b16 %v30
  %v303 = vunpack.c.l.b16 %v31
  %v304 = vunpack.c.h.b16 %v31
  %v305 = vunpack.c.l.b16 %v32
  %v306 = vunpack.c.l.b16 %v33
  %v307 = vunpack.c.h.b16 %v33
  %v308 = vunpack.c.l.b16 %v34
  %v309 = vunpack.c.h.b16 %v34
  %v310 = vunpack.c.l.b16 %v35
  %v311 = vunpack.c.l.b16 %v36
  %v312 = vunpack.c.h.b16 %v36
  %v313 = vunpack.c.l.b16 %v37
  %v314 = vunpack.c.h.b16 %v37
  %v315 = vunpack.c.l.b16 %v38
  %v316 = vunpack.c.l.b16 %v39
  %v317 = vunpack.c.h.b16 %v39
  %v318 = vunpack.c.l.b16 %v40
  %v319 = vunpack.c.h.b16 %v40
  %v320 = vunpack.c.l.b16 %v41
  %v321 = vunpack.c.l.b16 %v42
  %v322 = vunpack.c.h.b16 %v42
  %v323 = vunpack.c.l.b16 %v43
  %v324 = vunpack.c.h.b16 %v43
  %v325 = vunpack.c.l.b16 %v44
  %v326 = vunpack.c.l.b16 %v45
  %v327 = vunpack.c.h.b16 %v45
  %v328 = vunpack.c.l.b16 %v46
  %v329 = vunpack.c.h.b16 %v46
  %v330 = vunpack.c.l.b16 %v47
  %v331 = vunpack.c.l.b16 %v48
  %v332 = vunpack.c.h.b16 %v48
  %v333 = vunpack.c.l.b16 %v49
  %v334 = vunpack.c.h.b16 %v49
  %v335 = vunpack.c.l.b16 %v50
  %v336 = vunpack.c.l.b16 %v51
  %v337 = vunpack.c.h.b16 %v51
  %v338 = vunpack.c.l.b16 %v52
  %v339 = vunpack.c.h.b16 %v52
  %v340 = vunpack.c.l.b16 %v53
  %v341 = vunpack.c.l.b16 %v54
  %v342 = vunpack.c.h.b16 %v54
  %v343 = vunpack.c.l.b16 %v55
  %v344 = vunpack.c.h.b16 %v55
  %v345 = vunpack.c.l.b16 %v56
  %v346 = vpack.c.b16 %v281, %v276
  %v347 = vpack.c.b16 %v282, %v277
  %v348 = vpack.c.b16 %v283, %v278
  %v349 = vpack.c.b16 %v284, %v279
  %v350 = vpack.c.b16 %v285, %v280
  %v351 = vpack.c.b16 %v291, %v286
  %v352 = vpack.c.b16 %v292, %v287
  %v353 = vpack.c.b16 %v293, %v288
  %v354 = vpack.c.b16 %v294, %v289
  %v355 = vpack.c.b16 %v295, %v290
  %v356 = vpack.c.b16 %v301, %v296
  %v357 = vpack.c.b16 %v302, %v297
  %v358 = vpack.c.b16 %v303, %v298
  %v359 = vpack.c.b16 %v304, %v299
  %v360 = vpack.c.b16 %v305, %v300
  %v361 = vpack.c.b16 %v311, %v306
  %v362 = vpack.c.b16 %v312, %v307
  %v363 = vpack.c.b16 %v313, %v308
  %v364 = vpack.c.b16 %v314, %v309
  %v365 = vpack.c.b16 %v315, %v310
  %v366 = vpack.c.b16 %v321, %v316
  %v367 = vpack.c.b16 %v322, %v317
  %v368 = vpack.c.b16 %v323, %v318
  %v369 = vpack.c.b16 %v324, %v319
  %v370 = vpack.c.b16 %v325, %v320
  %v371 = vpack.c.b16 %v331, %v326
  %v372 = vpack.c.b16 %v332, %v327
  %v373 = vpack.c.b16 %v333, %v328
  %v374 = vpack.c.b16 %v334, %v329
  %v375 = vpack.c.b16 %v335, %v330
  %v376 = vpack.c.b16 %v341, %v336
  %v377 = vpack.c.b16 %v342, %v337
  %v378 = vpack.c.b16 %v343, %v338
  %v379 = vpack.c.b16 %v344, %v339
  %v380 = vpack.c.b16 %v345, %v340
  %v576 = vunpack.c.l.b16 %v57
  %v577 = vunpack.c.h.b16 %v57
  %v578 = vunpack.c.l.b16 %v58
  %v579 = vunpack.c.l.b16 %v59
  %v580 = vunpack.c.h.b16 %v59
  %v581 = vunpack.c.l.b16 %v60
  %v582 = vunpack.c.l.b16 %v61
  %v583 = vunpack.c.h.b16 %v61
  %v584 = vunpack.c.l.b16 %v62
  %v585 = vunpack.c.l.b16 %v63
  %v586 = vunpack.c.h.b16 %v63
  %v587 = vunpack.c.l.b16 %v64
  %v588 = vunpack.c.l.b16 %v65
  %v589 = vunpack.c.h.b16 %v65
  %v590 = vunpack.c.l.b16 %v66
  %v591 = vunpack.c.l.b16 %v67
  %v592 = vunpack.c.h.b16 %v67
  %v593 = vunpack.c.l.b16 %v68
  %v594 = vunpack.c.l.b16 %v69
  %v595 = vunpack.c.h.b16 %v69
  %v596 = vunpack.c.l.b16 %v70
  %v597 = vunpack.c.l.b16 %v71
  %v598 = vunpack.c.h.b16 %v71
  %v599 = vunpack.c.l.b16 %v72
  %v600 = vunpack.c.l.b16 %v73
  %v601 = vunpack.c.h.b16 %v73
  %v602 = vunpack.c.l.b16 %v74
  %v603 = vunpack.c.l.b16 %v75
  %v604 = vunpack.c.h.b16 %v75
  %v605 = vunpack.c.l.b16 %v76
  %v606 = vunpack.c.l.b16 %v77
  %v607 = vunpack.c.h.b16 %v77
  %v608 = vunpack.c.l.b16 %v78
  %v609 = vunpack.c.l.b16 %v79
  %v610 = vunpack.c.h.b16 %v79
  %v611 = vunpack.c.l.b16 %v80
  %v612 = vunpack.c.l.b16 %v81
  %v613 = vunpack.c.h.b16 %v81
  %v614 = vunpack.c.l.b16 %v82
  %v615 = vunpack.c.l.b16 %v83
  %v616 = vunpack.c.h.b16 %v83
  %v617 = vunpack.c.l.b16 %v84
  %v618 = vunpack.c.l.b16 %v85
  %v619 = vunpack.c.h.b16 %v85
  %v620 = vunpack.c.l.b16 %v86
  %v621 = vunpack.c.l.b16 %v87
  %v622 = vunpack.c.h.b16 %v87
  %v623 = vunpack.c.l.b16 %v88
  %v624 = vunpack.c.l.b16 %v89
  %v625 = vunpack.c.h.b16 %v89
  %v626 = vunpack.c.l.b16 %v90
  %v627 = vunpack.c.l.b16 %v91
  %v628 = vunpack.c.h.b16 %v91
  %v629 = vunpack.c.l.b16 %v92
  %v630 = vunpack.c.l.b16 %v93
  %v631 = vunpack.c.h.b16 %v93
  %v632 = vunpack.c.l.b16 %v94
  %v633 = vunpack.c.l.b16 %v95
  %v634 = vunpack.c.h.b16 %v95
  %v635 = vunpack.c.l.b16 %v96
  %v636 = vunpack.c.l.b16 %v97
  %v637 = vunpack.c.h.b16 %v97
  %v638 = vunpack.c.l.b16 %v98
  %v639 = vunpack.c.l.b16 %v99
  %v640 = vunpack.c.h.b16 %v99
  %v641 = vunpack.c.l.b16 %v100
  %v642 = vunpack.c.l.b16 %v101
  %v643 = vunpack.c.h.b16 %v101
  %v644 = vunpack.c.l.b16 %v102
  %v645 = vunpack.c.l.b16 %v103
  %v646 = vunpack.c.h.b16 %v103
  %v647 = vunpack.c.l.b16 %v104
  %v648 = vunpack.c.l.b16 %v105
  %v649 = vunpack.c.h.b16 %v105
  %v650 = vunpack.c.l.b16 %v106
  %v651 = vunpack.c.l.b16 %v107
  %v652 = vunpack.c.h.b16 %v107
  %v653 = vunpack.c.l.b16 %v108
  %v654 = vunpack.c.l.b16 %v109
  %v655 = vunpack.c.h.b16 %v109
  %v656 = vunpack.c.l.b16 %v110
  %v657 = vunpack.c.l.b16 %v111
  %v658 = vunpack.c.h.b16 %v111
  %v659 = vunpack.c.l.b16 %v112
  %v660 = vunpack.c.l.b16 %v113
  %v661 = vunpack.c.h.b16 %v113
  %v662 = vunpack.c.l.b16 %v114
  %v663 = vunpack.c.l.b16 %v115
  %v664 = vunpack.c.h.b16 %v115
  %v665 = vunpack.c.l.b16 %v116
  %v666 = vunpack.c.l.b16 %v117
  %v667 = vunpack.c.h.b16 %v117
  %v668 = vunpack.c.l.b16 %v118
  %v669 = vunpack.c.l.b16 %v119
  %v670 = vunpack.c.h.b16 %v119
  %v671 = vunpack.c.l.b16 %v120
  %v672 = vunpack.c.l.b16 %v121
  %v673 = vunpack.c.h.b16 %v121
  %v674 = vunpack.c.l.b16 %v122
  %v675 = vunpack.c.l.b16 %v123
  %v676 = vunpack.c.h.b16 %v123
  %v677 = vunpack.c.l.b16 %v124
  %v678 = vunpack.c.l.b16 %v125
  %v679 = vunpack.c.h.b16 %v125
  %v680 = vunpack.c.l.b16 %v126
  %v681 = vunpack.c.l.b16 %v127
  %v682 = vunpack.c.h.b16 %v127
  %v683 = vunpack.c.l.b16 %v128
  %v684 = vunpack.c.l.b16 %v129
  %v685 = vunpack.c.h.b16 %v129
  %v686 = vunpack.c.l.b16 %v130
  %v687 = vunpack.c.l.b16 %v131
  %v688 = vunpack.c.h.b16 %v131
  %v689 = vunpack.c.l.b16 %v132
  %v690 = vunpack.c.l.b16 %v133
  %v691 = vunpack.c.h.b16 %v133
  %v692 = vunpack.c.l.b16 %v134
  %v693 = vunpack.c.l.b16 %v135
  %v694 = vunpack.c.h.b16 %v135
  %v695 = vunpack.c.l.b16 %v136
  %v696 = vunpack.c.l.b16 %v137
  %v697 = vunpack.c.h.b16 %v137
  %v698 = vunpack.c.l.b16 %v138
  %v699 = vunpack.c.l.b16 %v139
  %v700 = vunpack.c.h.b16 %v139
  %v701 = vunpack.c.l.b16 %v140
  %v702 = vunpack.c.l.b16 %v141
  %v703 = vunpack.c.h.b16 %v141
  %v704 = vunpack.c.l.b16 %v142
  %v705 = vunpack.c.l.b16 %v143
  %v706 = vunpack.c.h.b16 %v143
  %v707 = vunpack.c.l.b16 %v144
  %v708 = vunpack.c.l.b16 %v145
  %v709 = vunpack.c.h.b16 %v145
  %v710 = vunpack.c.l.b16 %v146
  %v711 = vunpack.c.l.b16 %v147
  %v712 = vunpack.c.h.b16 %v147
  %v713 = vunpack.c.l.b16 %v148
  %v714 = vunpack.c.l.b16 %v149
  %v715 = vunpack.c.h.b16 %v149
  %v716 = vunpack.c.l.b16 %v150
  %v717 = vunpack.c.l.b16 %v151
  %v718 = vunpack.c.h.b16 %v151
  %v719 = vunpack.c.l.b16 %v152
  %v720 = vunpack.c.l.b16 %v153
  %v721 = vunpack.c.h.b16 %v153
  %v722 = vunpack.c.l.b16 %v154
  %v723 = vunpack.c.l.b16 %v155
  %v724 = vunpack.c.h.b16 %v155
  %v725 = vunpack.c.l.b16 %v156
  %v726 = vunpack.c.l.b16 %v157
  %v727 = vunpack.c.h.b16 %v157
  %v728 = vunpack.c.l.b16 %v158
  %v729 = vunpack.c.l.b16 %v159
  %v730 = vunpack.c.h.b16 %v159
  %v731 = vunpack.c.l.b16 %v160
  %v732 = vunpack.c.l.b16 %v161
  %v733 = vunpack.c.h.b16 %v161
  %v734 = vunpack.c.l.b16 %v162
  %v735 = vunpack.c.l.b16 %v163
  %v736 = vunpack.c.h.b16 %v163
  %v737 = vunpack.c.l.b16 %v164
  %v738 = vunpack.c.l.b16 %v165
  %v739 = vunpack.c.h.b16 %v165
  %v740 = vunpack.c.l.b16 %v166
  %v741 = vunpack.c.l.b16 %v167
  %v742 = vunpack.c.h.b16 %v167
  %v743 = vunpack.c.l.b16 %v168
  %v744 = vunpack.c.l.b16 %v169
  %v745 = vunpack.c.h.b16 %v169
  %v746 = vunpack.c.l.b16 %v170
  %v747 = vunpack.c.l.b16 %v171
  %v748 = vunpack.c.h.b16 %v171
  %v749 = vunpack.c.l.b16 %v172
  %v750 = vunpack.c.l.b16 %v173
  %v751 = vunpack.c.h.b16 %v173
  %v752 = vunpack.c.l.b16 %v174
  %v753 = vunpack.c.l.b16 %v175
  %v754 = vunpack.c.h.b16 %v175
  %v755 = vunpack.c.l.b16 %v176
  %v756 = vunpack.c.l.b16 %v177
  %v757 = vunpack.c.h.b16 %v177
  %v758 = vunpack.c.l.b16 %v178
  %v759 = vunpack.c.l.b16 %v179
  %v760 = vunpack.c.h.b16 %v179
  %v761 = vunpack.c.l.b16 %v180
  %v762 = vunpack.c.l.b16 %v181
  %v763 = vunpack.c.h.b16 %v181
  %v764 = vunpack.c.l.b16 %v182
  %v765 = vunpack.c.l.b16 %v183
  %v766 = vunpack.c.h.b16 %v183
  %v767 = vunpack.c.l.b16 %v184
  %v768 = vunpack.c.l.b16 %v185
  %v769 = vunpack.c.h.b16 %v185
  %v770 = vunpack.c.l.b16 %v186
  %v771 = vunpack.c.l.b16 %v187
  %v772 = vunpack.c.h.b16 %v187
  %v773 = vunpack.c.l.b16 %v188
  %v774 = vunpack.c.l.b16 %v189
  %v775 = vunpack.c.h.b16 %v189
  %v776 = vunpack.c.l.b16 %v190
  %v777 = vunpack.c.l.b16 %v191
  %v778 = vunpack.c.h.b16 %v191
  %v779 = vunpack.c.l.b16 %v192
  %v780 = vunpack.c.l.b16 %v193
  %v781 = vunpack.c.h.b16 %v193
  %v782 = vunpack.c.l.b16 %v194
  %v783 = vunpack.c.l.b16 %v195
  %v784 = vunpack.c.h.b16 %v195
  %v785 = vunpack.c.l.b16 %v196
  %v786 = vunpack.c.l.b16 %v197
  %v787 = vunpack.c.h.b16 %v197
  %v788 = vunpack.c.l.b16 %v198
  %v789 = vunpack.c.l.b16 %v199
  %v790 = vunpack.c.h.b16 %v199
  %v791 = vunpack.c.l.b16 %v200
  %v792 = vunpack.c.l.b16 %v201
  %v793 = vunpack.c.h.b16 %v201
  %v794 = vunpack.c.l.b16 %v202
  %v795 = vunpack.c.l.b16 %v203
  %v796 = vunpack.c.h.b16 %v203
  %v797 = vunpack.c.l.b16 %v204
  %v798 = vunpack.c.l.b16 %v205
  %v799 = vunpack.c.h.b16 %v205
  %v800 = vunpack.c.l.b16 %v206
  %v801 = vunpack.c.l.b16 %v207
  %v802 = vunpack.c.h.b16 %v207
  %v803 = vunpack.c.l.b16 %v208
  %v804 = vunpack.c.l.b16 %v209
  %v805 = vunpack.c.h.b16 %v209
  %v806 = vunpack.c.l.b16 %v210
  %v807 = vunpack.c.l.b16 %v211
  %v808 = vunpack.c.h.b16 %v211
  %v809 = vunpack.c.l.b16 %v212
  %v810 = vunpack.c.l.b16 %v213
  %v811 = vunpack.c.h.b16 %v213
  %v812 = vunpack.c.l.b16 %v214
  %v813 = vunpack.c.l.b16 %v215
  %v814 = vunpack.c.h.b16 %v215
  %v815 = vunpack.c.l.b16 %v216
  %v816 = vpack.c.b16 %v579, %v576
  %v817 = vpack.c.b16 %v580, %v577
  %v818 = vpack.c.b16 %v581, %v578
  %v819 = vpack.c.b16 %v585, %v582
  %v820 = vpack.c.b16 %v586, %v583
  %v821 = vpack.c.b16 %v587, %v584
  %v822 = vpack.c.b16 %v591, %v588
  %v823 = vpack.c.b16 %v592, %v589
  %v824 = vpack.c.b16 %v593, %v590
  %v825 = vpack.c.b16 %v597, %v594
  %v826 = vpack.c.b16 %v598, %v595
  %v827 = vpack.c.b16 %v599, %v596
  %v828 = vpack.c.b16 %v603, %v600
  %v829 = vpack.c.b16 %v604, %v601
  %v830 = vpack.c.b16 %v605, %v602
  %v831 = vpack.c.b16 %v609, %v606
  %v832 = vpack.c.b16 %v610, %v607
  %v833 = vpack.c.b16 %v611, %v608
  %v834 = vpack.c.b16 %v615, %v612
  %v835 = vpack.c.b16 %v616, %v613
  %v836 = vpack.c.b16 %v617, %v614
  %v837 = vpack.c.b16 %v621, %v618
  %v838 = vpack.c.b16 %v622, %v619
  %v839 = vpack.c.b16 %v623, %v620
  %v840 = vpack.c.b16 %v627, %v624
  %v841 = vpack.c.b16 %v628, %v625
  %v842 = vpack.c.b16 %v629, %v626
  %v843 = vpack.c.b16 %v633, %v630
  %v844 = vpack.c.b16 %v634, %v631
  %v845 = vpack.c.b16 %v635, %v632
  %v846 = vpack.c.b16 %v639, %v636
  %v847 = vpack.c.b16 %v640, %v637
  %v848 = vpack.c.b16 %v641, %v638
  %v849 = vpack.c.b16 %v645, %v642
  %v850 = vpack.c.b16 %v646, %v643
  %v851 = vpack.c.b16 %v647, %v644
  %v852 = vpack.c.b16 %v651, %v648
  %v853 = vpack.c.b16 %v652, %v649
  %v854 = vpack.c.b16 %v653, %v650
  %v855 = vpack.c.b16 %v657, %v654
  %v856 = vpack.c.b16 %v658, %v655
  %v857 = vpack.c.b16 %v659, %v656
  %v858 = vpack.c.b16 %v663, %v660
  %v859 = vpack.c.b16 %v664, %v661
  %v860 = vpack.c.b16 %v665, %v662
  %v861 = vpack.c.b16 %v669, %v666
  %v862 = vpack.c.b16 %v670, %v667
  %v863 = vpack.c.b16 %v671, %v668
  %v864 = vpack.c.b16 %v675, %v672
  %v865 = vpack.c.b16 %v676, %v673
  %v866 = vpack.c.b16 %v677, %v674
  %v867 = vpack.c.b16 %v681, %v678
  %v868 = vpack.c.b16 %v682, %v679
  %v869 = vpack.c.b16 %v683, %v680
  %v870 = vpack.c.b16 %v687, %v684
  %v871 = vpack.c.b16 %v688, %v685
  %v872 = vpack.c.b16 %v689, %v686
  %v873 = vpack.c.b16 %v693, %v690
  %v874 = vpack.c.b16 %v694, %v691
  %v875 = vpack.c.b16 %v695, %v692
  %v876 = vpack.c.b16 %v699, %v696
  %v877 = vpack.c.b16 %v700, %v697
  %v878 = vpack.c.b16 %v701, %v698
  %v879 = vpack.c.b16 %v705, %v702
  %v880 = vpack.c.b16 %v706, %v703
  %v881 = vpack.c.b16 %v707, %v704
  %v882 = vpack.c.b16 %v711, %v708
  %v883 = vpack.c.b16 %v712, %v709
  %v884 = vpack.c.b16 %v713, %v710
  %v885 = vpack.c.b16 %v717, %v714
  %v886 = vpack.c.b16 %v718, %v715
  %v887 = vpack.c.b16 %v719, %v716
  %v888 = vpack.c.b16 %v723, %v720
  %v889 = vpack.c.b16 %v724, %v721
  %v890 = vpack.c.b16 %v725, %v722
  %v891 = vpack.c.b16 %v729, %v726
  %v892 = vpack.c.b16 %v730, %v727
  %v893 = vpack.c.b16 %v731, %v728
  %v894 = vpack.c.b16 %v735, %v732
  %v895 = vpack.c.b16 %v736, %v733
  %v896 = vpack.c.b16 %v737, %v734
  %v897 = vpack.c.b16 %v741, %v738
  %v898 = vpack.c.b16 %v742, %v739
  %v899 = vpack.c.b16 %v743, %v740
  %v900 = vpack.c.b16 %v747, %v744
  %v901 = vpack.c.b16 %v748, %v745
  %v902 = vpack.c.b16 %v749, %v746
  %v903 = vpack.c.b16 %v753, %v750
  %v904 = vpack.c.b16 %v754, %v751
  %v905 = vpack.c.b16 %v755, %v752
  %v906 = vpack.c.b16 %v759, %v756
  %v907 = vpack.c.b16 %v760, %v757
  %v908 = vpack.c.b16 %v761, %v758
  %v909 = vpack.c.b16 %v765, %v762
  %v910 = vpack.c.b16 %v766, %v763
  %v911 = vpack.c.b16 %v767, %v764
  %v912 = vpack.c.b16 %v771, %v768
  %v913 = vpack.c.b16 %v772, %v769
  %v914 = vpack.c.b16 %v773, %v770
  %v915 = vpack.c.b16 %v777, %v774
  %v916 = vpack.c.b16 %v778, %v775
  %v917 = vpack.c.b16 %v779, %v776
  %v918 = vpack.c.b16 %v783, %v780
  %v919 = vpack.c.b16 %v784, %v781
  %v920 = vpack.c.b16 %v785, %v782
  %v921 = vpack.c.b16 %v789, %v786
  %v922 = vpack.c.b16 %v790, %v787
  %v923 = vpack.c.b16 %v791, %v788
  %v924 = vpack.c.b16 %v795, %v792
  %v925 = vpack.c.b16 %v796, %v793
  %v926 = vpack.c.b16 %v797, %v794
  %v927 = vpack.c.b16 %v801, %v798
  %v928 = vpack.c.b16 %v802, %v799
  %v929 = vpack.c.b16 %v803, %v800
  %v930 = vpack.c.b16 %v807, %v804
  %v931 = vpack.c.b16 %v808, %v805
  %v932 = vpack.c.b16 %v809, %v806
  %v933 = vpack.c.b16 %v813, %v810
  %v934 = vpack.c.b16 %v814, %v811
  %v935 = vpack.c.b16 %v815, %v812
  %1056 = vmatprep.subr.bf16.mxu0 %v817
  %1057 = vmatpush1.bf16.msra.mxu0 %v816
  %1058 = vmatprep.subr.bf16.mxu0 %v820
  %1059 = vmatpush1.bf16.msra.mxu0 %v819
  %1060 = vmatprep.subr.bf16.mxu0 %v823
  %1061 = vmatpush1.bf16.msra.mxu0 %v822
  %1062 = vmatprep.subr.bf16.mxu0 %v826
  %1063 = vmatpush1.bf16.msra.mxu0 %v825
  %1064 = vmatprep.subr.bf16.mxu0 %v829
  %1065 = vmatpush1.bf16.msra.mxu0 %v828
  %1066 = vmatprep.subr.bf16.mxu0 %v832
  %1067 = vmatpush1.bf16.msra.mxu0 %v831
  %1068 = vmatprep.subr.bf16.mxu0 %v835
  %1069 = vmatpush1.bf16.msra.mxu0 %v834
  %1070 = vmatprep.subr.bf16.mxu0 %v838
  %1071 = vmatpush1.bf16.msra.mxu0 %v837
  %1072 = vmatprep.subr.bf16.mxu0 %v841
  %1073 = vmatpush1.bf16.msra.mxu0 %v840
  %1074 = vmatprep.subr.bf16.mxu0 %v844
  %1075 = vmatpush1.bf16.msra.mxu0 %v843
  %1076 = vmatprep.subr.bf16.mxu0 %v847
  %1077 = vmatpush1.bf16.msra.mxu0 %v846
  %1078 = vmatprep.subr.bf16.mxu0 %v850
  %1079 = vmatpush1.bf16.msra.mxu0 %v849
  %1080 = vmatprep.subr.bf16.mxu0 %v853
  %1081 = vmatpush1.bf16.msra.mxu0 %v852
  %1082 = vmatprep.subr.bf16.mxu0 %v856
  %1083 = vmatpush1.bf16.msra.mxu0 %v855
  %1084 = vmatprep.subr.bf16.mxu0 %v859
  %1085 = vmatpush1.bf16.msra.mxu0 %v858
  %1086 = vmatprep.subr.bf16.mxu0 %v862
  %1087 = vmatpush1.bf16.msra.mxu0 %v861
  %1088 = vmatprep.mubr.bf16.mxu0 %v347
  %1089 = vmatmul.mubr.bf16.gmra.mrb[0].mxu0 %v346
  %v1090 = vpop.f32.mrb[0].mxu0
  %v1091 = vadd.f32 %v222, %v1090
  %v1092 = vpop.f32.mrb[0].mxu0
  %v1093 = vadd.f32 %v226, %v1092
  %v1094 = vpop.f32.mrb[0].mxu0
  %v1095 = vadd.f32 %v222, %v1094
  %v1096 = vpop.f32.mrb[0].mxu0
  %v1097 = vadd.f32 %v226, %v1096
  %1098 = vmatprep.mubr.bf16.mxu0 %v352
  %1099 = vmatmul.mubr.bf16.gmra.mrb[0].mxu0 %v351
  %v1100 = vpop.f32.mrb[0].mxu0
  %v1101 = vadd.f32 %v222, %v1100
  %v1102 = vpop.f32.mrb[0].mxu0
  %v1103 = vadd.f32 %v226, %v1102
  %v1104 = vpop.f32.mrb[0].mxu0
  %v1105 = vadd.f32 %v222, %v1104
  %v1106 = vpop.f32.mrb[0].mxu0
  %v1107 = vadd.f32 %v226, %v1106
  %1108 = vmatprep.mubr.bf16.mxu0 %v357
  %1109 = vmatmul.mubr.bf16.gmra.mrb[0].mxu0 %v356
  %v1110 = vpop.f32.mrb[0].mxu0
  %v1111 = vadd.f32 %v222, %v1110
  %v1112 = vpop.f32.mrb[0].mxu0
  %v1113 = vadd.f32 %v226, %v1112
  %v1114 = vpop.f32.mrb[0].mxu0
  %v1115 = vadd.f32 %v222, %v1114
  %v1116 = vpop.f32.mrb[0].mxu0
  %v1117 = vadd.f32 %v226, %v1116
  %1118 = vmatprep.mubr.bf16.mxu0 %v362
  %1119 = vmatmul.mubr.bf16.gmra.mrb[0].mxu0 %v361
  %v1120 = vpop.f32.mrb[0].mxu0
  %v1121 = vadd.f32 %v222, %v1120
  %v1122 = vpop.f32.mrb[0].mxu0
  %v1123 = vadd.f32 %v226, %v1122
  %v1124 = vpop.f32.mrb[0].mxu0
  %v1125 = vadd.f32 %v222, %v1124
  %v1126 = vpop.f32.mrb[0].mxu0
  %v1127 = vadd.f32 %v226, %v1126
  %1128 = vmatprep.mubr.bf16.mxu0 %v367
  %1129 = vmatmul.mubr.bf16.gmra.mrb[0].mxu0 %v366
  %v1130 = vpop.f32.mrb[0].mxu0
  %v1131 = vadd.f32 %v222, %v1130
  %v1132 = vpop.f32.mrb[0].mxu0
  %v1133 = vadd.f32 %v226, %v1132
  %v1134 = vpop.f32.mrb[0].mxu0
  %v1135 = vadd.f32 %v222, %v1134
  %v1136 = vpop.f32.mrb[0].mxu0
  %v1137 = vadd.f32 %v226, %v1136
  %1138 = vmatprep.mubr.bf16.mxu0 %v372
  %1139 = vmatmul.mubr.bf16.gmra.mrb[0].mxu0 %v371
  %v1140 = vpop.f32.mrb[0].mxu0
  %v1141 = vadd.f32 %v222, %v1140
  %v1142 = vpop.f32.mrb[0].mxu0
  %v1143 = vadd.f32 %v226, %v1142
  %v1144 = vpop.f32.mrb[0].mxu0
  %v1145 = vadd.f32 %v222, %v1144
  %v1146 = vpop.f32.mrb[0].mxu0
  %v1147 = vadd.f32 %v226, %v1146
  %1148 = vmatprep.mubr.bf16.mxu0 %v377
  %1149 = vmatmul.mubr.bf16.gmra.mrb[0].mxu0 %v376
  %v1150 = vpop.f32.mrb[0].mxu0
  %v1151 = vadd.f32 %v222, %v1150
  %v1152 = vpop.f32.mrb[0].mxu0
  %v1153 = vadd.f32 %v226, %v1152
  %v1154 = vpop.f32.mrb[0].mxu0
  %v1155 = vadd.f32 %v222, %v1154
  %v1156 = vpop.f32.mrb[0].mxu0
  %v1157 = vadd.f32 %v226, %v1156
  %1158 = vdwg.mxu0
  %1159 = vmatprep.subr.bf16.mxu0 %v865
  %1160 = vmatpush1.bf16.msra.mxu0 %v864
  %1161 = vmatprep.subr.bf16.mxu0 %v868
  %1162 = vmatpush1.bf16.msra.mxu0 %v867
  %1163 = vmatprep.subr.bf16.mxu0 %v871
  %1164 = vmatpush1.bf16.msra.mxu0 %v870
  %1165 = vmatprep.subr.bf16.mxu0 %v874
  %1166 = vmatpush1.bf16.msra.mxu0 %v873
  %1167 = vmatprep.subr.bf16.mxu0 %v877
  %1168 = vmatpush1.bf16.msra.mxu0 %v876
  %1169 = vmatprep.subr.bf16.mxu0 %v880
  %1170 = vmatpush1.bf16.msra.mxu0 %v879
  %1171 = vmatprep.subr.bf16.mxu0 %v883
  %1172 = vmatpush1.bf16.msra.mxu0 %v882
  %1173 = vmatprep.subr.bf16.mxu0 %v886
  %1174 = vmatpush1.bf16.msra.mxu0 %v885
  %1175 = vmatprep.subr.bf16.mxu0 %v889
  %1176 = vmatpush1.bf16.msra.mxu0 %v888
  %1177 = vmatprep.subr.bf16.mxu0 %v892
  %1178 = vmatpush1.bf16.msra.mxu0 %v891
  %1179 = vmatprep.subr.bf16.mxu0 %v895
  %1180 = vmatpush1.bf16.msra.mxu0 %v894
  %1181 = vmatprep.subr.bf16.mxu0 %v898
  %1182 = vmatpush1.bf16.msra.mxu0 %v897
  %1183 = vmatprep.subr.bf16.mxu0 %v901
  %1184 = vmatpush1.bf16.msra.mxu0 %v900
  %1185 = vmatprep.subr.bf16.mxu0 %v904
  %1186 = vmatpush1.bf16.msra.mxu0 %v903
  %1187 = vmatprep.subr.bf16.mxu0 %v907
  %1188 = vmatpush1.bf16.msra.mxu0 %v906
  %1189 = vmatprep.subr.bf16.mxu0 %v910
  %1190 = vmatpush1.bf16.msra.mxu0 %v909
  %1191 = vmatprep.mubr.bf16.mxu0 %v349
  %1192 = vmatmul.mubr.bf16.gmra.mrb[0].mxu0 %v348
  %v1193 = vpop.f32.mrb[0].mxu0
  %v1194 = vadd.f32 %v1091, %v1193
  %v1195 = vpop.f32.mrb[0].mxu0
  %v1196 = vadd.f32 %v1093, %v1195
  %v1197 = vpop.f32.mrb[0].mxu0
  %v1198 = vadd.f32 %v1095, %v1197
  %v1199 = vpop.f32.mrb[0].mxu0
  %v1200 = vadd.f32 %v1097, %v1199
  %1201 = vmatprep.mubr.bf16.mxu0 %v354
  %1202 = vmatmul.mubr.bf16.gmra.mrb[0].mxu0 %v353
  %v1203 = vpop.f32.mrb[0].mxu0
  %v1204 = vadd.f32 %v1101, %v1203
  %v1205 = vpop.f32.mrb[0].mxu0
  %v1206 = vadd.f32 %v1103, %v1205
  %v1207 = vpop.f32.mrb[0].mxu0
  %v1208 = vadd.f32 %v1105, %v1207
  %v1209 = vpop.f32.mrb[0].mxu0
  %v1210 = vadd.f32 %v1107, %v1209
  %1211 = vmatprep.mubr.bf16.mxu0 %v359
  %1212 = vmatmul.mubr.bf16.gmra.mrb[0].mxu0 %v358
  %v1213 = vpop.f32.mrb[0].mxu0
  %v1214 = vadd.f32 %v1111, %v1213
  %v1215 = vpop.f32.mrb[0].mxu0
  %v1216 = vadd.f32 %v1113, %v1215
  %v1217 = vpop.f32.mrb[0].mxu0
  %v1218 = vadd.f32 %v1115, %v1217
  %v1219 = vpop.f32.mrb[0].mxu0
  %v1220 = vadd.f32 %v1117, %v1219
  %1221 = vmatprep.mubr.bf16.mxu0 %v364
  %1222 = vmatmul.mubr.bf16.gmra.mrb[0].mxu0 %v363
  %v1223 = vpop.f32.mrb[0].mxu0
  %v1224 = vadd.f32 %v1121, %v1223
  %v1225 = vpop.f32.mrb[0].mxu0
  %v1226 = vadd.f32 %v1123, %v1225
  %v1227 = vpop.f32.mrb[0].mxu0
  %v1228 = vadd.f32 %v1125, %v1227
  %v1229 = vpop.f32.mrb[0].mxu0
  %v1230 = vadd.f32 %v1127, %v1229
  %1231 = vmatprep.mubr.bf16.mxu0 %v369
  %1232 = vmatmul.mubr.bf16.gmra.mrb[0].mxu0 %v368
  %v1233 = vpop.f32.mrb[0].mxu0
  %v1234 = vadd.f32 %v1131, %v1233
  %v1235 = vpop.f32.mrb[0].mxu0
  %v1236 = vadd.f32 %v1133, %v1235
  %v1237 = vpop.f32.mrb[0].mxu0
  %v1238 = vadd.f32 %v1135, %v1237
  %v1239 = vpop.f32.mrb[0].mxu0
  %v1240 = vadd.f32 %v1137, %v1239
  %1241 = vmatprep.mubr.bf16.mxu0 %v374
  %1242 = vmatmul.mubr.bf16.gmra.mrb[0].mxu0 %v373
  %v1243 = vpop.f32.mrb[0].mxu0
  %v1244 = vadd.f32 %v1141, %v1243
  %v1245 = vpop.f32.mrb[0].mxu0
  %v1246 = vadd.f32 %v1143, %v1245
  %v1247 = vpop.f32.mrb[0].mxu0
  %v1248 = vadd.f32 %v1145, %v1247
  %v1249 = vpop.f32.mrb[0].mxu0
  %v1250 = vadd.f32 %v1147, %v1249
  %1251 = vmatprep.mubr.bf16.mxu0 %v379
  %1252 = vmatmul.mubr.bf16.gmra.mrb[0].mxu0 %v378
  %v1253 = vpop.f32.mrb[0].mxu0
  %v1254 = vadd.f32 %v1151, %v1253
  %v1255 = vpop.f32.mrb[0].mxu0
  %v1256 = vadd.f32 %v1153, %v1255
  %v1257 = vpop.f32.mrb[0].mxu0
  %v1258 = vadd.f32 %v1155, %v1257
  %v1259 = vpop.f32.mrb[0].mxu0
  %v1260 = vadd.f32 %v1157, %v1259
  %1261 = vdwg.mxu0
  %1262 = vmatprep.subr.bf16.mxu0 %v913
  %1263 = vmatpush1.bf16.msra.mxu0 %v912
  %1264 = vmatprep.subr.bf16.mxu0 %v916
  %1265 = vmatpush1.bf16.msra.mxu0 %v915
  %1266 = vmatprep.subr.bf16.mxu0 %v919
  %1267 = vmatpush1.bf16.msra.mxu0 %v918
  %1268 = vmatprep.subr.bf16.mxu0 %v922
  %1269 = vmatpush1.bf16.msra.mxu0 %v921
  %1270 = vmatprep.subr.bf16.mxu0 %v925
  %1271 = vmatpush1.bf16.msra.mxu0 %v924
  %1272 = vmatprep.subr.bf16.mxu0 %v928
  %1273 = vmatpush1.bf16.msra.mxu0 %v927
  %1274 = vmatprep.subr.bf16.mxu0 %v931
  %1275 = vmatpush1.bf16.msra.mxu0 %v930
  %1276 = vmatprep.subr.bf16.mxu0 %v934
  %1277 = vmatpush1.bf16.msra.mxu0 %v933
  %1278 = vmatprep.subr.bf16.mxu0 0
  %1279 = vmatpush1.bf16.msra.mxu0 0
  %1280 = vmatprep.subr.bf16.mxu0 0
  %1281 = vmatpush1.bf16.msra.mxu0 0
  %1282 = vmatprep.subr.bf16.mxu0 0
  %1283 = vmatpush1.bf16.msra.mxu0 0
  %1284 = vmatprep.subr.bf16.mxu0 0
  %1285 = vmatpush1.bf16.msra.mxu0 0
  %1286 = vmatprep.subr.bf16.mxu0 0
  %1287 = vmatpush1.bf16.msra.mxu0 0
  %1288 = vmatprep.subr.bf16.mxu0 0
  %1289 = vmatpush1.bf16.msra.mxu0 0
  %1290 = vmatprep.subr.bf16.mxu0 0
  %1291 = vmatpush1.bf16.msra.mxu0 0
  %1292 = vmatprep.subr.bf16.mxu0 0
  %1293 = vmatpush1.bf16.msra.mxu0 0
  %1294 = vmatprep.mubr.bf16.mxu0 0
  %1295 = vmatmul.mubr.bf16.gmra.mrb[0].mxu0 %v350
  %v1296 = vpop.f32.mrb[0].mxu0
  %v1297 = vadd.f32 %v1194, %v1296
  %v1298 = vpop.f32.mrb[0].mxu0
  %v1299 = vadd.f32 %v1196, %v1298
  %v1300 = vpop.f32.mrb[0].mxu0
  %v1301 = vadd.f32 %v1198, %v1300
  %v1302 = vpop.f32.mrb[0].mxu0
  %v1303 = vadd.f32 %v1200, %v1302
  %1304 = vmatprep.mubr.bf16.mxu0 0
  %1305 = vmatmul.mubr.bf16.gmra.mrb[0].mxu0 %v355
  %v1306 = vpop.f32.mrb[0].mxu0
  %v1307 = vadd.f32 %v1204, %v1306
  %v1308 = vpop.f32.mrb[0].mxu0
  %v1309 = vadd.f32 %v1206, %v1308
  %v1310 = vpop.f32.mrb[0].mxu0
  %v1311 = vadd.f32 %v1208, %v1310
  %v1312 = vpop.f32.mrb[0].mxu0
  %v1313 = vadd.f32 %v1210, %v1312
  %1314 = vmatprep.mubr.bf16.mxu0 0
  %1315 = vmatmul.mubr.bf16.gmra.mrb[0].mxu0 %v360
  %v1316 = vpop.f32.mrb[0].mxu0
  %v1317 = vadd.f32 %v1214, %v1316
  %v1318 = vpop.f32.mrb[0].mxu0
  %v1319 = vadd.f32 %v1216, %v1318
  %v1320 = vpop.f32.mrb[0].mxu0
  %v1321 = vadd.f32 %v1218, %v1320
  %v1322 = vpop.f32.mrb[0].mxu0
  %v1323 = vadd.f32 %v1220, %v1322
  %1324 = vmatprep.mubr.bf16.mxu0 0
  %1325 = vmatmul.mubr.bf16.gmra.mrb[0].mxu0 %v365
  %v1326 = vpop.f32.mrb[0].mxu0
  %v1327 = vadd.f32 %v1224, %v1326
  %v1328 = vpop.f32.mrb[0].mxu0
  %v1329 = vadd.f32 %v1226, %v1328
  %v1330 = vpop.f32.mrb[0].mxu0
  %v1331 = vadd.f32 %v1228, %v1330
  %v1332 = vpop.f32.mrb[0].mxu0
  %v1333 = vadd.f32 %v1230, %v1332
  %1334 = vmatprep.mubr.bf16.mxu0 0
  %1335 = vmatmul.mubr.bf16.gmra.mrb[0].mxu0 %v370
  %v1336 = vpop.f32.mrb[0].mxu0
  %v1337 = vadd.f32 %v1234, %v1336
  %v1338 = vpop.f32.mrb[0].mxu0
  %v1339 = vadd.f32 %v1236, %v1338
  %v1340 = vpop.f32.mrb[0].mxu0
  %v1341 = vadd.f32 %v1238, %v1340
  %v1342 = vpop.f32.mrb[0].mxu0
  %v1343 = vadd.f32 %v1240, %v1342
  %1344 = vmatprep.mubr.bf16.mxu0 0
  %1345 = vmatmul.mubr.bf16.gmra.mrb[0].mxu0 %v375
  %v1346 = vpop.f32.mrb[0].mxu0
  %v1347 = vadd.f32 %v1244, %v1346
  %v1348 = vpop.f32.mrb[0].mxu0
  %v1349 = vadd.f32 %v1246, %v1348
  %v1350 = vpop.f32.mrb[0].mxu0
  %v1351 = vadd.f32 %v1248, %v1350
  %v1352 = vpop.f32.mrb[0].mxu0
  %v1353 = vadd.f32 %v1250, %v1352
  %1354 = vmatprep.mubr.bf16.mxu0 0
  %1355 = vmatmul.mubr.bf16.gmra.mrb[0].mxu0 %v380
  %v1356 = vpop.f32.mrb[0].mxu0
  %v1357 = vadd.f32 %v1254, %v1356
  %v1358 = vpop.f32.mrb[0].mxu0
  %v1359 = vadd.f32 %v1256, %v1358
  %v1360 = vpop.f32.mrb[0].mxu0
  %v1361 = vadd.f32 %v1258, %v1360
  %v1362 = vpop.f32.mrb[0].mxu0
  %v1363 = vadd.f32 %v1260, %v1362
  %1364 = vdwg.mxu0
  %1365 = vmatprep.subr.bf16.mxu0 0
  %1366 = vmatpush1.bf16.msra.mxu0 %v818
  %1367 = vmatprep.subr.bf16.mxu0 0
  %1368 = vmatpush1.bf16.msra.mxu0 %v821
  %1369 = vmatprep.subr.bf16.mxu0 0
  %1370 = vmatpush1.bf16.msra.mxu0 %v824
  %1371 = vmatprep.subr.bf16.mxu0 0
  %1372 = vmatpush1.bf16.msra.mxu0 %v827
  %1373 = vmatprep.subr.bf16.mxu0 0
  %1374 = vmatpush1.bf16.msra.mxu0 %v830
  %1375 = vmatprep.subr.bf16.mxu0 0
  %1376 = vmatpush1.bf16.msra.mxu0 %v833
  %1377 = vmatprep.subr.bf16.mxu0 0
  %1378 = vmatpush1.bf16.msra.mxu0 %v836
  %1379 = vmatprep.subr.bf16.mxu0 0
  %1380 = vmatpush1.bf16.msra.mxu0 %v839
  %1381 = vmatprep.subr.bf16.mxu0 0
  %1382 = vmatpush1.bf16.msra.mxu0 %v842
  %1383 = vmatprep.subr.bf16.mxu0 0
  %1384 = vmatpush1.bf16.msra.mxu0 %v845
  %1385 = vmatprep.subr.bf16.mxu0 0
  %1386 = vmatpush1.bf16.msra.mxu0 %v848
  %1387 = vmatprep.subr.bf16.mxu0 0
  %1388 = vmatpush1.bf16.msra.mxu0 %v851
  %1389 = vmatprep.subr.bf16.mxu0 0
  %1390 = vmatpush1.bf16.msra.mxu0 %v854
  %1391 = vmatprep.subr.bf16.mxu0 0
  %1392 = vmatpush1.bf16.msra.mxu0 %v857
  %1393 = vmatprep.subr.bf16.mxu0 0
  %1394 = vmatpush1.bf16.msra.mxu0 %v860
  %1395 = vmatprep.subr.bf16.mxu0 0
  %1396 = vmatpush1.bf16.msra.mxu0 %v863
  %1397 = vmatprep.mubr.bf16.mxu0 %v347
  %1398 = vmatmul.mubr.bf16.gmra.mrb[0].mxu0 %v346
  %v1399 = vpop.f32.mrb[0].mxu0
  %v1400 = vadd.f32 %v230, %v1399
  %v1401 = vpop.f32.mrb[0].mxu0
  %v1402 = vpop.f32.mrb[0].mxu0
  %v1403 = vadd.f32 %v230, %v1402
  %v1404 = vpop.f32.mrb[0].mxu0
  %1405 = vmatprep.mubr.bf16.mxu0 %v352
  %1406 = vmatmul.mubr.bf16.gmra.mrb[0].mxu0 %v351
  %v1407 = vpop.f32.mrb[0].mxu0
  %v1408 = vadd.f32 %v230, %v1407
  %v1409 = vpop.f32.mrb[0].mxu0
  %v1410 = vpop.f32.mrb[0].mxu0
  %v1411 = vadd.f32 %v230, %v1410
  %v1412 = vpop.f32.mrb[0].mxu0
  %1413 = vmatprep.mubr.bf16.mxu0 %v357
  %1414 = vmatmul.mubr.bf16.gmra.mrb[0].mxu0 %v356
  %v1415 = vpop.f32.mrb[0].mxu0
  %v1416 = vadd.f32 %v230, %v1415
  %v1417 = vpop.f32.mrb[0].mxu0
  %v1418 = vpop.f32.mrb[0].mxu0
  %v1419 = vadd.f32 %v230, %v1418
  %v1420 = vpop.f32.mrb[0].mxu0
  %1421 = vmatprep.mubr.bf16.mxu0 %v362
  %1422 = vmatmul.mubr.bf16.gmra.mrb[0].mxu0 %v361
  %v1423 = vpop.f32.mrb[0].mxu0
  %v1424 = vadd.f32 %v230, %v1423
  %v1425 = vpop.f32.mrb[0].mxu0
  %v1426 = vpop.f32.mrb[0].mxu0
  %v1427 = vadd.f32 %v230, %v1426
  %v1428 = vpop.f32.mrb[0].mxu0
  %1429 = vmatprep.mubr.bf16.mxu0 %v367
  %1430 = vmatmul.mubr.bf16.gmra.mrb[0].mxu0 %v366
  %v1431 = vpop.f32.mrb[0].mxu0
  %v1432 = vadd.f32 %v230, %v1431
  %v1433 = vpop.f32.mrb[0].mxu0
  %v1434 = vpop.f32.mrb[0].mxu0
  %v1435 = vadd.f32 %v230, %v1434
  %v1436 = vpop.f32.mrb[0].mxu0
  %1437 = vmatprep.mubr.bf16.mxu0 %v372
  %1438 = vmatmul.mubr.bf16.gmra.mrb[0].mxu0 %v371
  %v1439 = vpop.f32.mrb[0].mxu0
  %v1440 = vadd.f32 %v230, %v1439
  %v1441 = vpop.f32.mrb[0].mxu0
  %v1442 = vpop.f32.mrb[0].mxu0
  %v1443 = vadd.f32 %v230, %v1442
  %v1444 = vpop.f32.mrb[0].mxu0
  %1445 = vmatprep.mubr.bf16.mxu0 %v377
  %1446 = vmatmul.mubr.bf16.gmra.mrb[0].mxu0 %v376
  %v1447 = vpop.f32.mrb[0].mxu0
  %v1448 = vadd.f32 %v230, %v1447
  %v1449 = vpop.f32.mrb[0].mxu0
  %v1450 = vpop.f32.mrb[0].mxu0
  %v1451 = vadd.f32 %v230, %v1450
  %v1452 = vpop.f32.mrb[0].mxu0
  %1453 = vdwg.mxu0
  %1454 = vmatprep.subr.bf16.mxu0 0
  %1455 = vmatpush1.bf16.msra.mxu0 %v866
  %1456 = vmatprep.subr.bf16.mxu0 0
  %1457 = vmatpush1.bf16.msra.mxu0 %v869
  %1458 = vmatprep.subr.bf16.mxu0 0
  %1459 = vmatpush1.bf16.msra.mxu0 %v872
  %1460 = vmatprep.subr.bf16.mxu0 0
  %1461 = vmatpush1.bf16.msra.mxu0 %v875
  %1462 = vmatprep.subr.bf16.mxu0 0
  %1463 = vmatpush1.bf16.msra.mxu0 %v878
  %1464 = vmatprep.subr.bf16.mxu0 0
  %1465 = vmatpush1.bf16.msra.mxu0 %v881
  %1466 = vmatprep.subr.bf16.mxu0 0
  %1467 = vmatpush1.bf16.msra.mxu0 %v884
  %1468 = vmatprep.subr.bf16.mxu0 0
  %1469 = vmatpush1.bf16.msra.mxu0 %v887
  %1470 = vmatprep.subr.bf16.mxu0 0
  %1471 = vmatpush1.bf16.msra.mxu0 %v890
  %1472 = vmatprep.subr.bf16.mxu0 0
  %1473 = vmatpush1.bf16.msra.mxu0 %v893
  %1474 = vmatprep.subr.bf16.mxu0 0
  %1475 = vmatpush1.bf16.msra.mxu0 %v896
  %1476 = vmatprep.subr.bf16.mxu0 0
  %1477 = vmatpush1.bf16.msra.mxu0 %v899
  %1478 = vmatprep.subr.bf16.mxu0 0
  %1479 = vmatpush1.bf16.msra.mxu0 %v902
  %1480 = vmatprep.subr.bf16.mxu0 0
  %1481 = vmatpush1.bf16.msra.mxu0 %v905
  %1482 = vmatprep.subr.bf16.mxu0 0
  %1483 = vmatpush1.bf16.msra.mxu0 %v908
  %1484 = vmatprep.subr.bf16.mxu0 0
  %1485 = vmatpush1.bf16.msra.mxu0 %v911
  %1486 = vmatprep.mubr.bf16.mxu0 %v349
  %1487 = vmatmul.mubr.bf16.gmra.mrb[0].mxu0 %v348
  %v1488 = vpop.f32.mrb[0].mxu0
  %v1489 = vadd.f32 %v1400, %v1488
  %v1490 = vpop.f32.mrb[0].mxu0
  %v1491 = vpop.f32.mrb[0].mxu0
  %v1492 = vadd.f32 %v1403, %v1491
  %v1493 = vpop.f32.mrb[0].mxu0
  %1494 = vmatprep.mubr.bf16.mxu0 %v354
  %1495 = vmatmul.mubr.bf16.gmra.mrb[0].mxu0 %v353
  %v1496 = vpop.f32.mrb[0].mxu0
  %v1497 = vadd.f32 %v1408, %v1496
  %v1498 = vpop.f32.mrb[0].mxu0
  %v1499 = vpop.f32.mrb[0].mxu0
  %v1500 = vadd.f32 %v1411, %v1499
  %v1501 = vpop.f32.mrb[0].mxu0
  %1502 = vmatprep.mubr.bf16.mxu0 %v359
  %1503 = vmatmul.mubr.bf16.gmra.mrb[0].mxu0 %v358
  %v1504 = vpop.f32.mrb[0].mxu0
  %v1505 = vadd.f32 %v1416, %v1504
  %v1506 = vpop.f32.mrb[0].mxu0
  %v1507 = vpop.f32.mrb[0].mxu0
  %v1508 = vadd.f32 %v1419, %v1507
  %v1509 = vpop.f32.mrb[0].mxu0
  %1510 = vmatprep.mubr.bf16.mxu0 %v364
  %1511 = vmatmul.mubr.bf16.gmra.mrb[0].mxu0 %v363
  %v1512 = vpop.f32.mrb[0].mxu0
  %v1513 = vadd.f32 %v1424, %v1512
  %v1514 = vpop.f32.mrb[0].mxu0
  %v1515 = vpop.f32.mrb[0].mxu0
  %v1516 = vadd.f32 %v1427, %v1515
  %v1517 = vpop.f32.mrb[0].mxu0
  %1518 = vmatprep.mubr.bf16.mxu0 %v369
  %1519 = vmatmul.mubr.bf16.gmra.mrb[0].mxu0 %v368
  %v1520 = vpop.f32.mrb[0].mxu0
  %v1521 = vadd.f32 %v1432, %v1520
  %v1522 = vpop.f32.mrb[0].mxu0
  %v1523 = vpop.f32.mrb[0].mxu0
  %v1524 = vadd.f32 %v1435, %v1523
  %v1525 = vpop.f32.mrb[0].mxu0
  %1526 = vmatprep.mubr.bf16.mxu0 %v374
  %1527 = vmatmul.mubr.bf16.gmra.mrb[0].mxu0 %v373
  %v1528 = vpop.f32.mrb[0].mxu0
  %v1529 = vadd.f32 %v1440, %v1528
  %v1530 = vpop.f32.mrb[0].mxu0
  %v1531 = vpop.f32.mrb[0].mxu0
  %v1532 = vadd.f32 %v1443, %v1531
  %v1533 = vpop.f32.mrb[0].mxu0
  %1534 = vmatprep.mubr.bf16.mxu0 %v379
  %1535 = vmatmul.mubr.bf16.gmra.mrb[0].mxu0 %v378
  %v1536 = vpop.f32.mrb[0].mxu0
  %v1537 = vadd.f32 %v1448, %v1536
  %v1538 = vpop.f32.mrb[0].mxu0
  %v1539 = vpop.f32.mrb[0].mxu0
  %v1540 = vadd.f32 %v1451, %v1539
  %v1541 = vpop.f32.mrb[0].mxu0
  %1542 = vdwg.mxu0
  %1543 = vmatprep.subr.bf16.mxu0 0
  %1544 = vmatpush1.bf16.msra.mxu0 %v914
  %1545 = vmatprep.subr.bf16.mxu0 0
  %1546 = vmatpush1.bf16.msra.mxu0 %v917
  %1547 = vmatprep.subr.bf16.mxu0 0
  %1548 = vmatpush1.bf16.msra.mxu0 %v920
  %1549 = vmatprep.subr.bf16.mxu0 0
  %1550 = vmatpush1.bf16.msra.mxu0 %v923
  %1551 = vmatprep.subr.bf16.mxu0 0
  %1552 = vmatpush1.bf16.msra.mxu0 %v926
  %1553 = vmatprep.subr.bf16.mxu0 0
  %1554 = vmatpush1.bf16.msra.mxu0 %v929
  %1555 = vmatprep.subr.bf16.mxu0 0
  %1556 = vmatpush1.bf16.msra.mxu0 %v932
  %1557 = vmatprep.subr.bf16.mxu0 0
  %1558 = vmatpush1.bf16.msra.mxu0 %v935
  %1559 = vmatprep.subr.bf16.mxu0 0
  %1560 = vmatpush1.bf16.msra.mxu0 0
  %1561 = vmatprep.subr.bf16.mxu0 0
  %1562 = vmatpush1.bf16.msra.mxu0 0
  %1563 = vmatprep.subr.bf16.mxu0 0
  %1564 = vmatpush1.bf16.msra.mxu0 0
  %1565 = vmatprep.subr.bf16.mxu0 0
  %1566 = vmatpush1.bf16.msra.mxu0 0
  %1567 = vmatprep.subr.bf16.mxu0 0
  %1568 = vmatpush1.bf16.msra.mxu0 0
  %1569 = vmatprep.subr.bf16.mxu0 0
  %1570 = vmatpush1.bf16.msra.mxu0 0
  %1571 = vmatprep.subr.bf16.mxu0 0
  %1572 = vmatpush1.bf16.msra.mxu0 0
  %1573 = vmatprep.subr.bf16.mxu0 0
  %1574 = vmatpush1.bf16.msra.mxu0 0
  %1575 = vmatprep.mubr.bf16.mxu0 0
  %1576 = vmatmul.mubr.bf16.gmra.mrb[0].mxu0 %v350
  %v1577 = vpop.f32.mrb[0].mxu0
  %v1578 = vadd.f32 %v1489, %v1577
  %v1579 = vpop.f32.mrb[0].mxu0
  %v1580 = vpop.f32.mrb[0].mxu0
  %v1581 = vadd.f32 %v1492, %v1580
  %v1582 = vpop.f32.mrb[0].mxu0
  %1583 = vmatprep.mubr.bf16.mxu0 0
  %1584 = vmatmul.mubr.bf16.gmra.mrb[0].mxu0 %v355
  %v1585 = vpop.f32.mrb[0].mxu0
  %v1586 = vadd.f32 %v1497, %v1585
  %v1587 = vpop.f32.mrb[0].mxu0
  %v1588 = vpop.f32.mrb[0].mxu0
  %v1589 = vadd.f32 %v1500, %v1588
  %v1590 = vpop.f32.mrb[0].mxu0
  %1591 = vmatprep.mubr.bf16.mxu0 0
  %1592 = vmatmul.mubr.bf16.gmra.mrb[0].mxu0 %v360
  %v1593 = vpop.f32.mrb[0].mxu0
  %v1594 = vadd.f32 %v1505, %v1593
  %v1595 = vpop.f32.mrb[0].mxu0
  %v1596 = vpop.f32.mrb[0].mxu0
  %v1597 = vadd.f32 %v1508, %v1596
  %v1598 = vpop.f32.mrb[0].mxu0
  %1599 = vmatprep.mubr.bf16.mxu0 0
  %1600 = vmatmul.mubr.bf16.gmra.mrb[0].mxu0 %v365
  %v1601 = vpop.f32.mrb[0].mxu0
  %v1602 = vadd.f32 %v1513, %v1601
  %v1603 = vpop.f32.mrb[0].mxu0
  %v1604 = vpop.f32.mrb[0].mxu0
  %v1605 = vadd.f32 %v1516, %v1604
  %v1606 = vpop.f32.mrb[0].mxu0
  %1607 = vmatprep.mubr.bf16.mxu0 0
  %1608 = vmatmul.mubr.bf16.gmra.mrb[0].mxu0 %v370
  %v1609 = vpop.f32.mrb[0].mxu0
  %v1610 = vadd.f32 %v1521, %v1609
  %v1611 = vpop.f32.mrb[0].mxu0
  %v1612 = vpop.f32.mrb[0].mxu0
  %v1613 = vadd.f32 %v1524, %v1612
  %v1614 = vpop.f32.mrb[0].mxu0
  %1615 = vmatprep.mubr.bf16.mxu0 0
  %1616 = vmatmul.mubr.bf16.gmra.mrb[0].mxu0 %v375
  %v1617 = vpop.f32.mrb[0].mxu0
  %v1618 = vadd.f32 %v1529, %v1617
  %v1619 = vpop.f32.mrb[0].mxu0
  %v1620 = vpop.f32.mrb[0].mxu0
  %v1621 = vadd.f32 %v1532, %v1620
  %v1622 = vpop.f32.mrb[0].mxu0
  %1623 = vmatprep.mubr.bf16.mxu0 0
  %1624 = vmatmul.mubr.bf16.gmra.mrb[0].mxu0 %v380
  %v1625 = vpop.f32.mrb[0].mxu0
  %v1626 = vadd.f32 %v1537, %v1625
  %v1627 = vpop.f32.mrb[0].mxu0
  %v1628 = vpop.f32.mrb[0].mxu0
  %v1629 = vadd.f32 %v1540, %v1628
  %v1630 = vpop.f32.mrb[0].mxu0
  %1631 = vdwg.mxu0
  %v1632 = vmax.f32 %v1297, 0.0
  %v1633 = vmax.f32 %v1299, 0.0
  %v1634 = vmax.f32 %v1578, 0.0
  %v1635 = vmax.f32 %v1301, 0.0
  %v1636 = vmax.f32 %v1303, 0.0
  %v1637 = vmax.f32 %v1581, 0.0
  %v1638 = vmax.f32 %v1307, 0.0
  %v1639 = vmax.f32 %v1309, 0.0
  %v1640 = vmax.f32 %v1586, 0.0
  %v1641 = vmax.f32 %v1311, 0.0
  %v1642 = vmax.f32 %v1313, 0.0
  %v1643 = vmax.f32 %v1589, 0.0
  %v1644 = vmax.f32 %v1317, 0.0
  %v1645 = vmax.f32 %v1319, 0.0
  %v1646 = vmax.f32 %v1594, 0.0
  %v1647 = vmax.f32 %v1321, 0.0
  %v1648 = vmax.f32 %v1323, 0.0
  %v1649 = vmax.f32 %v1597, 0.0
  %v1650 = vmax.f32 %v1327, 0.0
  %v1651 = vmax.f32 %v1329, 0.0
  %v1652 = vmax.f32 %v1602, 0.0
  %v1653 = vmax.f32 %v1331, 0.0
  %v1654 = vmax.f32 %v1333, 0.0
  %v1655 = vmax.f32 %v1605, 0.0
  %v1656 = vmax.f32 %v1337, 0.0
  %v1657 = vmax.f32 %v1339, 0.0
  %v1658 = vmax.f32 %v1610, 0.0
  %v1659 = vmax.f32 %v1341, 0.0
  %v1660 = vmax.f32 %v1343, 0.0
  %v1661 = vmax.f32 %v1613, 0.0
  %v1662 = vmax.f32 %v1347, 0.0
  %v1663 = vmax.f32 %v1349, 0.0
  %v1664 = vmax.f32 %v1618, 0.0
  %v1665 = vmax.f32 %v1351, 0.0
  %v1666 = vmax.f32 %v1353, 0.0
  %v1667 = vmax.f32 %v1621, 0.0
  %v1668 = vmax.f32 %v1357, 0.0
  %v1669 = vmax.f32 %v1359, 0.0
  %v1670 = vmax.f32 %v1626, 0.0
  %v1671 = vmax.f32 %v1361, 0.0
  %v1672 = vmax.f32 %v1363, 0.0
  %v1673 = vmax.f32 %v1629, 0.0
  %1674 = vst [vmem:[%s3] sm:$0xff] %v1632
  %1675 = vst [vmem:[%s3 + $0x8] sm:$0xff] %v1633
  %1676 = vst [vmem:[%s3 + $0x10] sm:$0xff] %v1634
  %1677 = vst [vmem:[%s3 + $0x18] sm:$0xff] %v1635
  %1678 = vst [vmem:[%s3 + $0x20] sm:$0xff] %v1636
  %1679 = vst [vmem:[%s3 + $0x28] sm:$0xff] %v1637
  %1680 = vst [vmem:[%s3 + $0x30] sm:$0xff] %v1638
  %1681 = vst [vmem:[%s3 + $0x38] sm:$0xff] %v1639
  %1682 = vst [vmem:[%s3 + $0x40] sm:$0xff] %v1640
  %1683 = vst [vmem:[%s3 + $0x48] sm:$0xff] %v1641
  %1684 = vst [vmem:[%s3 + $0x50] sm:$0xff] %v1642
  %1685 = vst [vmem:[%s3 + $0x58] sm:$0xff] %v1643
  %1686 = vst [vmem:[%s3 + $0x60] sm:$0xff] %v1644
  %1687 = vst [vmem:[%s3 + $0x68] sm:$0xff] %v1645
  %1688 = vst [vmem:[%s3 + $0x70] sm:$0xff] %v1646
  %1689 = vst [vmem:[%s3 + $0x78] sm:$0xff] %v1647
  %1690 = vst [vmem:[%s3 + $0x80] sm:$0xff] %v1648
  %1691 = vst [vmem:[%s3 + $0x88] sm:$0xff] %v1649
  %1692 = vst [vmem:[%s3 + $0x90] sm:$0xff] %v1650
  %1693 = vst [vmem:[%s3 + $0x98] sm:$0xff] %v1651
  %1694 = vst [vmem:[%s3 + $0xa0] sm:$0xff] %v1652
  %1695 = vst [vmem:[%s3 + $0xa8] sm:$0xff] %v1653
  %1696 = vst [vmem:[%s3 + $0xb0] sm:$0xff] %v1654
  %1697 = vst [vmem:[%s3 + $0xb8] sm:$0xff] %v1655
  %1698 = vst [vmem:[%s3 + $0xc0] sm:$0xff] %v1656
  %1699 = vst [vmem:[%s3 + $0xc8] sm:$0xff] %v1657
  %1700 = vst [vmem:[%s3 + $0xd0] sm:$0xff] %v1658
  %1701 = vst [vmem:[%s3 + $0xd8] sm:$0xff] %v1659
  %1702 = vst [vmem:[%s3 + $0xe0] sm:$0xff] %v1660
  %1703 = vst [vmem:[%s3 + $0xe8] sm:$0xff] %v1661
  %1704 = vst [vmem:[%s3 + $0xf0] sm:$0xff] %v1662
  %1705 = vst [vmem:[%s3 + $0xf8] sm:$0xff] %v1663
  %1706 = vst [vmem:[%s3 + $0x100] sm:$0xff] %v1664
  %1707 = vst [vmem:[%s3 + $0x108] sm:$0xff] %v1665
  %1708 = vst [vmem:[%s3 + $0x110] sm:$0xff] %v1666
  %1709 = vst [vmem:[%s3 + $0x118] sm:$0xff] %v1667
  %1710 = vst [vmem:[%s3 + $0x120] sm:$0xff] %v1668
  %1711 = vst [vmem:[%s3 + $0x128] sm:$0xff] %v1669
  %1712 = vst [vmem:[%s3 + $0x130] sm:$0xff] %v1670
  %1713 = vst [vmem:[%s3 + $0x138] sm:$0xff] %v1671
  %1714 = vst [vmem:[%s3 + $0x140] sm:$0xff] %v1672
  %1715 = vst [vmem:[%s3 + $0x148] sm:$0xff] %v1673
  // Predicated region
  $region14: #{inception_d.6} parent=0 // pred_check
    _
  $region15: #{inception_d.6} parent=0 // pred_check_branch
    %1717 = sbr.rel (0) target = $region17
  $region16: #{inception_d.6} parent=0 // pred_region
    _
  $region17: #{inception_d.6} parent=0 // pred_fallthru
    _
  // Predicated region
  $region18: #{inception_d.6} parent=0 // pred_check
    _
  $region19: #{inception_d.6} parent=0 // pred_check_branch
    %1719 = sbr.rel (0) target = $region21
  $region20: #{inception_d.6} parent=0 // pred_region
    _
  $region21: #{inception_d.6} parent=0 // pred_fallthru
    _

// kernel: inception_d.9
$region0: #{inception_d.9}
  #allocation0 [shape = 'u32[]', space=smem, size = 0x4, offset = 0x4, fixed_abs, tag = 'smem constant byte address 0x4 - core index']
  #allocation1 [shape = 'u32[144,128]{1,0:T(1,128)}', space=vmem, size = 0x12000, scoped, tag = 'internal scratch']
  %s0 = inlined_call_operand.vmem [shape: f32[9,4,128], index: 0, kind: input, shape index: {}]
  %s1 = inlined_call_operand.vmem [shape: f32[4,128], index: 1, kind: output, shape index: {}]
  %s2 = sld [smem:[#allocation0]]
  $region14: #{inception_d.9} parent=0
    _
  %s4 = ssub.s32 1, %s2
  %s5 = scalar_select 0, %s4, %s2
  // Predicated region
  $region2: #{inception_d.9} parent=0 // pred_check
    _
  $region3: #{inception_d.9} parent=0 // pred_check_branch
    %7 = sbr.rel (0) target = $region5
  $region4: #{inception_d.9} parent=0 // pred_region
    _
  $region5: #{inception_d.9} parent=0 // pred_fallthru
    _
  %v8 = vld [vmem:[%s0] sm:$0xf]
  %v9 = vld [vmem:[%s0 + $0x4] sm:$0xf]
  %v10 = vld [vmem:[%s0 + $0x8] sm:$0xf]
  %v11 = vld [vmem:[%s0 + $0xc] sm:$0xf]
  %v12 = vld [vmem:[%s0 + $0x10] sm:$0xf]
  %v13 = vld [vmem:[%s0 + $0x14] sm:$0xf]
  %v14 = vld [vmem:[%s0 + $0x18] sm:$0xf]
  %v15 = vld [vmem:[%s0 + $0x1c] sm:$0xf]
  %v16 = vld [vmem:[%s0 + $0x20] sm:$0xf]
  %vm17 = vcmask 1043456
  %v18 = vsel %vm17, %v8, -inf
  %v19 = vsel %vm17, %v9, -inf
  %v20 = vsel %vm17, %v10, -inf
  %v21 = vsel %vm17, %v11, -inf
  %v22 = vsel %vm17, %v12, -inf
  %v23 = vmax.f32 %v18, %v22
  %v24 = vsel %vm17, %v13, -inf
  %v25 = vmax.f32 %v19, %v24
  %v26 = vsel %vm17, %v14, -inf
  %v27 = vmax.f32 %v20, %v26
  %v28 = vsel %vm17, %v15, -inf
  %v29 = vmax.f32 %v21, %v28
  %v30 = vsel %vm17, %v16, -inf
  %v31 = vmax.f32 %v23, %v30
  %v32 = vmax.f32 %v31, %v25
  %v33 = vmax.f32 %v27, %v29
  %v34 = vmax.f32 %v32, %v33
  %35 = vst [vmem:[%s1] sm:$0xf] %v34
  // Predicated region
  $region6: #{inception_d.9} parent=0 // pred_check
    _
  $region7: #{inception_d.9} parent=0 // pred_check_branch
    %37 = sbr.rel (0) target = $region9
  $region8: #{inception_d.9} parent=0 // pred_region
    _
  $region9: #{inception_d.9} parent=0 // pred_fallthru
    _
  // Predicated region
  $region10: #{inception_d.9} parent=0 // pred_check
    _
  $region11: #{inception_d.9} parent=0 // pred_check_branch
    %39 = sbr.rel (0) target = $region13
  $region12: #{inception_d.9} parent=0 // pred_region
    _
  $region13: #{inception_d.9} parent=0 // pred_fallthru
    _

</llo_original>
